<compile_context>
chip_gen: v6e
topology: v6e:2x2x1
jax: 0.10.0
libtpu: 0.0.40
codegen_flags: <defaults>
</compile_context>

<pallas_src>
import math

import jax
import jax.numpy as jnp
from jax.experimental import pallas as pl
from jax.experimental.pallas import tpu as pltpu

# ----- small, self-consistent config (scaled-down from the PyTorch module) -----
D_MODEL = 128
D_FF = 256
NUM_HEADS = 4
HEAD_DIM = D_MODEL // NUM_HEADS
NUM_LAYERS = 2
VOCAB = 256
BATCH = 2
SEQ = 8
MEM_LEN = 8
EPS = 1e-5                       # PyTorch LayerNorm default
SCALE = 1.0 / math.sqrt(HEAD_DIM)

# ---- packed weight-slab column offsets (all multiples of 128 -> lane aligned) ----
CW_QKV = 0                        # [D, 3D] fused self-attn QKV
CW_OS  = CW_QKV + 3 * D_MODEL     # [D, D ] self-attn out proj
CW_QC  = CW_OS + D_MODEL          # [D, D ] cross-attn Q proj
CW_KVC = CW_QC + D_MODEL          # [D, 2D] fused cross-attn KV proj
CW_OC  = CW_KVC + 2 * D_MODEL     # [D, D ] cross-attn out proj
CW_FF1 = CW_OC + D_MODEL          # [D, D_FF] ffn in
W_COLS = CW_FF1 + D_FF            # = 1280

CB_QKV = 0
CB_OS  = CB_QKV + 3 * D_MODEL
CB_QC  = CB_OS + D_MODEL
CB_KVC = CB_QC + D_MODEL
CB_OC  = CB_KVC + 2 * D_MODEL
CB_FF1 = CB_OC + D_MODEL
CB_FF2 = CB_FF1 + D_FF
B_COLS = CB_FF2 + D_MODEL         # = 1408


# --------------------------- fused decoder-stack kernel ------------------------
def _decoder_stack_kernel(x_ref, mem_ref, wslab_ref, w2_ref, b_ref, ln_ref,
                          fc_w_ref, fc_b_ref, logits_ref):
    x = x_ref[0]                                   # [S, D]  f32
    mem_bf = mem_ref[0].astype(jnp.bfloat16)       # [L, D]  bf16 (cast once, reused NL times)

    def dense(inp_bf16, w_bf16, b_f32, relu=False):
        y = jnp.dot(inp_bf16, w_bf16, preferred_element_type=jnp.float32) + b_f32
        return jnp.maximum(y, 0.0) if relu else y

    def layer_norm(v, g, b):
        mu = jnp.mean(v, axis=-1, keepdims=True)
        var = jnp.mean(jnp.square(v - mu), axis=-1, keepdims=True)
        return (v - mu) * jax.lax.rsqrt(var + EPS) * g + b

    def attn_core(q, k, v):
        # q: [S, D], k/v: [L, D] f32 -> [S, D] f32.  Scale pre-folded into Q weights.
        # Head-batched: one score einsum, one softmax, one PV einsum for all heads.
        def split(t):   # [L, H*Hd] -> [H, L, Hd]
            return jnp.stack(
                [t[:, h * HEAD_DIM:(h + 1) * HEAD_DIM] for h in range(NUM_HEADS)], axis=0)
        qh, kh, vh = split(q), split(k), split(v)
        s = jnp.einsum("hqd,hkd->hqk", qh, kh, preferred_element_type=jnp.float32)
        s = s - jnp.max(s, axis=-1, keepdims=True)
        p = jnp.exp(s)
        p = p * pl.reciprocal(jnp.sum(p, axis=-1, keepdims=True), approx=True)
        o = jnp.einsum("hqk,hkd->hqd", p, vh, preferred_element_type=jnp.float32)
        return jnp.concatenate([o[h] for h in range(NUM_HEADS)], axis=-1)   # [S, D]

    # ------- statically unrolled layer loop (weights fully VMEM-resident) -------
    for layer in range(NUM_LAYERS):
        def W(c0, c1):                                  # [D, c1-c0] bf16
            return wslab_ref[layer, :, c0:c1]

        def Bv(c0, c1):                                 # [1, c1-c0] f32
            return b_ref[layer, :, c0:c1]

        ln = ln_ref[layer]                              # [6, D] f32 (g1,b1,g2,b2,g3,b3)

        # ---- self-attention (fused QKV GEMM), post-norm residual ----
        xb = x.astype(jnp.bfloat16)
        qkv = dense(xb, W(CW_QKV, CW_OS), Bv(CB_QKV, CB_OS))          # [S, 3D]
        sa = attn_core(qkv[:, :D_MODEL],
                       qkv[:, D_MODEL:2 * D_MODEL],
                       qkv[:, 2 * D_MODEL:])
        sa = dense(sa.astype(jnp.bfloat16), W(CW_OS, CW_QC), Bv(CB_OS, CB_QC))
        x = layer_norm(x + sa, ln[0:1], ln[1:2])

        # ---- cross-attention (fused KV GEMM on memory) ----
        xb = x.astype(jnp.bfloat16)
        qc = dense(xb, W(CW_QC, CW_KVC), Bv(CB_QC, CB_KVC))           # [S, D]
        kv = dense(mem_bf, W(CW_KVC, CW_OC), Bv(CB_KVC, CB_OC))       # [L, 2D]
        ca = attn_core(qc, kv[:, :D_MODEL], kv[:, D_MODEL:])
        ca = dense(ca.astype(jnp.bfloat16), W(CW_OC, CW_FF1), Bv(CB_OC, CB_FF1))
        x = layer_norm(x + ca, ln[2:3], ln[3:4])

        # ---- feed-forward (ReLU) ----
        xb = x.astype(jnp.bfloat16)
        h = dense(xb, W(CW_FF1, W_COLS), Bv(CB_FF1, CB_FF2), relu=True)   # [S, D_FF]
        ff = dense(h.astype(jnp.bfloat16), w2_ref[layer], Bv(CB_FF2, B_COLS))
        x = layer_norm(x + ff, ln[4:5], ln[5:6])

    # ---- vocab head (fused) ----
    logits_ref[0] = (
        jnp.dot(x.astype(jnp.bfloat16), fc_w_ref[...],
                preferred_element_type=jnp.float32) + fc_b_ref[...]
    ).astype(logits_ref.dtype)


# --------------------------- wrapper ------------------------------------------
def transformer_decoder_forward(tgt_ids, memory, params):
    # tgt_ids: [B, S] int32, memory: [B, L, D] f32 -> logits [B, S, VOCAB] f32
    B, S = tgt_ids.shape
    L = memory.shape[1]

    # TODO(synk): embedding gather + PE add left to XLA (data-dependent gather).
    emb = params["embedding"][tgt_ids] * math.sqrt(D_MODEL)           # [B, S, D]
    x = (emb + params["pe"][:S][None, :, :]).astype(jnp.float32)
    mem = memory.astype(jnp.float32)

    def full(shape):
        return pl.BlockSpec(shape, lambda b: (0,) * len(shape))

    def per_batch(shape):
        return pl.BlockSpec(shape, lambda b: (b, 0, 0))

    logits = pl.pallas_call(
        _decoder_stack_kernel,
        grid=(B,),
        in_specs=[
            per_batch((1, S, D_MODEL)),                  # x (embedded + PE), one batch row
            per_batch((1, L, D_MODEL)),                  # memory, one batch row
            full((NUM_LAYERS, D_MODEL, W_COLS)),         # packed D-row weight slab (bf16)
            full((NUM_LAYERS, D_FF, D_MODEL)),           # w2 slab (bf16)
            full((NUM_LAYERS, 1, B_COLS)),               # packed bias slab (f32)
            full((NUM_LAYERS, 6, D_MODEL)),              # layernorm g/b x3 (f32)
            full((D_MODEL, VOCAB)),                      # fc_w (bf16)
            full((1, VOCAB)),                            # fc_b (f32)
        ],
        out_specs=per_batch((1, S, VOCAB)),
        out_shape=jax.ShapeDtypeStruct((B, S, VOCAB), jnp.float32),
        compiler_params=pltpu.CompilerParams(
            dimension_semantics=("parallel",),           # independent batch rows -> 2 TCs on v7x
        ),
    )(
        x, mem,
        params["w_slab"], params["w2"], params["b_slab"], params["ln"],
        params["fc_w"], params["fc_b"],
    )
    return logits


# --------------------------- params -------------------------------------------
def make_positional_encoding(max_len, d):
    pos = jnp.arange(max_len, dtype=jnp.float32)[:, None]
    div = jnp.exp(jnp.arange(0, d, 2, dtype=jnp.float32) * (-math.log(10000.0) / d))
    pe = jnp.zeros((max_len, d), jnp.float32)
    pe = pe.at[:, 0::2].set(jnp.sin(pos * div))
    pe = pe.at[:, 1::2].set(jnp.cos(pos * div))
    return pe


def init_params(key):
    ks = jax.random.split(key, 10)
    NL, D = NUM_LAYERS, D_MODEL

    def w(k, shape, scale=0.05):
        return jax.random.normal(k, shape, jnp.float32) * scale

    wqkv_s = w(ks[1], (NL, D, 3 * D))
    wqkv_s = wqkv_s.at[:, :, :D].multiply(SCALE)      # fold 1/sqrt(head_dim) into Q cols
    wo_s = w(ks[2], (NL, D, D))
    wq_c = w(ks[3], (NL, D, D)) * SCALE               # fold scale into cross-attn Q
    wkv_c = w(ks[4], (NL, D, 2 * D))
    wo_c = w(ks[5], (NL, D, D))
    w1 = w(ks[6], (NL, D, D_FF))
    w2 = w(ks[7], (NL, D_FF, D))

    # pack all D-row weights into one lane-aligned slab: [NL, D, 1280] bf16
    w_slab = jnp.concatenate([wqkv_s, wo_s, wq_c, wkv_c, wo_c, w1],
                             axis=-1).astype(jnp.bfloat16)
    # all biases are zero (matches previous init); packed into one slab
    b_slab = jnp.zeros((NL, 1, B_COLS), jnp.float32)

    ln_one_layer = jnp.concatenate(
        [jnp.stack([jnp.ones((D,), jnp.float32), jnp.zeros((D,), jnp.float32)])] * 3,
        axis=0,
    )                                                  # [6, D] = g1,b1,g2,b2,g3,b3

    return dict(
        embedding=jax.random.normal(ks[0], (VOCAB, D), jnp.float32),
        pe=make_positional_encoding(64, D),
        w_slab=w_slab,
        w2=w2.astype(jnp.bfloat16),
        b_slab=b_slab,
        ln=jnp.tile(ln_one_layer[None], (NL, 1, 1)),
        fc_w=w(ks[8], (D, VOCAB)).astype(jnp.bfloat16),
        fc_b=jnp.zeros((1, VOCAB), jnp.float32),
    )


# ------------------------------------- main -------------------------------------
if __name__ == "__main__":
    key = jax.random.PRNGKey(0)
    k_param, k_tgt, k_mem = jax.random.split(key, 3)

    params = init_params(k_param)
    tgt = jax.random.randint(k_tgt, (BATCH, SEQ), 0, VOCAB, dtype=jnp.int32)
    memory = jax.random.normal(k_mem, (BATCH, MEM_LEN, D_MODEL), jnp.float32)

    logits = jax.jit(transformer_decoder_forward)(tgt, memory, params)
    jax.block_until_ready(logits)

    assert logits.shape == (BATCH, SEQ, VOCAB)
    assert logits.dtype == jnp.float32
    assert bool(jnp.all(jnp.isfinite(logits)))
    print("KERNEL_OK")
</pallas_src>

<mosaic_0001>
module attributes {stable_mosaic.version = 11 : i64} {
  func.func @_decoder_stack_kernel(%arg0: i32, %arg1: memref<1x8x128xf32, #tpu.memory_space<vmem>>, %arg2: memref<1x8x128xf32, #tpu.memory_space<vmem>>, %arg3: memref<2x128x1280xbf16, #tpu.memory_space<vmem>>, %arg4: memref<2x256x128xbf16, #tpu.memory_space<vmem>>, %arg5: memref<2x1x1408xf32, #tpu.memory_space<vmem>>, %arg6: memref<2x6x128xf32, #tpu.memory_space<vmem>>, %arg7: memref<128x256xbf16, #tpu.memory_space<vmem>>, %arg8: memref<1x256xf32, #tpu.memory_space<vmem>>, %arg9: memref<1x8x256xf32, #tpu.memory_space<vmem>>) attributes {dimension_semantics = [#tpu.dimension_semantics<parallel>], iteration_bounds = array<i64: 2>, scalar_prefetch = 0 : i64, scratch_operands = 0 : i64, tpu.core_type = #tpu.core_type<tc>, window_params = [{transform_indices = @transform_0, window_bounds = array<i64: 1, 8, 128>}, {transform_indices = @transform_1, window_bounds = array<i64: 1, 8, 128>}, {pipeline_mode = #tpu.pipeline_mode<synchronous>, transform_indices = @transform_2, window_bounds = array<i64: 2, 128, 1280>}, {pipeline_mode = #tpu.pipeline_mode<synchronous>, transform_indices = @transform_3, window_bounds = array<i64: 2, 256, 128>}, {pipeline_mode = #tpu.pipeline_mode<synchronous>, transform_indices = @transform_4, window_bounds = array<i64: 2, 1, 1408>}, {pipeline_mode = #tpu.pipeline_mode<synchronous>, transform_indices = @transform_5, window_bounds = array<i64: 2, 6, 128>}, {pipeline_mode = #tpu.pipeline_mode<synchronous>, transform_indices = @transform_6, window_bounds = array<i64: 128, 256>}, {pipeline_mode = #tpu.pipeline_mode<synchronous>, transform_indices = @transform_7, window_bounds = array<i64: 1, 256>}, {transform_indices = @transform_8, window_bounds = array<i64: 1, 8, 256>}]} {
    %c0 = arith.constant 0 : index
    %c0_0 = arith.constant 0 : index
    %c0_1 = arith.constant 0 : index
    %0 = vector.load %arg1[%c0, %c0_0, %c0_1] : memref<1x8x128xf32, #tpu.memory_space<vmem>>, vector<1x8x128xf32>
    %1 = vector.shape_cast %0 : vector<1x8x128xf32> to vector<8x128xf32>
    %c0_2 = arith.constant 0 : index
    %c0_3 = arith.constant 0 : index
    %c0_4 = arith.constant 0 : index
    %2 = vector.load %arg2[%c0_2, %c0_3, %c0_4] : memref<1x8x128xf32, #tpu.memory_space<vmem>>, vector<1x8x128xf32>
    %3 = vector.shape_cast %2 : vector<1x8x128xf32> to vector<8x128xf32>
    %4 = arith.truncf %3 : vector<8x128xf32> to vector<8x128xbf16>
    %c0_5 = arith.constant 0 : index
    %c0_6 = arith.constant 0 : index
    %c0_7 = arith.constant 0 : index
    %5 = vector.load %arg6[%c0_5, %c0_6, %c0_7] : memref<2x6x128xf32, #tpu.memory_space<vmem>>, vector<1x6x128xf32>
    %6 = vector.shape_cast %5 : vector<1x6x128xf32> to vector<6x128xf32>
    %7 = arith.truncf %1 : vector<8x128xf32> to vector<8x128xbf16>
    %c0_8 = arith.constant 0 : index
    %c0_9 = arith.constant 0 : index
    %c0_10 = arith.constant 0 : index
    %8 = vector.load %arg3[%c0_8, %c0_9, %c0_10] : memref<2x128x1280xbf16, #tpu.memory_space<vmem>>, vector<1x128x384xbf16>
    %9 = vector.shape_cast %8 : vector<1x128x384xbf16> to vector<128x384xbf16>
    %c0_11 = arith.constant 0 : index
    %c0_12 = arith.constant 0 : index
    %c0_13 = arith.constant 0 : index
    %10 = vector.load %arg5[%c0_11, %c0_12, %c0_13] : memref<2x1x1408xf32, #tpu.memory_space<vmem>>, vector<1x1x384xf32>
    %11 = vector.shape_cast %10 : vector<1x1x384xf32> to vector<1x384xf32>
    %cst = arith.constant dense<0.000000e+00> : vector<8x384xf32>
    %12 = tpu.matmul %7, %9, %cst {dimension_numbers = #tpu.dot_dimension_numbers<[1], [0], [0], [1], [0, 0, 1, 1], [], []>} : vector<8x128xbf16>, vector<128x384xbf16>, vector<8x384xf32> -> vector<8x384xf32>
    %13 = vector.broadcast %11 : vector<1x384xf32> to vector<8x384xf32>
    %14 = arith.addf %12, %13 : vector<8x384xf32>
    %15 = vector.extract_strided_slice %14 {offsets = [0, 0], sizes = [8, 128], strides = [1, 1]} : vector<8x384xf32> to vector<8x128xf32>
    %16 = vector.extract_strided_slice %14 {offsets = [0, 128], sizes = [8, 128], strides = [1, 1]} : vector<8x384xf32> to vector<8x128xf32>
    %17 = vector.extract_strided_slice %14 {offsets = [0, 256], sizes = [8, 128], strides = [1, 1]} : vector<8x384xf32> to vector<8x128xf32>
    %18 = vector.extract_strided_slice %15 {offsets = [0, 0], sizes = [8, 32], strides = [1, 1]} : vector<8x128xf32> to vector<8x32xf32>
    %19 = vector.extract_strided_slice %15 {offsets = [0, 32], sizes = [8, 32], strides = [1, 1]} : vector<8x128xf32> to vector<8x32xf32>
    %20 = vector.extract_strided_slice %15 {offsets = [0, 64], sizes = [8, 32], strides = [1, 1]} : vector<8x128xf32> to vector<8x32xf32>
    %21 = vector.extract_strided_slice %15 {offsets = [0, 96], sizes = [8, 32], strides = [1, 1]} : vector<8x128xf32> to vector<8x32xf32>
    %22 = vector.shape_cast %18 : vector<8x32xf32> to vector<1x8x32xf32>
    %23 = vector.shape_cast %19 : vector<8x32xf32> to vector<1x8x32xf32>
    %24 = vector.shape_cast %20 : vector<8x32xf32> to vector<1x8x32xf32>
    %25 = vector.shape_cast %21 : vector<8x32xf32> to vector<1x8x32xf32>
    %26 = tpu.concatenate %22, %23, %24, %25 in 0 : vector<1x8x32xf32>, vector<1x8x32xf32>, vector<1x8x32xf32>, vector<1x8x32xf32> -> vector<4x8x32xf32>
    %27 = vector.extract_strided_slice %16 {offsets = [0, 0], sizes = [8, 32], strides = [1, 1]} : vector<8x128xf32> to vector<8x32xf32>
    %28 = vector.extract_strided_slice %16 {offsets = [0, 32], sizes = [8, 32], strides = [1, 1]} : vector<8x128xf32> to vector<8x32xf32>
    %29 = vector.extract_strided_slice %16 {offsets = [0, 64], sizes = [8, 32], strides = [1, 1]} : vector<8x128xf32> to vector<8x32xf32>
    %30 = vector.extract_strided_slice %16 {offsets = [0, 96], sizes = [8, 32], strides = [1, 1]} : vector<8x128xf32> to vector<8x32xf32>
    %31 = vector.shape_cast %27 : vector<8x32xf32> to vector<1x8x32xf32>
    %32 = vector.shape_cast %28 : vector<8x32xf32> to vector<1x8x32xf32>
    %33 = vector.shape_cast %29 : vector<8x32xf32> to vector<1x8x32xf32>
    %34 = vector.shape_cast %30 : vector<8x32xf32> to vector<1x8x32xf32>
    %35 = tpu.concatenate %31, %32, %33, %34 in 0 : vector<1x8x32xf32>, vector<1x8x32xf32>, vector<1x8x32xf32>, vector<1x8x32xf32> -> vector<4x8x32xf32>
    %36 = vector.extract_strided_slice %17 {offsets = [0, 0], sizes = [8, 32], strides = [1, 1]} : vector<8x128xf32> to vector<8x32xf32>
    %37 = vector.extract_strided_slice %17 {offsets = [0, 32], sizes = [8, 32], strides = [1, 1]} : vector<8x128xf32> to vector<8x32xf32>
    %38 = vector.extract_strided_slice %17 {offsets = [0, 64], sizes = [8, 32], strides = [1, 1]} : vector<8x128xf32> to vector<8x32xf32>
    %39 = vector.extract_strided_slice %17 {offsets = [0, 96], sizes = [8, 32], strides = [1, 1]} : vector<8x128xf32> to vector<8x32xf32>
    %40 = vector.shape_cast %36 : vector<8x32xf32> to vector<1x8x32xf32>
    %41 = vector.shape_cast %37 : vector<8x32xf32> to vector<1x8x32xf32>
    %42 = vector.shape_cast %38 : vector<8x32xf32> to vector<1x8x32xf32>
    %43 = vector.shape_cast %39 : vector<8x32xf32> to vector<1x8x32xf32>
    %44 = tpu.concatenate %40, %41, %42, %43 in 0 : vector<1x8x32xf32>, vector<1x8x32xf32>, vector<1x8x32xf32>, vector<1x8x32xf32> -> vector<4x8x32xf32>
    "tpu.trace_start"() <{level = 10 : i32, message = "hqd,hkd->hqk"}> : () -> ()
    %cst_14 = arith.constant dense<0.000000e+00> : vector<4x8x8xf32>
    %45 = tpu.matmul %26, %35, %cst_14 {dimension_numbers = #tpu.dot_dimension_numbers<[2], [2], [1], [1], [0, 0, 0, 1, 1, 1], [0], [0]>} : vector<4x8x32xf32>, vector<4x8x32xf32>, vector<4x8x8xf32> -> vector<4x8x8xf32>
    "tpu.trace_stop"() : () -> ()
    %cst_15 = arith.constant dense<0xFF800000> : vector<4x8xf32>
    %46 = vector.multi_reduction <maximumf>, %45, %cst_15 [2] : vector<4x8x8xf32> to vector<4x8xf32>
    %47 = vector.shape_cast %46 : vector<4x8xf32> to vector<4x8x1xf32>
    %48 = vector.broadcast %47 : vector<4x8x1xf32> to vector<4x8x8xf32>
    %49 = arith.subf %45, %48 : vector<4x8x8xf32>
    %50 = math.exp %49 : vector<4x8x8xf32>
    %cst_16 = arith.constant dense<0.000000e+00> : vector<4x8xf32>
    %51 = vector.multi_reduction <add>, %50, %cst_16 [2] : vector<4x8x8xf32> to vector<4x8xf32>
    %52 = vector.shape_cast %51 : vector<4x8xf32> to vector<4x8x1xf32>
    %53 = tpu.reciprocal %52 {approx = true} : vector<4x8x1xf32> -> vector<4x8x1xf32>
    %54 = vector.broadcast %53 : vector<4x8x1xf32> to vector<4x8x8xf32>
    %55 = arith.mulf %50, %54 : vector<4x8x8xf32>
    "tpu.trace_start"() <{level = 10 : i32, message = "hqk,hkd->hqd"}> : () -> ()
    %cst_17 = arith.constant dense<0.000000e+00> : vector<4x8x32xf32>
    %56 = tpu.matmul %55, %44, %cst_17 {dimension_numbers = #tpu.dot_dimension_numbers<[2], [1], [1], [2], [0, 0, 0, 1, 1, 2], [0], [0]>} : vector<4x8x8xf32>, vector<4x8x32xf32>, vector<4x8x32xf32> -> vector<4x8x32xf32>
    "tpu.trace_stop"() : () -> ()
    %57 = vector.extract_strided_slice %56 {offsets = [0, 0, 0], sizes = [1, 8, 32], strides = [1, 1, 1]} : vector<4x8x32xf32> to vector<1x8x32xf32>
    %58 = vector.shape_cast %57 : vector<1x8x32xf32> to vector<8x32xf32>
    %59 = vector.extract_strided_slice %56 {offsets = [1, 0, 0], sizes = [1, 8, 32], strides = [1, 1, 1]} : vector<4x8x32xf32> to vector<1x8x32xf32>
    %60 = vector.shape_cast %59 : vector<1x8x32xf32> to vector<8x32xf32>
    %61 = vector.extract_strided_slice %56 {offsets = [2, 0, 0], sizes = [1, 8, 32], strides = [1, 1, 1]} : vector<4x8x32xf32> to vector<1x8x32xf32>
    %62 = vector.shape_cast %61 : vector<1x8x32xf32> to vector<8x32xf32>
    %63 = vector.extract_strided_slice %56 {offsets = [3, 0, 0], sizes = [1, 8, 32], strides = [1, 1, 1]} : vector<4x8x32xf32> to vector<1x8x32xf32>
    %64 = vector.shape_cast %63 : vector<1x8x32xf32> to vector<8x32xf32>
    %65 = tpu.concatenate %58, %60, %62, %64 in 1 : vector<8x32xf32>, vector<8x32xf32>, vector<8x32xf32>, vector<8x32xf32> -> vector<8x128xf32>
    %66 = arith.truncf %65 : vector<8x128xf32> to vector<8x128xbf16>
    %c0_18 = arith.constant 0 : index
    %c0_19 = arith.constant 0 : index
    %c384 = arith.constant 384 : index
    %67 = vector.load %arg3[%c0_18, %c0_19, %c384] : memref<2x128x1280xbf16, #tpu.memory_space<vmem>>, vector<1x128x128xbf16>
    %68 = vector.shape_cast %67 : vector<1x128x128xbf16> to vector<128x128xbf16>
    %c0_20 = arith.constant 0 : index
    %c0_21 = arith.constant 0 : index
    %c384_22 = arith.constant 384 : index
    %69 = vector.load %arg5[%c0_20, %c0_21, %c384_22] : memref<2x1x1408xf32, #tpu.memory_space<vmem>>, vector<1x1x128xf32>
    %70 = vector.shape_cast %69 : vector<1x1x128xf32> to vector<1x128xf32>
    %cst_23 = arith.constant dense<0.000000e+00> : vector<8x128xf32>
    %71 = tpu.matmul %66, %68, %cst_23 {dimension_numbers = #tpu.dot_dimension_numbers<[1], [0], [0], [1], [0, 0, 1, 1], [], []>} : vector<8x128xbf16>, vector<128x128xbf16>, vector<8x128xf32> -> vector<8x128xf32>
    %72 = vector.broadcast %70 : vector<1x128xf32> to vector<8x128xf32>
    %73 = arith.addf %71, %72 : vector<8x128xf32>
    %74 = arith.addf %1, %73 : vector<8x128xf32>
    %75 = vector.extract_strided_slice %6 {offsets = [0, 0], sizes = [1, 128], strides = [1, 1]} : vector<6x128xf32> to vector<1x128xf32>
    %76 = vector.extract_strided_slice %6 {offsets = [1, 0], sizes = [1, 128], strides = [1, 1]} : vector<6x128xf32> to vector<1x128xf32>
    %cst_24 = arith.constant dense<0.000000e+00> : vector<8xf32>
    %77 = vector.multi_reduction <add>, %74, %cst_24 [1] : vector<8x128xf32> to vector<8xf32>
    %78 = vector.shape_cast %77 : vector<8xf32> to vector<8x1xf32>
    %cst_25 = arith.constant 1.280000e+02 : f32
    %79 = vector.broadcast %cst_25 : f32 to vector<8x1xf32>
    %80 = arith.divf %78, %79 : vector<8x1xf32>
    %81 = vector.broadcast %80 : vector<8x1xf32> to vector<8x128xf32>
    %82 = arith.subf %74, %81 : vector<8x128xf32>
    %83 = arith.mulf %82, %82 : vector<8x128xf32>
    %cst_26 = arith.constant dense<0.000000e+00> : vector<8xf32>
    %84 = vector.multi_reduction <add>, %83, %cst_26 [1] : vector<8x128xf32> to vector<8xf32>
    %85 = vector.shape_cast %84 : vector<8xf32> to vector<8x1xf32>
    %cst_27 = arith.constant 1.280000e+02 : f32
    %86 = vector.broadcast %cst_27 : f32 to vector<8x1xf32>
    %87 = arith.divf %85, %86 : vector<8x1xf32>
    %88 = vector.broadcast %80 : vector<8x1xf32> to vector<8x128xf32>
    %89 = arith.subf %74, %88 : vector<8x128xf32>
    %cst_28 = arith.constant 9.99999974E-6 : f32
    %90 = vector.broadcast %cst_28 : f32 to vector<8x1xf32>
    %91 = arith.addf %87, %90 : vector<8x1xf32>
    %92 = math.rsqrt %91 : vector<8x1xf32>
    %93 = vector.broadcast %92 : vector<8x1xf32> to vector<8x128xf32>
    %94 = arith.mulf %89, %93 : vector<8x128xf32>
    %95 = vector.broadcast %75 : vector<1x128xf32> to vector<8x128xf32>
    %96 = arith.mulf %94, %95 : vector<8x128xf32>
    %97 = vector.broadcast %76 : vector<1x128xf32> to vector<8x128xf32>
    %98 = arith.addf %96, %97 : vector<8x128xf32>
    %99 = arith.truncf %98 : vector<8x128xf32> to vector<8x128xbf16>
    %c0_29 = arith.constant 0 : index
    %c0_30 = arith.constant 0 : index
    %c512 = arith.constant 512 : index
    %100 = vector.load %arg3[%c0_29, %c0_30, %c512] : memref<2x128x1280xbf16, #tpu.memory_space<vmem>>, vector<1x128x128xbf16>
    %101 = vector.shape_cast %100 : vector<1x128x128xbf16> to vector<128x128xbf16>
    %c0_31 = arith.constant 0 : index
    %c0_32 = arith.constant 0 : index
    %c512_33 = arith.constant 512 : index
    %102 = vector.load %arg5[%c0_31, %c0_32, %c512_33] : memref<2x1x1408xf32, #tpu.memory_space<vmem>>, vector<1x1x128xf32>
    %103 = vector.shape_cast %102 : vector<1x1x128xf32> to vector<1x128xf32>
    %cst_34 = arith.constant dense<0.000000e+00> : vector<8x128xf32>
    %104 = tpu.matmul %99, %101, %cst_34 {dimension_numbers = #tpu.dot_dimension_numbers<[1], [0], [0], [1], [0, 0, 1, 1], [], []>} : vector<8x128xbf16>, vector<128x128xbf16>, vector<8x128xf32> -> vector<8x128xf32>
    %105 = vector.broadcast %103 : vector<1x128xf32> to vector<8x128xf32>
    %106 = arith.addf %104, %105 : vector<8x128xf32>
    %c0_35 = arith.constant 0 : index
    %c0_36 = arith.constant 0 : index
    %c640 = arith.constant 640 : index
    %107 = vector.load %arg3[%c0_35, %c0_36, %c640] : memref<2x128x1280xbf16, #tpu.memory_space<vmem>>, vector<1x128x256xbf16>
    %108 = vector.shape_cast %107 : vector<1x128x256xbf16> to vector<128x256xbf16>
    %c0_37 = arith.constant 0 : index
    %c0_38 = arith.constant 0 : index
    %c640_39 = arith.constant 640 : index
    %109 = vector.load %arg5[%c0_37, %c0_38, %c640_39] : memref<2x1x1408xf32, #tpu.memory_space<vmem>>, vector<1x1x256xf32>
    %110 = vector.shape_cast %109 : vector<1x1x256xf32> to vector<1x256xf32>
    %cst_40 = arith.constant dense<0.000000e+00> : vector<8x256xf32>
    %111 = tpu.matmul %4, %108, %cst_40 {dimension_numbers = #tpu.dot_dimension_numbers<[1], [0], [0], [1], [0, 0, 1, 1], [], []>} : vector<8x128xbf16>, vector<128x256xbf16>, vector<8x256xf32> -> vector<8x256xf32>
    %112 = vector.broadcast %110 : vector<1x256xf32> to vector<8x256xf32>
    %113 = arith.addf %111, %112 : vector<8x256xf32>
    %114 = vector.extract_strided_slice %113 {offsets = [0, 0], sizes = [8, 128], strides = [1, 1]} : vector<8x256xf32> to vector<8x128xf32>
    %115 = vector.extract_strided_slice %113 {offsets = [0, 128], sizes = [8, 128], strides = [1, 1]} : vector<8x256xf32> to vector<8x128xf32>
    %116 = vector.extract_strided_slice %106 {offsets = [0, 0], sizes = [8, 32], strides = [1, 1]} : vector<8x128xf32> to vector<8x32xf32>
    %117 = vector.extract_strided_slice %106 {offsets = [0, 32], sizes = [8, 32], strides = [1, 1]} : vector<8x128xf32> to vector<8x32xf32>
    %118 = vector.extract_strided_slice %106 {offsets = [0, 64], sizes = [8, 32], strides = [1, 1]} : vector<8x128xf32> to vector<8x32xf32>
    %119 = vector.extract_strided_slice %106 {offsets = [0, 96], sizes = [8, 32], strides = [1, 1]} : vector<8x128xf32> to vector<8x32xf32>
    %120 = vector.shape_cast %116 : vector<8x32xf32> to vector<1x8x32xf32>
    %121 = vector.shape_cast %117 : vector<8x32xf32> to vector<1x8x32xf32>
    %122 = vector.shape_cast %118 : vector<8x32xf32> to vector<1x8x32xf32>
    %123 = vector.shape_cast %119 : vector<8x32xf32> to vector<1x8x32xf32>
    %124 = tpu.concatenate %120, %121, %122, %123 in 0 : vector<1x8x32xf32>, vector<1x8x32xf32>, vector<1x8x32xf32>, vector<1x8x32xf32> -> vector<4x8x32xf32>
    %125 = vector.extract_strided_slice %114 {offsets = [0, 0], sizes = [8, 32], strides = [1, 1]} : vector<8x128xf32> to vector<8x32xf32>
    %126 = vector.extract_strided_slice %114 {offsets = [0, 32], sizes = [8, 32], strides = [1, 1]} : vector<8x128xf32> to vector<8x32xf32>
    %127 = vector.extract_strided_slice %114 {offsets = [0, 64], sizes = [8, 32], strides = [1, 1]} : vector<8x128xf32> to vector<8x32xf32>
    %128 = vector.extract_strided_slice %114 {offsets = [0, 96], sizes = [8, 32], strides = [1, 1]} : vector<8x128xf32> to vector<8x32xf32>
    %129 = vector.shape_cast %125 : vector<8x32xf32> to vector<1x8x32xf32>
    %130 = vector.shape_cast %126 : vector<8x32xf32> to vector<1x8x32xf32>
    %131 = vector.shape_cast %127 : vector<8x32xf32> to vector<1x8x32xf32>
    %132 = vector.shape_cast %128 : vector<8x32xf32> to vector<1x8x32xf32>
    %133 = tpu.concatenate %129, %130, %131, %132 in 0 : vector<1x8x32xf32>, vector<1x8x32xf32>, vector<1x8x32xf32>, vector<1x8x32xf32> -> vector<4x8x32xf32>
    %134 = vector.extract_strided_slice %115 {offsets = [0, 0], sizes = [8, 32], strides = [1, 1]} : vector<8x128xf32> to vector<8x32xf32>
    %135 = vector.extract_strided_slice %115 {offsets = [0, 32], sizes = [8, 32], strides = [1, 1]} : vector<8x128xf32> to vector<8x32xf32>
    %136 = vector.extract_strided_slice %115 {offsets = [0, 64], sizes = [8, 32], strides = [1, 1]} : vector<8x128xf32> to vector<8x32xf32>
    %137 = vector.extract_strided_slice %115 {offsets = [0, 96], sizes = [8, 32], strides = [1, 1]} : vector<8x128xf32> to vector<8x32xf32>
    %138 = vector.shape_cast %134 : vector<8x32xf32> to vector<1x8x32xf32>
    %139 = vector.shape_cast %135 : vector<8x32xf32> to vector<1x8x32xf32>
    %140 = vector.shape_cast %136 : vector<8x32xf32> to vector<1x8x32xf32>
    %141 = vector.shape_cast %137 : vector<8x32xf32> to vector<1x8x32xf32>
    %142 = tpu.concatenate %138, %139, %140, %141 in 0 : vector<1x8x32xf32>, vector<1x8x32xf32>, vector<1x8x32xf32>, vector<1x8x32xf32> -> vector<4x8x32xf32>
    "tpu.trace_start"() <{level = 10 : i32, message = "hqd,hkd->hqk"}> : () -> ()
    %cst_41 = arith.constant dense<0.000000e+00> : vector<4x8x8xf32>
    %143 = tpu.matmul %124, %133, %cst_41 {dimension_numbers = #tpu.dot_dimension_numbers<[2], [2], [1], [1], [0, 0, 0, 1, 1, 1], [0], [0]>} : vector<4x8x32xf32>, vector<4x8x32xf32>, vector<4x8x8xf32> -> vector<4x8x8xf32>
    "tpu.trace_stop"() : () -> ()
    %cst_42 = arith.constant dense<0xFF800000> : vector<4x8xf32>
    %144 = vector.multi_reduction <maximumf>, %143, %cst_42 [2] : vector<4x8x8xf32> to vector<4x8xf32>
    %145 = vector.shape_cast %144 : vector<4x8xf32> to vector<4x8x1xf32>
    %146 = vector.broadcast %145 : vector<4x8x1xf32> to vector<4x8x8xf32>
    %147 = arith.subf %143, %146 : vector<4x8x8xf32>
    %148 = math.exp %147 : vector<4x8x8xf32>
    %cst_43 = arith.constant dense<0.000000e+00> : vector<4x8xf32>
    %149 = vector.multi_reduction <add>, %148, %cst_43 [2] : vector<4x8x8xf32> to vector<4x8xf32>
    %150 = vector.shape_cast %149 : vector<4x8xf32> to vector<4x8x1xf32>
    %151 = tpu.reciprocal %150 {approx = true} : vector<4x8x1xf32> -> vector<4x8x1xf32>
    %152 = vector.broadcast %151 : vector<4x8x1xf32> to vector<4x8x8xf32>
    %153 = arith.mulf %148, %152 : vector<4x8x8xf32>
    "tpu.trace_start"() <{level = 10 : i32, message = "hqk,hkd->hqd"}> : () -> ()
    %cst_44 = arith.constant dense<0.000000e+00> : vector<4x8x32xf32>
    %154 = tpu.matmul %153, %142, %cst_44 {dimension_numbers = #tpu.dot_dimension_numbers<[2], [1], [1], [2], [0, 0, 0, 1, 1, 2], [0], [0]>} : vector<4x8x8xf32>, vector<4x8x32xf32>, vector<4x8x32xf32> -> vector<4x8x32xf32>
    "tpu.trace_stop"() : () -> ()
    %155 = vector.extract_strided_slice %154 {offsets = [0, 0, 0], sizes = [1, 8, 32], strides = [1, 1, 1]} : vector<4x8x32xf32> to vector<1x8x32xf32>
    %156 = vector.shape_cast %155 : vector<1x8x32xf32> to vector<8x32xf32>
    %157 = vector.extract_strided_slice %154 {offsets = [1, 0, 0], sizes = [1, 8, 32], strides = [1, 1, 1]} : vector<4x8x32xf32> to vector<1x8x32xf32>
    %158 = vector.shape_cast %157 : vector<1x8x32xf32> to vector<8x32xf32>
    %159 = vector.extract_strided_slice %154 {offsets = [2, 0, 0], sizes = [1, 8, 32], strides = [1, 1, 1]} : vector<4x8x32xf32> to vector<1x8x32xf32>
    %160 = vector.shape_cast %159 : vector<1x8x32xf32> to vector<8x32xf32>
    %161 = vector.extract_strided_slice %154 {offsets = [3, 0, 0], sizes = [1, 8, 32], strides = [1, 1, 1]} : vector<4x8x32xf32> to vector<1x8x32xf32>
    %162 = vector.shape_cast %161 : vector<1x8x32xf32> to vector<8x32xf32>
    %163 = tpu.concatenate %156, %158, %160, %162 in 1 : vector<8x32xf32>, vector<8x32xf32>, vector<8x32xf32>, vector<8x32xf32> -> vector<8x128xf32>
    %164 = arith.truncf %163 : vector<8x128xf32> to vector<8x128xbf16>
    %c0_45 = arith.constant 0 : index
    %c0_46 = arith.constant 0 : index
    %c896 = arith.constant 896 : index
    %165 = vector.load %arg3[%c0_45, %c0_46, %c896] : memref<2x128x1280xbf16, #tpu.memory_space<vmem>>, vector<1x128x128xbf16>
    %166 = vector.shape_cast %165 : vector<1x128x128xbf16> to vector<128x128xbf16>
    %c0_47 = arith.constant 0 : index
    %c0_48 = arith.constant 0 : index
    %c896_49 = arith.constant 896 : index
    %167 = vector.load %arg5[%c0_47, %c0_48, %c896_49] : memref<2x1x1408xf32, #tpu.memory_space<vmem>>, vector<1x1x128xf32>
    %168 = vector.shape_cast %167 : vector<1x1x128xf32> to vector<1x128xf32>
    %cst_50 = arith.constant dense<0.000000e+00> : vector<8x128xf32>
    %169 = tpu.matmul %164, %166, %cst_50 {dimension_numbers = #tpu.dot_dimension_numbers<[1], [0], [0], [1], [0, 0, 1, 1], [], []>} : vector<8x128xbf16>, vector<128x128xbf16>, vector<8x128xf32> -> vector<8x128xf32>
    %170 = vector.broadcast %168 : vector<1x128xf32> to vector<8x128xf32>
    %171 = arith.addf %169, %170 : vector<8x128xf32>
    %172 = arith.addf %98, %171 : vector<8x128xf32>
    %173 = vector.extract_strided_slice %6 {offsets = [2, 0], sizes = [1, 128], strides = [1, 1]} : vector<6x128xf32> to vector<1x128xf32>
    %174 = vector.extract_strided_slice %6 {offsets = [3, 0], sizes = [1, 128], strides = [1, 1]} : vector<6x128xf32> to vector<1x128xf32>
    %cst_51 = arith.constant dense<0.000000e+00> : vector<8xf32>
    %175 = vector.multi_reduction <add>, %172, %cst_51 [1] : vector<8x128xf32> to vector<8xf32>
    %176 = vector.shape_cast %175 : vector<8xf32> to vector<8x1xf32>
    %cst_52 = arith.constant 1.280000e+02 : f32
    %177 = vector.broadcast %cst_52 : f32 to vector<8x1xf32>
    %178 = arith.divf %176, %177 : vector<8x1xf32>
    %179 = vector.broadcast %178 : vector<8x1xf32> to vector<8x128xf32>
    %180 = arith.subf %172, %179 : vector<8x128xf32>
    %181 = arith.mulf %180, %180 : vector<8x128xf32>
    %cst_53 = arith.constant dense<0.000000e+00> : vector<8xf32>
    %182 = vector.multi_reduction <add>, %181, %cst_53 [1] : vector<8x128xf32> to vector<8xf32>
    %183 = vector.shape_cast %182 : vector<8xf32> to vector<8x1xf32>
    %cst_54 = arith.constant 1.280000e+02 : f32
    %184 = vector.broadcast %cst_54 : f32 to vector<8x1xf32>
    %185 = arith.divf %183, %184 : vector<8x1xf32>
    %186 = vector.broadcast %178 : vector<8x1xf32> to vector<8x128xf32>
    %187 = arith.subf %172, %186 : vector<8x128xf32>
    %cst_55 = arith.constant 9.99999974E-6 : f32
    %188 = vector.broadcast %cst_55 : f32 to vector<8x1xf32>
    %189 = arith.addf %185, %188 : vector<8x1xf32>
    %190 = math.rsqrt %189 : vector<8x1xf32>
    %191 = vector.broadcast %190 : vector<8x1xf32> to vector<8x128xf32>
    %192 = arith.mulf %187, %191 : vector<8x128xf32>
    %193 = vector.broadcast %173 : vector<1x128xf32> to vector<8x128xf32>
    %194 = arith.mulf %192, %193 : vector<8x128xf32>
    %195 = vector.broadcast %174 : vector<1x128xf32> to vector<8x128xf32>
    %196 = arith.addf %194, %195 : vector<8x128xf32>
    %197 = arith.truncf %196 : vector<8x128xf32> to vector<8x128xbf16>
    %c0_56 = arith.constant 0 : index
    %c0_57 = arith.constant 0 : index
    %c1024 = arith.constant 1024 : index
    %198 = vector.load %arg3[%c0_56, %c0_57, %c1024] : memref<2x128x1280xbf16, #tpu.memory_space<vmem>>, vector<1x128x256xbf16>
    %199 = vector.shape_cast %198 : vector<1x128x256xbf16> to vector<128x256xbf16>
    %c0_58 = arith.constant 0 : index
    %c0_59 = arith.constant 0 : index
    %c1024_60 = arith.constant 1024 : index
    %200 = vector.load %arg5[%c0_58, %c0_59, %c1024_60] : memref<2x1x1408xf32, #tpu.memory_space<vmem>>, vector<1x1x256xf32>
    %201 = vector.shape_cast %200 : vector<1x1x256xf32> to vector<1x256xf32>
    %cst_61 = arith.constant dense<0.000000e+00> : vector<8x256xf32>
    %202 = tpu.matmul %197, %199, %cst_61 {dimension_numbers = #tpu.dot_dimension_numbers<[1], [0], [0], [1], [0, 0, 1, 1], [], []>} : vector<8x128xbf16>, vector<128x256xbf16>, vector<8x256xf32> -> vector<8x256xf32>
    %203 = vector.broadcast %201 : vector<1x256xf32> to vector<8x256xf32>
    %204 = arith.addf %202, %203 : vector<8x256xf32>
    %cst_62 = arith.constant 0.000000e+00 : f32
    %205 = vector.broadcast %cst_62 : f32 to vector<8x256xf32>
    %206 = arith.maximumf %204, %205 : vector<8x256xf32>
    %207 = arith.truncf %206 : vector<8x256xf32> to vector<8x256xbf16>
    %c0_63 = arith.constant 0 : index
    %c0_64 = arith.constant 0 : index
    %c0_65 = arith.constant 0 : index
    %208 = vector.load %arg4[%c0_63, %c0_64, %c0_65] : memref<2x256x128xbf16, #tpu.memory_space<vmem>>, vector<1x256x128xbf16>
    %209 = vector.shape_cast %208 : vector<1x256x128xbf16> to vector<256x128xbf16>
    %c0_66 = arith.constant 0 : index
    %c0_67 = arith.constant 0 : index
    %c1280 = arith.constant 1280 : index
    %210 = vector.load %arg5[%c0_66, %c0_67, %c1280] : memref<2x1x1408xf32, #tpu.memory_space<vmem>>, vector<1x1x128xf32>
    %211 = vector.shape_cast %210 : vector<1x1x128xf32> to vector<1x128xf32>
    %cst_68 = arith.constant dense<0.000000e+00> : vector<8x128xf32>
    %212 = tpu.matmul %207, %209, %cst_68 {dimension_numbers = #tpu.dot_dimension_numbers<[1], [0], [0], [1], [0, 0, 1, 1], [], []>} : vector<8x256xbf16>, vector<256x128xbf16>, vector<8x128xf32> -> vector<8x128xf32>
    %213 = vector.broadcast %211 : vector<1x128xf32> to vector<8x128xf32>
    %214 = arith.addf %212, %213 : vector<8x128xf32>
    %215 = arith.addf %196, %214 : vector<8x128xf32>
    %216 = vector.extract_strided_slice %6 {offsets = [4, 0], sizes = [1, 128], strides = [1, 1]} : vector<6x128xf32> to vector<1x128xf32>
    %217 = vector.extract_strided_slice %6 {offsets = [5, 0], sizes = [1, 128], strides = [1, 1]} : vector<6x128xf32> to vector<1x128xf32>
    %cst_69 = arith.constant dense<0.000000e+00> : vector<8xf32>
    %218 = vector.multi_reduction <add>, %215, %cst_69 [1] : vector<8x128xf32> to vector<8xf32>
    %219 = vector.shape_cast %218 : vector<8xf32> to vector<8x1xf32>
    %cst_70 = arith.constant 1.280000e+02 : f32
    %220 = vector.broadcast %cst_70 : f32 to vector<8x1xf32>
    %221 = arith.divf %219, %220 : vector<8x1xf32>
    %222 = vector.broadcast %221 : vector<8x1xf32> to vector<8x128xf32>
    %223 = arith.subf %215, %222 : vector<8x128xf32>
    %224 = arith.mulf %223, %223 : vector<8x128xf32>
    %cst_71 = arith.constant dense<0.000000e+00> : vector<8xf32>
    %225 = vector.multi_reduction <add>, %224, %cst_71 [1] : vector<8x128xf32> to vector<8xf32>
    %226 = vector.shape_cast %225 : vector<8xf32> to vector<8x1xf32>
    %cst_72 = arith.constant 1.280000e+02 : f32
    %227 = vector.broadcast %cst_72 : f32 to vector<8x1xf32>
    %228 = arith.divf %226, %227 : vector<8x1xf32>
    %229 = vector.broadcast %221 : vector<8x1xf32> to vector<8x128xf32>
    %230 = arith.subf %215, %229 : vector<8x128xf32>
    %cst_73 = arith.constant 9.99999974E-6 : f32
    %231 = vector.broadcast %cst_73 : f32 to vector<8x1xf32>
    %232 = arith.addf %228, %231 : vector<8x1xf32>
    %233 = math.rsqrt %232 : vector<8x1xf32>
    %234 = vector.broadcast %233 : vector<8x1xf32> to vector<8x128xf32>
    %235 = arith.mulf %230, %234 : vector<8x128xf32>
    %236 = vector.broadcast %216 : vector<1x128xf32> to vector<8x128xf32>
    %237 = arith.mulf %235, %236 : vector<8x128xf32>
    %238 = vector.broadcast %217 : vector<1x128xf32> to vector<8x128xf32>
    %239 = arith.addf %237, %238 : vector<8x128xf32>
    %c1 = arith.constant 1 : index
    %c0_74 = arith.constant 0 : index
    %c0_75 = arith.constant 0 : index
    %240 = vector.load %arg6[%c1, %c0_74, %c0_75] : memref<2x6x128xf32, #tpu.memory_space<vmem>>, vector<1x6x128xf32>
    %241 = vector.shape_cast %240 : vector<1x6x128xf32> to vector<6x128xf32>
    %242 = arith.truncf %239 : vector<8x128xf32> to vector<8x128xbf16>
    %c1_76 = arith.constant 1 : index
    %c0_77 = arith.constant 0 : index
    %c0_78 = arith.constant 0 : index
    %243 = vector.load %arg3[%c1_76, %c0_77, %c0_78] : memref<2x128x1280xbf16, #tpu.memory_space<vmem>>, vector<1x128x384xbf16>
    %244 = vector.shape_cast %243 : vector<1x128x384xbf16> to vector<128x384xbf16>
    %c1_79 = arith.constant 1 : index
    %c0_80 = arith.constant 0 : index
    %c0_81 = arith.constant 0 : index
    %245 = vector.load %arg5[%c1_79, %c0_80, %c0_81] : memref<2x1x1408xf32, #tpu.memory_space<vmem>>, vector<1x1x384xf32>
    %246 = vector.shape_cast %245 : vector<1x1x384xf32> to vector<1x384xf32>
    %cst_82 = arith.constant dense<0.000000e+00> : vector<8x384xf32>
    %247 = tpu.matmul %242, %244, %cst_82 {dimension_numbers = #tpu.dot_dimension_numbers<[1], [0], [0], [1], [0, 0, 1, 1], [], []>} : vector<8x128xbf16>, vector<128x384xbf16>, vector<8x384xf32> -> vector<8x384xf32>
    %248 = vector.broadcast %246 : vector<1x384xf32> to vector<8x384xf32>
    %249 = arith.addf %247, %248 : vector<8x384xf32>
    %250 = vector.extract_strided_slice %249 {offsets = [0, 0], sizes = [8, 128], strides = [1, 1]} : vector<8x384xf32> to vector<8x128xf32>
    %251 = vector.extract_strided_slice %249 {offsets = [0, 128], sizes = [8, 128], strides = [1, 1]} : vector<8x384xf32> to vector<8x128xf32>
    %252 = vector.extract_strided_slice %249 {offsets = [0, 256], sizes = [8, 128], strides = [1, 1]} : vector<8x384xf32> to vector<8x128xf32>
    %253 = vector.extract_strided_slice %250 {offsets = [0, 0], sizes = [8, 32], strides = [1, 1]} : vector<8x128xf32> to vector<8x32xf32>
    %254 = vector.extract_strided_slice %250 {offsets = [0, 32], sizes = [8, 32], strides = [1, 1]} : vector<8x128xf32> to vector<8x32xf32>
    %255 = vector.extract_strided_slice %250 {offsets = [0, 64], sizes = [8, 32], strides = [1, 1]} : vector<8x128xf32> to vector<8x32xf32>
    %256 = vector.extract_strided_slice %250 {offsets = [0, 96], sizes = [8, 32], strides = [1, 1]} : vector<8x128xf32> to vector<8x32xf32>
    %257 = vector.shape_cast %253 : vector<8x32xf32> to vector<1x8x32xf32>
    %258 = vector.shape_cast %254 : vector<8x32xf32> to vector<1x8x32xf32>
    %259 = vector.shape_cast %255 : vector<8x32xf32> to vector<1x8x32xf32>
    %260 = vector.shape_cast %256 : vector<8x32xf32> to vector<1x8x32xf32>
    %261 = tpu.concatenate %257, %258, %259, %260 in 0 : vector<1x8x32xf32>, vector<1x8x32xf32>, vector<1x8x32xf32>, vector<1x8x32xf32> -> vector<4x8x32xf32>
    %262 = vector.extract_strided_slice %251 {offsets = [0, 0], sizes = [8, 32], strides = [1, 1]} : vector<8x128xf32> to vector<8x32xf32>
    %263 = vector.extract_strided_slice %251 {offsets = [0, 32], sizes = [8, 32], strides = [1, 1]} : vector<8x128xf32> to vector<8x32xf32>
    %264 = vector.extract_strided_slice %251 {offsets = [0, 64], sizes = [8, 32], strides = [1, 1]} : vector<8x128xf32> to vector<8x32xf32>
    %265 = vector.extract_strided_slice %251 {offsets = [0, 96], sizes = [8, 32], strides = [1, 1]} : vector<8x128xf32> to vector<8x32xf32>
    %266 = vector.shape_cast %262 : vector<8x32xf32> to vector<1x8x32xf32>
    %267 = vector.shape_cast %263 : vector<8x32xf32> to vector<1x8x32xf32>
    %268 = vector.shape_cast %264 : vector<8x32xf32> to vector<1x8x32xf32>
    %269 = vector.shape_cast %265 : vector<8x32xf32> to vector<1x8x32xf32>
    %270 = tpu.concatenate %266, %267, %268, %269 in 0 : vector<1x8x32xf32>, vector<1x8x32xf32>, vector<1x8x32xf32>, vector<1x8x32xf32> -> vector<4x8x32xf32>
    %271 = vector.extract_strided_slice %252 {offsets = [0, 0], sizes = [8, 32], strides = [1, 1]} : vector<8x128xf32> to vector<8x32xf32>
    %272 = vector.extract_strided_slice %252 {offsets = [0, 32], sizes = [8, 32], strides = [1, 1]} : vector<8x128xf32> to vector<8x32xf32>
    %273 = vector.extract_strided_slice %252 {offsets = [0, 64], sizes = [8, 32], strides = [1, 1]} : vector<8x128xf32> to vector<8x32xf32>
    %274 = vector.extract_strided_slice %252 {offsets = [0, 96], sizes = [8, 32], strides = [1, 1]} : vector<8x128xf32> to vector<8x32xf32>
    %275 = vector.shape_cast %271 : vector<8x32xf32> to vector<1x8x32xf32>
    %276 = vector.shape_cast %272 : vector<8x32xf32> to vector<1x8x32xf32>
    %277 = vector.shape_cast %273 : vector<8x32xf32> to vector<1x8x32xf32>
    %278 = vector.shape_cast %274 : vector<8x32xf32> to vector<1x8x32xf32>
    %279 = tpu.concatenate %275, %276, %277, %278 in 0 : vector<1x8x32xf32>, vector<1x8x32xf32>, vector<1x8x32xf32>, vector<1x8x32xf32> -> vector<4x8x32xf32>
    "tpu.trace_start"() <{level = 10 : i32, message = "hqd,hkd->hqk"}> : () -> ()
    %cst_83 = arith.constant dense<0.000000e+00> : vector<4x8x8xf32>
    %280 = tpu.matmul %261, %270, %cst_83 {dimension_numbers = #tpu.dot_dimension_numbers<[2], [2], [1], [1], [0, 0, 0, 1, 1, 1], [0], [0]>} : vector<4x8x32xf32>, vector<4x8x32xf32>, vector<4x8x8xf32> -> vector<4x8x8xf32>
    "tpu.trace_stop"() : () -> ()
    %cst_84 = arith.constant dense<0xFF800000> : vector<4x8xf32>
    %281 = vector.multi_reduction <maximumf>, %280, %cst_84 [2] : vector<4x8x8xf32> to vector<4x8xf32>
    %282 = vector.shape_cast %281 : vector<4x8xf32> to vector<4x8x1xf32>
    %283 = vector.broadcast %282 : vector<4x8x1xf32> to vector<4x8x8xf32>
    %284 = arith.subf %280, %283 : vector<4x8x8xf32>
    %285 = math.exp %284 : vector<4x8x8xf32>
    %cst_85 = arith.constant dense<0.000000e+00> : vector<4x8xf32>
    %286 = vector.multi_reduction <add>, %285, %cst_85 [2] : vector<4x8x8xf32> to vector<4x8xf32>
    %287 = vector.shape_cast %286 : vector<4x8xf32> to vector<4x8x1xf32>
    %288 = tpu.reciprocal %287 {approx = true} : vector<4x8x1xf32> -> vector<4x8x1xf32>
    %289 = vector.broadcast %288 : vector<4x8x1xf32> to vector<4x8x8xf32>
    %290 = arith.mulf %285, %289 : vector<4x8x8xf32>
    "tpu.trace_start"() <{level = 10 : i32, message = "hqk,hkd->hqd"}> : () -> ()
    %cst_86 = arith.constant dense<0.000000e+00> : vector<4x8x32xf32>
    %291 = tpu.matmul %290, %279, %cst_86 {dimension_numbers = #tpu.dot_dimension_numbers<[2], [1], [1], [2], [0, 0, 0, 1, 1, 2], [0], [0]>} : vector<4x8x8xf32>, vector<4x8x32xf32>, vector<4x8x32xf32> -> vector<4x8x32xf32>
    "tpu.trace_stop"() : () -> ()
    %292 = vector.extract_strided_slice %291 {offsets = [0, 0, 0], sizes = [1, 8, 32], strides = [1, 1, 1]} : vector<4x8x32xf32> to vector<1x8x32xf32>
    %293 = vector.shape_cast %292 : vector<1x8x32xf32> to vector<8x32xf32>
    %294 = vector.extract_strided_slice %291 {offsets = [1, 0, 0], sizes = [1, 8, 32], strides = [1, 1, 1]} : vector<4x8x32xf32> to vector<1x8x32xf32>
    %295 = vector.shape_cast %294 : vector<1x8x32xf32> to vector<8x32xf32>
    %296 = vector.extract_strided_slice %291 {offsets = [2, 0, 0], sizes = [1, 8, 32], strides = [1, 1, 1]} : vector<4x8x32xf32> to vector<1x8x32xf32>
    %297 = vector.shape_cast %296 : vector<1x8x32xf32> to vector<8x32xf32>
    %298 = vector.extract_strided_slice %291 {offsets = [3, 0, 0], sizes = [1, 8, 32], strides = [1, 1, 1]} : vector<4x8x32xf32> to vector<1x8x32xf32>
    %299 = vector.shape_cast %298 : vector<1x8x32xf32> to vector<8x32xf32>
    %300 = tpu.concatenate %293, %295, %297, %299 in 1 : vector<8x32xf32>, vector<8x32xf32>, vector<8x32xf32>, vector<8x32xf32> -> vector<8x128xf32>
    %301 = arith.truncf %300 : vector<8x128xf32> to vector<8x128xbf16>
    %c1_87 = arith.constant 1 : index
    %c0_88 = arith.constant 0 : index
    %c384_89 = arith.constant 384 : index
    %302 = vector.load %arg3[%c1_87, %c0_88, %c384_89] : memref<2x128x1280xbf16, #tpu.memory_space<vmem>>, vector<1x128x128xbf16>
    %303 = vector.shape_cast %302 : vector<1x128x128xbf16> to vector<128x128xbf16>
    %c1_90 = arith.constant 1 : index
    %c0_91 = arith.constant 0 : index
    %c384_92 = arith.constant 384 : index
    %304 = vector.load %arg5[%c1_90, %c0_91, %c384_92] : memref<2x1x1408xf32, #tpu.memory_space<vmem>>, vector<1x1x128xf32>
    %305 = vector.shape_cast %304 : vector<1x1x128xf32> to vector<1x128xf32>
    %cst_93 = arith.constant dense<0.000000e+00> : vector<8x128xf32>
    %306 = tpu.matmul %301, %303, %cst_93 {dimension_numbers = #tpu.dot_dimension_numbers<[1], [0], [0], [1], [0, 0, 1, 1], [], []>} : vector<8x128xbf16>, vector<128x128xbf16>, vector<8x128xf32> -> vector<8x128xf32>
    %307 = vector.broadcast %305 : vector<1x128xf32> to vector<8x128xf32>
    %308 = arith.addf %306, %307 : vector<8x128xf32>
    %309 = arith.addf %239, %308 : vector<8x128xf32>
    %310 = vector.extract_strided_slice %241 {offsets = [0, 0], sizes = [1, 128], strides = [1, 1]} : vector<6x128xf32> to vector<1x128xf32>
    %311 = vector.extract_strided_slice %241 {offsets = [1, 0], sizes = [1, 128], strides = [1, 1]} : vector<6x128xf32> to vector<1x128xf32>
    %cst_94 = arith.constant dense<0.000000e+00> : vector<8xf32>
    %312 = vector.multi_reduction <add>, %309, %cst_94 [1] : vector<8x128xf32> to vector<8xf32>
    %313 = vector.shape_cast %312 : vector<8xf32> to vector<8x1xf32>
    %cst_95 = arith.constant 1.280000e+02 : f32
    %314 = vector.broadcast %cst_95 : f32 to vector<8x1xf32>
    %315 = arith.divf %313, %314 : vector<8x1xf32>
    %316 = vector.broadcast %315 : vector<8x1xf32> to vector<8x128xf32>
    %317 = arith.subf %309, %316 : vector<8x128xf32>
    %318 = arith.mulf %317, %317 : vector<8x128xf32>
    %cst_96 = arith.constant dense<0.000000e+00> : vector<8xf32>
    %319 = vector.multi_reduction <add>, %318, %cst_96 [1] : vector<8x128xf32> to vector<8xf32>
    %320 = vector.shape_cast %319 : vector<8xf32> to vector<8x1xf32>
    %cst_97 = arith.constant 1.280000e+02 : f32
    %321 = vector.broadcast %cst_97 : f32 to vector<8x1xf32>
    %322 = arith.divf %320, %321 : vector<8x1xf32>
    %323 = vector.broadcast %315 : vector<8x1xf32> to vector<8x128xf32>
    %324 = arith.subf %309, %323 : vector<8x128xf32>
    %cst_98 = arith.constant 9.99999974E-6 : f32
    %325 = vector.broadcast %cst_98 : f32 to vector<8x1xf32>
    %326 = arith.addf %322, %325 : vector<8x1xf32>
    %327 = math.rsqrt %326 : vector<8x1xf32>
    %328 = vector.broadcast %327 : vector<8x1xf32> to vector<8x128xf32>
    %329 = arith.mulf %324, %328 : vector<8x128xf32>
    %330 = vector.broadcast %310 : vector<1x128xf32> to vector<8x128xf32>
    %331 = arith.mulf %329, %330 : vector<8x128xf32>
    %332 = vector.broadcast %311 : vector<1x128xf32> to vector<8x128xf32>
    %333 = arith.addf %331, %332 : vector<8x128xf32>
    %334 = arith.truncf %333 : vector<8x128xf32> to vector<8x128xbf16>
    %c1_99 = arith.constant 1 : index
    %c0_100 = arith.constant 0 : index
    %c512_101 = arith.constant 512 : index
    %335 = vector.load %arg3[%c1_99, %c0_100, %c512_101] : memref<2x128x1280xbf16, #tpu.memory_space<vmem>>, vector<1x128x128xbf16>
    %336 = vector.shape_cast %335 : vector<1x128x128xbf16> to vector<128x128xbf16>
    %c1_102 = arith.constant 1 : index
    %c0_103 = arith.constant 0 : index
    %c512_104 = arith.constant 512 : index
    %337 = vector.load %arg5[%c1_102, %c0_103, %c512_104] : memref<2x1x1408xf32, #tpu.memory_space<vmem>>, vector<1x1x128xf32>
    %338 = vector.shape_cast %337 : vector<1x1x128xf32> to vector<1x128xf32>
    %cst_105 = arith.constant dense<0.000000e+00> : vector<8x128xf32>
    %339 = tpu.matmul %334, %336, %cst_105 {dimension_numbers = #tpu.dot_dimension_numbers<[1], [0], [0], [1], [0, 0, 1, 1], [], []>} : vector<8x128xbf16>, vector<128x128xbf16>, vector<8x128xf32> -> vector<8x128xf32>
    %340 = vector.broadcast %338 : vector<1x128xf32> to vector<8x128xf32>
    %341 = arith.addf %339, %340 : vector<8x128xf32>
    %c1_106 = arith.constant 1 : index
    %c0_107 = arith.constant 0 : index
    %c640_108 = arith.constant 640 : index
    %342 = vector.load %arg3[%c1_106, %c0_107, %c640_108] : memref<2x128x1280xbf16, #tpu.memory_space<vmem>>, vector<1x128x256xbf16>
    %343 = vector.shape_cast %342 : vector<1x128x256xbf16> to vector<128x256xbf16>
    %c1_109 = arith.constant 1 : index
    %c0_110 = arith.constant 0 : index
    %c640_111 = arith.constant 640 : index
    %344 = vector.load %arg5[%c1_109, %c0_110, %c640_111] : memref<2x1x1408xf32, #tpu.memory_space<vmem>>, vector<1x1x256xf32>
    %345 = vector.shape_cast %344 : vector<1x1x256xf32> to vector<1x256xf32>
    %cst_112 = arith.constant dense<0.000000e+00> : vector<8x256xf32>
    %346 = tpu.matmul %4, %343, %cst_112 {dimension_numbers = #tpu.dot_dimension_numbers<[1], [0], [0], [1], [0, 0, 1, 1], [], []>} : vector<8x128xbf16>, vector<128x256xbf16>, vector<8x256xf32> -> vector<8x256xf32>
    %347 = vector.broadcast %345 : vector<1x256xf32> to vector<8x256xf32>
    %348 = arith.addf %346, %347 : vector<8x256xf32>
    %349 = vector.extract_strided_slice %348 {offsets = [0, 0], sizes = [8, 128], strides = [1, 1]} : vector<8x256xf32> to vector<8x128xf32>
    %350 = vector.extract_strided_slice %348 {offsets = [0, 128], sizes = [8, 128], strides = [1, 1]} : vector<8x256xf32> to vector<8x128xf32>
    %351 = vector.extract_strided_slice %341 {offsets = [0, 0], sizes = [8, 32], strides = [1, 1]} : vector<8x128xf32> to vector<8x32xf32>
    %352 = vector.extract_strided_slice %341 {offsets = [0, 32], sizes = [8, 32], strides = [1, 1]} : vector<8x128xf32> to vector<8x32xf32>
    %353 = vector.extract_strided_slice %341 {offsets = [0, 64], sizes = [8, 32], strides = [1, 1]} : vector<8x128xf32> to vector<8x32xf32>
    %354 = vector.extract_strided_slice %341 {offsets = [0, 96], sizes = [8, 32], strides = [1, 1]} : vector<8x128xf32> to vector<8x32xf32>
    %355 = vector.shape_cast %351 : vector<8x32xf32> to vector<1x8x32xf32>
    %356 = vector.shape_cast %352 : vector<8x32xf32> to vector<1x8x32xf32>
    %357 = vector.shape_cast %353 : vector<8x32xf32> to vector<1x8x32xf32>
    %358 = vector.shape_cast %354 : vector<8x32xf32> to vector<1x8x32xf32>
    %359 = tpu.concatenate %355, %356, %357, %358 in 0 : vector<1x8x32xf32>, vector<1x8x32xf32>, vector<1x8x32xf32>, vector<1x8x32xf32> -> vector<4x8x32xf32>
    %360 = vector.extract_strided_slice %349 {offsets = [0, 0], sizes = [8, 32], strides = [1, 1]} : vector<8x128xf32> to vector<8x32xf32>
    %361 = vector.extract_strided_slice %349 {offsets = [0, 32], sizes = [8, 32], strides = [1, 1]} : vector<8x128xf32> to vector<8x32xf32>
    %362 = vector.extract_strided_slice %349 {offsets = [0, 64], sizes = [8, 32], strides = [1, 1]} : vector<8x128xf32> to vector<8x32xf32>
    %363 = vector.extract_strided_slice %349 {offsets = [0, 96], sizes = [8, 32], strides = [1, 1]} : vector<8x128xf32> to vector<8x32xf32>
    %364 = vector.shape_cast %360 : vector<8x32xf32> to vector<1x8x32xf32>
    %365 = vector.shape_cast %361 : vector<8x32xf32> to vector<1x8x32xf32>
    %366 = vector.shape_cast %362 : vector<8x32xf32> to vector<1x8x32xf32>
    %367 = vector.shape_cast %363 : vector<8x32xf32> to vector<1x8x32xf32>
    %368 = tpu.concatenate %364, %365, %366, %367 in 0 : vector<1x8x32xf32>, vector<1x8x32xf32>, vector<1x8x32xf32>, vector<1x8x32xf32> -> vector<4x8x32xf32>
    %369 = vector.extract_strided_slice %350 {offsets = [0, 0], sizes = [8, 32], strides = [1, 1]} : vector<8x128xf32> to vector<8x32xf32>
    %370 = vector.extract_strided_slice %350 {offsets = [0, 32], sizes = [8, 32], strides = [1, 1]} : vector<8x128xf32> to vector<8x32xf32>
    %371 = vector.extract_strided_slice %350 {offsets = [0, 64], sizes = [8, 32], strides = [1, 1]} : vector<8x128xf32> to vector<8x32xf32>
    %372 = vector.extract_strided_slice %350 {offsets = [0, 96], sizes = [8, 32], strides = [1, 1]} : vector<8x128xf32> to vector<8x32xf32>
    %373 = vector.shape_cast %369 : vector<8x32xf32> to vector<1x8x32xf32>
    %374 = vector.shape_cast %370 : vector<8x32xf32> to vector<1x8x32xf32>
    %375 = vector.shape_cast %371 : vector<8x32xf32> to vector<1x8x32xf32>
    %376 = vector.shape_cast %372 : vector<8x32xf32> to vector<1x8x32xf32>
    %377 = tpu.concatenate %373, %374, %375, %376 in 0 : vector<1x8x32xf32>, vector<1x8x32xf32>, vector<1x8x32xf32>, vector<1x8x32xf32> -> vector<4x8x32xf32>
    "tpu.trace_start"() <{level = 10 : i32, message = "hqd,hkd->hqk"}> : () -> ()
    %cst_113 = arith.constant dense<0.000000e+00> : vector<4x8x8xf32>
    %378 = tpu.matmul %359, %368, %cst_113 {dimension_numbers = #tpu.dot_dimension_numbers<[2], [2], [1], [1], [0, 0, 0, 1, 1, 1], [0], [0]>} : vector<4x8x32xf32>, vector<4x8x32xf32>, vector<4x8x8xf32> -> vector<4x8x8xf32>
    "tpu.trace_stop"() : () -> ()
    %cst_114 = arith.constant dense<0xFF800000> : vector<4x8xf32>
    %379 = vector.multi_reduction <maximumf>, %378, %cst_114 [2] : vector<4x8x8xf32> to vector<4x8xf32>
    %380 = vector.shape_cast %379 : vector<4x8xf32> to vector<4x8x1xf32>
    %381 = vector.broadcast %380 : vector<4x8x1xf32> to vector<4x8x8xf32>
    %382 = arith.subf %378, %381 : vector<4x8x8xf32>
    %383 = math.exp %382 : vector<4x8x8xf32>
    %cst_115 = arith.constant dense<0.000000e+00> : vector<4x8xf32>
    %384 = vector.multi_reduction <add>, %383, %cst_115 [2] : vector<4x8x8xf32> to vector<4x8xf32>
    %385 = vector.shape_cast %384 : vector<4x8xf32> to vector<4x8x1xf32>
    %386 = tpu.reciprocal %385 {approx = true} : vector<4x8x1xf32> -> vector<4x8x1xf32>
    %387 = vector.broadcast %386 : vector<4x8x1xf32> to vector<4x8x8xf32>
    %388 = arith.mulf %383, %387 : vector<4x8x8xf32>
    "tpu.trace_start"() <{level = 10 : i32, message = "hqk,hkd->hqd"}> : () -> ()
    %cst_116 = arith.constant dense<0.000000e+00> : vector<4x8x32xf32>
    %389 = tpu.matmul %388, %377, %cst_116 {dimension_numbers = #tpu.dot_dimension_numbers<[2], [1], [1], [2], [0, 0, 0, 1, 1, 2], [0], [0]>} : vector<4x8x8xf32>, vector<4x8x32xf32>, vector<4x8x32xf32> -> vector<4x8x32xf32>
    "tpu.trace_stop"() : () -> ()
    %390 = vector.extract_strided_slice %389 {offsets = [0, 0, 0], sizes = [1, 8, 32], strides = [1, 1, 1]} : vector<4x8x32xf32> to vector<1x8x32xf32>
    %391 = vector.shape_cast %390 : vector<1x8x32xf32> to vector<8x32xf32>
    %392 = vector.extract_strided_slice %389 {offsets = [1, 0, 0], sizes = [1, 8, 32], strides = [1, 1, 1]} : vector<4x8x32xf32> to vector<1x8x32xf32>
    %393 = vector.shape_cast %392 : vector<1x8x32xf32> to vector<8x32xf32>
    %394 = vector.extract_strided_slice %389 {offsets = [2, 0, 0], sizes = [1, 8, 32], strides = [1, 1, 1]} : vector<4x8x32xf32> to vector<1x8x32xf32>
    %395 = vector.shape_cast %394 : vector<1x8x32xf32> to vector<8x32xf32>
    %396 = vector.extract_strided_slice %389 {offsets = [3, 0, 0], sizes = [1, 8, 32], strides = [1, 1, 1]} : vector<4x8x32xf32> to vector<1x8x32xf32>
    %397 = vector.shape_cast %396 : vector<1x8x32xf32> to vector<8x32xf32>
    %398 = tpu.concatenate %391, %393, %395, %397 in 1 : vector<8x32xf32>, vector<8x32xf32>, vector<8x32xf32>, vector<8x32xf32> -> vector<8x128xf32>
    %399 = arith.truncf %398 : vector<8x128xf32> to vector<8x128xbf16>
    %c1_117 = arith.constant 1 : index
    %c0_118 = arith.constant 0 : index
    %c896_119 = arith.constant 896 : index
    %400 = vector.load %arg3[%c1_117, %c0_118, %c896_119] : memref<2x128x1280xbf16, #tpu.memory_space<vmem>>, vector<1x128x128xbf16>
    %401 = vector.shape_cast %400 : vector<1x128x128xbf16> to vector<128x128xbf16>
    %c1_120 = arith.constant 1 : index
    %c0_121 = arith.constant 0 : index
    %c896_122 = arith.constant 896 : index
    %402 = vector.load %arg5[%c1_120, %c0_121, %c896_122] : memref<2x1x1408xf32, #tpu.memory_space<vmem>>, vector<1x1x128xf32>
    %403 = vector.shape_cast %402 : vector<1x1x128xf32> to vector<1x128xf32>
    %cst_123 = arith.constant dense<0.000000e+00> : vector<8x128xf32>
    %404 = tpu.matmul %399, %401, %cst_123 {dimension_numbers = #tpu.dot_dimension_numbers<[1], [0], [0], [1], [0, 0, 1, 1], [], []>} : vector<8x128xbf16>, vector<128x128xbf16>, vector<8x128xf32> -> vector<8x128xf32>
    %405 = vector.broadcast %403 : vector<1x128xf32> to vector<8x128xf32>
    %406 = arith.addf %404, %405 : vector<8x128xf32>
    %407 = arith.addf %333, %406 : vector<8x128xf32>
    %408 = vector.extract_strided_slice %241 {offsets = [2, 0], sizes = [1, 128], strides = [1, 1]} : vector<6x128xf32> to vector<1x128xf32>
    %409 = vector.extract_strided_slice %241 {offsets = [3, 0], sizes = [1, 128], strides = [1, 1]} : vector<6x128xf32> to vector<1x128xf32>
    %cst_124 = arith.constant dense<0.000000e+00> : vector<8xf32>
    %410 = vector.multi_reduction <add>, %407, %cst_124 [1] : vector<8x128xf32> to vector<8xf32>
    %411 = vector.shape_cast %410 : vector<8xf32> to vector<8x1xf32>
    %cst_125 = arith.constant 1.280000e+02 : f32
    %412 = vector.broadcast %cst_125 : f32 to vector<8x1xf32>
    %413 = arith.divf %411, %412 : vector<8x1xf32>
    %414 = vector.broadcast %413 : vector<8x1xf32> to vector<8x128xf32>
    %415 = arith.subf %407, %414 : vector<8x128xf32>
    %416 = arith.mulf %415, %415 : vector<8x128xf32>
    %cst_126 = arith.constant dense<0.000000e+00> : vector<8xf32>
    %417 = vector.multi_reduction <add>, %416, %cst_126 [1] : vector<8x128xf32> to vector<8xf32>
    %418 = vector.shape_cast %417 : vector<8xf32> to vector<8x1xf32>
    %cst_127 = arith.constant 1.280000e+02 : f32
    %419 = vector.broadcast %cst_127 : f32 to vector<8x1xf32>
    %420 = arith.divf %418, %419 : vector<8x1xf32>
    %421 = vector.broadcast %413 : vector<8x1xf32> to vector<8x128xf32>
    %422 = arith.subf %407, %421 : vector<8x128xf32>
    %cst_128 = arith.constant 9.99999974E-6 : f32
    %423 = vector.broadcast %cst_128 : f32 to vector<8x1xf32>
    %424 = arith.addf %420, %423 : vector<8x1xf32>
    %425 = math.rsqrt %424 : vector<8x1xf32>
    %426 = vector.broadcast %425 : vector<8x1xf32> to vector<8x128xf32>
    %427 = arith.mulf %422, %426 : vector<8x128xf32>
    %428 = vector.broadcast %408 : vector<1x128xf32> to vector<8x128xf32>
    %429 = arith.mulf %427, %428 : vector<8x128xf32>
    %430 = vector.broadcast %409 : vector<1x128xf32> to vector<8x128xf32>
    %431 = arith.addf %429, %430 : vector<8x128xf32>
    %432 = arith.truncf %431 : vector<8x128xf32> to vector<8x128xbf16>
    %c1_129 = arith.constant 1 : index
    %c0_130 = arith.constant 0 : index
    %c1024_131 = arith.constant 1024 : index
    %433 = vector.load %arg3[%c1_129, %c0_130, %c1024_131] : memref<2x128x1280xbf16, #tpu.memory_space<vmem>>, vector<1x128x256xbf16>
    %434 = vector.shape_cast %433 : vector<1x128x256xbf16> to vector<128x256xbf16>
    %c1_132 = arith.constant 1 : index
    %c0_133 = arith.constant 0 : index
    %c1024_134 = arith.constant 1024 : index
    %435 = vector.load %arg5[%c1_132, %c0_133, %c1024_134] : memref<2x1x1408xf32, #tpu.memory_space<vmem>>, vector<1x1x256xf32>
    %436 = vector.shape_cast %435 : vector<1x1x256xf32> to vector<1x256xf32>
    %cst_135 = arith.constant dense<0.000000e+00> : vector<8x256xf32>
    %437 = tpu.matmul %432, %434, %cst_135 {dimension_numbers = #tpu.dot_dimension_numbers<[1], [0], [0], [1], [0, 0, 1, 1], [], []>} : vector<8x128xbf16>, vector<128x256xbf16>, vector<8x256xf32> -> vector<8x256xf32>
    %438 = vector.broadcast %436 : vector<1x256xf32> to vector<8x256xf32>
    %439 = arith.addf %437, %438 : vector<8x256xf32>
    %cst_136 = arith.constant 0.000000e+00 : f32
    %440 = vector.broadcast %cst_136 : f32 to vector<8x256xf32>
    %441 = arith.maximumf %439, %440 : vector<8x256xf32>
    %442 = arith.truncf %441 : vector<8x256xf32> to vector<8x256xbf16>
    %c1_137 = arith.constant 1 : index
    %c0_138 = arith.constant 0 : index
    %c0_139 = arith.constant 0 : index
    %443 = vector.load %arg4[%c1_137, %c0_138, %c0_139] : memref<2x256x128xbf16, #tpu.memory_space<vmem>>, vector<1x256x128xbf16>
    %444 = vector.shape_cast %443 : vector<1x256x128xbf16> to vector<256x128xbf16>
    %c1_140 = arith.constant 1 : index
    %c0_141 = arith.constant 0 : index
    %c1280_142 = arith.constant 1280 : index
    %445 = vector.load %arg5[%c1_140, %c0_141, %c1280_142] : memref<2x1x1408xf32, #tpu.memory_space<vmem>>, vector<1x1x128xf32>
    %446 = vector.shape_cast %445 : vector<1x1x128xf32> to vector<1x128xf32>
    %cst_143 = arith.constant dense<0.000000e+00> : vector<8x128xf32>
    %447 = tpu.matmul %442, %444, %cst_143 {dimension_numbers = #tpu.dot_dimension_numbers<[1], [0], [0], [1], [0, 0, 1, 1], [], []>} : vector<8x256xbf16>, vector<256x128xbf16>, vector<8x128xf32> -> vector<8x128xf32>
    %448 = vector.broadcast %446 : vector<1x128xf32> to vector<8x128xf32>
    %449 = arith.addf %447, %448 : vector<8x128xf32>
    %450 = arith.addf %431, %449 : vector<8x128xf32>
    %451 = vector.extract_strided_slice %241 {offsets = [4, 0], sizes = [1, 128], strides = [1, 1]} : vector<6x128xf32> to vector<1x128xf32>
    %452 = vector.extract_strided_slice %241 {offsets = [5, 0], sizes = [1, 128], strides = [1, 1]} : vector<6x128xf32> to vector<1x128xf32>
    %cst_144 = arith.constant dense<0.000000e+00> : vector<8xf32>
    %453 = vector.multi_reduction <add>, %450, %cst_144 [1] : vector<8x128xf32> to vector<8xf32>
    %454 = vector.shape_cast %453 : vector<8xf32> to vector<8x1xf32>
    %cst_145 = arith.constant 1.280000e+02 : f32
    %455 = vector.broadcast %cst_145 : f32 to vector<8x1xf32>
    %456 = arith.divf %454, %455 : vector<8x1xf32>
    %457 = vector.broadcast %456 : vector<8x1xf32> to vector<8x128xf32>
    %458 = arith.subf %450, %457 : vector<8x128xf32>
    %459 = arith.mulf %458, %458 : vector<8x128xf32>
    %cst_146 = arith.constant dense<0.000000e+00> : vector<8xf32>
    %460 = vector.multi_reduction <add>, %459, %cst_146 [1] : vector<8x128xf32> to vector<8xf32>
    %461 = vector.shape_cast %460 : vector<8xf32> to vector<8x1xf32>
    %cst_147 = arith.constant 1.280000e+02 : f32
    %462 = vector.broadcast %cst_147 : f32 to vector<8x1xf32>
    %463 = arith.divf %461, %462 : vector<8x1xf32>
    %464 = vector.broadcast %456 : vector<8x1xf32> to vector<8x128xf32>
    %465 = arith.subf %450, %464 : vector<8x128xf32>
    %cst_148 = arith.constant 9.99999974E-6 : f32
    %466 = vector.broadcast %cst_148 : f32 to vector<8x1xf32>
    %467 = arith.addf %463, %466 : vector<8x1xf32>
    %468 = math.rsqrt %467 : vector<8x1xf32>
    %469 = vector.broadcast %468 : vector<8x1xf32> to vector<8x128xf32>
    %470 = arith.mulf %465, %469 : vector<8x128xf32>
    %471 = vector.broadcast %451 : vector<1x128xf32> to vector<8x128xf32>
    %472 = arith.mulf %470, %471 : vector<8x128xf32>
    %473 = vector.broadcast %452 : vector<1x128xf32> to vector<8x128xf32>
    %474 = arith.addf %472, %473 : vector<8x128xf32>
    %475 = arith.truncf %474 : vector<8x128xf32> to vector<8x128xbf16>
    %c0_149 = arith.constant 0 : index
    %c0_150 = arith.constant 0 : index
    %476 = vector.load %arg7[%c0_149, %c0_150] : memref<128x256xbf16, #tpu.memory_space<vmem>>, vector<128x256xbf16>
    %cst_151 = arith.constant dense<0.000000e+00> : vector<8x256xf32>
    %477 = tpu.matmul %475, %476, %cst_151 {dimension_numbers = #tpu.dot_dimension_numbers<[1], [0], [0], [1], [0, 0, 1, 1], [], []>} : vector<8x128xbf16>, vector<128x256xbf16>, vector<8x256xf32> -> vector<8x256xf32>
    %c0_152 = arith.constant 0 : index
    %c0_153 = arith.constant 0 : index
    %478 = vector.load %arg8[%c0_152, %c0_153] : memref<1x256xf32, #tpu.memory_space<vmem>>, vector<1x256xf32>
    %479 = vector.broadcast %478 : vector<1x256xf32> to vector<8x256xf32>
    %480 = arith.addf %477, %479 : vector<8x256xf32>
    %c0_154 = arith.constant 0 : index
    %c0_155 = arith.constant 0 : index
    %c0_156 = arith.constant 0 : index
    %481 = vector.load %arg9[%c0_154, %c0_155, %c0_156] : memref<1x8x256xf32, #tpu.memory_space<vmem>>, vector<1x8x256xf32>
    %482 = vector.shape_cast %481 : vector<1x8x256xf32> to vector<8x256xf32>
    %483 = vector.shape_cast %480 : vector<8x256xf32> to vector<1x8x256xf32>
    tpu.vector_store %arg9[%c0_154, %c0_155, %c0_156], %483 {strides = array<i32>} : memref<1x8x256xf32, #tpu.memory_space<vmem>>, vector<1x8x256xf32>,
    return
  }
  func.func @transform_0(%arg0: i32) -> (i32, i32, i32) {
    %c0_i32 = arith.constant 0 : i32
    %c0_i32_0 = arith.constant 0 : i32
    %c0_i32_1 = arith.constant 0 : i32
    return %arg0, %c0_i32, %c0_i32_0 : i32, i32, i32
  }
  func.func @transform_1(%arg0: i32) -> (i32, i32, i32) {
    %c0_i32 = arith.constant 0 : i32
    %c0_i32_0 = arith.constant 0 : i32
    %c0_i32_1 = arith.constant 0 : i32
    return %arg0, %c0_i32, %c0_i32_0 : i32, i32, i32
  }
  func.func @transform_2(%arg0: i32) -> (i32, i32, i32) {
    %c0_i32 = arith.constant 0 : i32
    %c0_i32_0 = arith.constant 0 : i32
    %c0_i32_1 = arith.constant 0 : i32
    %c0_i32_2 = arith.constant 0 : i32
    return %c0_i32, %c0_i32_0, %c0_i32_1 : i32, i32, i32
  }
  func.func @transform_3(%arg0: i32) -> (i32, i32, i32) {
    %c0_i32 = arith.constant 0 : i32
    %c0_i32_0 = arith.constant 0 : i32
    %c0_i32_1 = arith.constant 0 : i32
    %c0_i32_2 = arith.constant 0 : i32
    return %c0_i32, %c0_i32_0, %c0_i32_1 : i32, i32, i32
  }
  func.func @transform_4(%arg0: i32) -> (i32, i32, i32) {
    %c0_i32 = arith.constant 0 : i32
    %c0_i32_0 = arith.constant 0 : i32
    %c0_i32_1 = arith.constant 0 : i32
    %c0_i32_2 = arith.constant 0 : i32
    return %c0_i32, %c0_i32_0, %c0_i32_1 : i32, i32, i32
  }
  func.func @transform_5(%arg0: i32) -> (i32, i32, i32) {
    %c0_i32 = arith.constant 0 : i32
    %c0_i32_0 = arith.constant 0 : i32
    %c0_i32_1 = arith.constant 0 : i32
    %c0_i32_2 = arith.constant 0 : i32
    return %c0_i32, %c0_i32_0, %c0_i32_1 : i32, i32, i32
  }
  func.func @transform_6(%arg0: i32) -> (i32, i32) {
    %c0_i32 = arith.constant 0 : i32
    %c0_i32_0 = arith.constant 0 : i32
    %c0_i32_1 = arith.constant 0 : i32
    return %c0_i32, %c0_i32_0 : i32, i32
  }
  func.func @transform_7(%arg0: i32) -> (i32, i32) {
    %c0_i32 = arith.constant 0 : i32
    %c0_i32_0 = arith.constant 0 : i32
    %c0_i32_1 = arith.constant 0 : i32
    return %c0_i32, %c0_i32_0 : i32, i32
  }
  func.func @transform_8(%arg0: i32) -> (i32, i32, i32) {
    %c0_i32 = arith.constant 0 : i32
    %c0_i32_0 = arith.constant 0 : i32
    %c0_i32_1 = arith.constant 0 : i32
    return %arg0, %c0_i32, %c0_i32_0 : i32, i32, i32
  }
}

</mosaic_0001>

<llo_original>
// kernel: transformer_decoder_forward.1
$region0: #{transformer_decoder_forward.1}
  #allocation0 [shape = 'u32[]', space=smem, size = 0x4, offset = 0x4, fixed_abs, tag = 'smem constant byte address 0x4 - core index']
  #allocation1 [shape = 'u32[144,128]{1,0:T(1,128)}', space=vmem, size = 0x12000, scoped, tag = 'internal scratch']
  %s0 = inlined_call_operand.vmem [shape: f32[2,8,128], index: 0, kind: input, shape index: {}]
  %s1 = inlined_call_operand.hbm [shape: f32[2,8,128], index: 1, kind: input, shape index: {}]
  %s2 = inlined_call_operand.hbm [shape: bf16[2,128,1280], index: 2, kind: input, shape index: {}]
  %s3 = inlined_call_operand.vmem [shape: bf16[2,256,128], index: 3, kind: input, shape index: {}]
  %s4 = inlined_call_operand.hbm [shape: f32[2,1,1408], index: 4, kind: input, shape index: {}]
  %s5 = inlined_call_operand.vmem [shape: f32[2,6,128], index: 5, kind: input, shape index: {}]
  %s6 = inlined_call_operand.hbm [shape: bf16[128,256], index: 6, kind: input, shape index: {}]
  %s7 = inlined_call_operand.vmem [shape: f32[1,256], index: 7, kind: input, shape index: {}]
  %s8 = inlined_call_operand.hbm [shape: f32[2,8,256], index: 8, kind: output, shape index: {}]
  %s9 = sld [smem:[#allocation0]]
  $region81: #{transformer_decoder_forward.1} parent=0
    _
  %s11 = ssub.s32 1, %s9
  %s12 = scalar_select 0, %s11, %s9
  $region1: #{transformer_decoder_forward.1} parent=0
    #allocation2 [shape = 'u8[8192]{0}', space=vmem, size = 0x2000, scoped, tag = 'input window, operand 1']
    #allocation3 [shape = 's32[2]{0}', space=sflag, size = 0x8, scoped, tag = 'scoped memory for transformer_decoder_forward.1']
    #allocation4 [shape = 's32[2]{0}', space=sflag, size = 0x8, scoped, tag = 'scoped memory for transformer_decoder_forward.1']
    #allocation5 [shape = 'u8[655360]{0}', space=vmem, size = 0xa0000, scoped, tag = 'input window, operand 2, single buffered']
    #allocation6 [shape = 's32[1]{0}', space=sflag, size = 0x4, scoped, tag = 'scoped memory for transformer_decoder_forward.1']
    #allocation7 [shape = 'u8[11264]{0}', space=vmem, size = 0x2c00, scoped, tag = 'input window, operand 4, single buffered']
    #allocation8 [shape = 'u8[65536]{0}', space=vmem, size = 0x10000, scoped, tag = 'input window, operand 6, single buffered']
    #allocation9 [shape = 's32[1]{0}', space=sflag, size = 0x4, scoped, tag = 'scoped memory for transformer_decoder_forward.1']
    #allocation10 [shape = 'u8[16384]{0}', space=vmem, size = 0x4000, scoped, tag = 'output window, operand 0']
    %13 = vsyncpa [#allocation3], 0
    %s14 = scalar_lea.sflag [#allocation3], 1
    %15 = vsyncpa %s14, 0
    %16 = vsyncpa [#allocation6], 0
    %17 = vsyncpa [#allocation9], 0
    %18 = vsyncpa [#allocation4], 0
    %s19 = scalar_lea.sflag [#allocation4], 1
    %20 = vsyncpa %s19, 0
    loop: start=0, step=1, limit=4
    $region2: #{transformer_decoder_forward.1} parent=1 // loop_pre_header
      _
    $region3: #{transformer_decoder_forward.1} parent=1 // loop_header
      %s22 = sphi 0, %s26
      %p23 = scmp.ge.s32.totalorder %s22, 4
      %s32 = sphi 0, %s34
      %s35 = sphi 0, %s32
      %s36 = sphi 0, %s35
      %s52 = sphi 0, %s36
      %s58 = sphi 0, %s60
      %s61 = sphi 0, %s58
      %s62 = sphi 0, %s61
      %s78 = sphi 0, %s62
      %s82 = sphi 0, %s82
      %s84 = sphi 0, %s82
      %s85 = sphi 0, %s84
      %s99 = sphi 0, %s85
      %s103 = sphi 0, %s103
      %s105 = sphi 0, %s103
      %s106 = sphi 0, %s105
      %s120 = sphi 0, %s106
      %s124 = sphi 0, %s124
      %s126 = sphi 0, %s124
      %s127 = sphi 0, %s126
      %s141 = sphi 0, %s127
      %s145 = sphi 0, %s145
      %s147 = sphi 0, %s145
      %s148 = sphi 0, %s147
      %s162 = sphi 0, %s148
      %s166 = sphi 0, %s166
      %s168 = sphi 0, %s166
      %s169 = sphi 0, %s168
      %s183 = sphi 0, %s169
      %s187 = sphi 0, %s187
      %s189 = sphi 0, %s187
      %s190 = sphi 0, %s189
      %s204 = sphi 0, %s190
      %s210 = sphi 0, %s212
      %s213 = sphi 0, %s210
      %s214 = sphi 0, %s213
      %s230 = sphi 0, %s214
    $region4: #{transformer_decoder_forward.1} parent=1 // loop_header_branch
      %25 = sbr.rel (%p23) target = $region8
    $region5: #{transformer_decoder_forward.1} parent=1 // loop_body
      %s27 = ssub.s32 %s22, 1
      %s28 = ssub.s32 %s22, 2
      %s29 = sadd.s32 %s22, 1
      %s30 = ssub.s32 %s22, %s29
      %p31 = scmp.eq.s32.totalorder %s30, 0
      %s33 = sadd.s32 %s32, 1
      %s34 = scalar_select %p31, %s32, %s33
      %p37 = pneg %p31
      %p38 = scmp.eq.s32.totalorder %s22, 1
      %p39 = por %p37, %p38
      %p40 = scmp.ne.s32.totalorder %s32, %s35
      %p41 = scmp.eq.s32.totalorder %s22, 0
      %p42 = por %p40, %p41
      %p43 = scmp.ne.s32.totalorder %s32, %s35
      %p44 = scmp.eq.s32.totalorder %s27, 1
      %p45 = por %p43, %p44
      %p46 = scmp.ne.s32.totalorder %s35, %s36
      %p47 = scmp.eq.s32.totalorder %s27, 0
      %p48 = por %p46, %p47
      %p49 = scmp.ne.s32.totalorder %s35, %s36
      %p50 = scmp.eq.s32.totalorder %s28, 1
      %p51 = por %p49, %p50
      %p53 = scmp.ne.s32.totalorder %s36, %s52
      %p54 = scmp.eq.s32.totalorder %s28, 0
      %p55 = por %p53, %p54
      %s56 = ssub.s32 %s22, %s29
      %p57 = scmp.eq.s32.totalorder %s56, 0
      %s59 = sadd.s32 %s58, 1
      %s60 = scalar_select %p57, %s58, %s59
      %p63 = pneg %p57
      %p64 = scmp.eq.s32.totalorder %s22, 1
      %p65 = por %p63, %p64
      %p66 = scmp.ne.s32.totalorder %s58, %s61
      %p67 = scmp.eq.s32.totalorder %s22, 0
      %p68 = por %p66, %p67
      %p69 = scmp.ne.s32.totalorder %s58, %s61
      %p70 = scmp.eq.s32.totalorder %s27, 1
      %p71 = por %p69, %p70
      %p72 = scmp.ne.s32.totalorder %s61, %s62
      %p73 = scmp.eq.s32.totalorder %s27, 0
      %p74 = por %p72, %p73
      %p75 = scmp.ne.s32.totalorder %s61, %s62
      %p76 = scmp.eq.s32.totalorder %s28, 1
      %p77 = por %p75, %p76
      %p79 = scmp.ne.s32.totalorder %s62, %s78
      %p80 = scmp.eq.s32.totalorder %s28, 0
      %p81 = por %p79, %p80
      %s83 = sadd.s32 %s82, 1
      %p86 = scmp.eq.s32.totalorder %s22, 1
      %p87 = scmp.ne.s32.totalorder %s82, %s84
      %p88 = scmp.eq.s32.totalorder %s22, 0
      %p89 = por %p87, %p88
      %p90 = scmp.ne.s32.totalorder %s82, %s84
      %p91 = scmp.eq.s32.totalorder %s27, 1
      %p92 = por %p90, %p91
      %p93 = scmp.ne.s32.totalorder %s84, %s85
      %p94 = scmp.eq.s32.totalorder %s27, 0
      %p95 = por %p93, %p94
      %p96 = scmp.ne.s32.totalorder %s84, %s85
      %p97 = scmp.eq.s32.totalorder %s28, 1
      %p98 = por %p96, %p97
      %p100 = scmp.ne.s32.totalorder %s85, %s99
      %p101 = scmp.eq.s32.totalorder %s28, 0
      %p102 = por %p100, %p101
      %s104 = sadd.s32 %s103, 1
      %p107 = scmp.eq.s32.totalorder %s22, 1
      %p108 = scmp.ne.s32.totalorder %s103, %s105
      %p109 = scmp.eq.s32.totalorder %s22, 0
      %p110 = por %p108, %p109
      %p111 = scmp.ne.s32.totalorder %s103, %s105
      %p112 = scmp.eq.s32.totalorder %s27, 1
      %p113 = por %p111, %p112
      %p114 = scmp.ne.s32.totalorder %s105, %s106
      %p115 = scmp.eq.s32.totalorder %s27, 0
      %p116 = por %p114, %p115
      %p117 = scmp.ne.s32.totalorder %s105, %s106
      %p118 = scmp.eq.s32.totalorder %s28, 1
      %p119 = por %p117, %p118
      %p121 = scmp.ne.s32.totalorder %s106, %s120
      %p122 = scmp.eq.s32.totalorder %s28, 0
      %p123 = por %p121, %p122
      %s125 = sadd.s32 %s124, 1
      %p128 = scmp.eq.s32.totalorder %s22, 1
      %p129 = scmp.ne.s32.totalorder %s124, %s126
      %p130 = scmp.eq.s32.totalorder %s22, 0
      %p131 = por %p129, %p130
      %p132 = scmp.ne.s32.totalorder %s124, %s126
      %p133 = scmp.eq.s32.totalorder %s27, 1
      %p134 = por %p132, %p133
      %p135 = scmp.ne.s32.totalorder %s126, %s127
      %p136 = scmp.eq.s32.totalorder %s27, 0
      %p137 = por %p135, %p136
      %p138 = scmp.ne.s32.totalorder %s126, %s127
      %p139 = scmp.eq.s32.totalorder %s28, 1
      %p140 = por %p138, %p139
      %p142 = scmp.ne.s32.totalorder %s127, %s141
      %p143 = scmp.eq.s32.totalorder %s28, 0
      %p144 = por %p142, %p143
      %s146 = sadd.s32 %s145, 1
      %p149 = scmp.eq.s32.totalorder %s22, 1
      %p150 = scmp.ne.s32.totalorder %s145, %s147
      %p151 = scmp.eq.s32.totalorder %s22, 0
      %p152 = por %p150, %p151
      %p153 = scmp.ne.s32.totalorder %s145, %s147
      %p154 = scmp.eq.s32.totalorder %s27, 1
      %p155 = por %p153, %p154
      %p156 = scmp.ne.s32.totalorder %s147, %s148
      %p157 = scmp.eq.s32.totalorder %s27, 0
      %p158 = por %p156, %p157
      %p159 = scmp.ne.s32.totalorder %s147, %s148
      %p160 = scmp.eq.s32.totalorder %s28, 1
      %p161 = por %p159, %p160
      %p163 = scmp.ne.s32.totalorder %s148, %s162
      %p164 = scmp.eq.s32.totalorder %s28, 0
      %p165 = por %p163, %p164
      %s167 = sadd.s32 %s166, 1
      %p170 = scmp.eq.s32.totalorder %s22, 1
      %p171 = scmp.ne.s32.totalorder %s166, %s168
      %p172 = scmp.eq.s32.totalorder %s22, 0
      %p173 = por %p171, %p172
      %p174 = scmp.ne.s32.totalorder %s166, %s168
      %p175 = scmp.eq.s32.totalorder %s27, 1
      %p176 = por %p174, %p175
      %p177 = scmp.ne.s32.totalorder %s168, %s169
      %p178 = scmp.eq.s32.totalorder %s27, 0
      %p179 = por %p177, %p178
      %p180 = scmp.ne.s32.totalorder %s168, %s169
      %p181 = scmp.eq.s32.totalorder %s28, 1
      %p182 = por %p180, %p181
      %p184 = scmp.ne.s32.totalorder %s169, %s183
      %p185 = scmp.eq.s32.totalorder %s28, 0
      %p186 = por %p184, %p185
      %s188 = sadd.s32 %s187, 1
      %p191 = scmp.eq.s32.totalorder %s22, 1
      %p192 = scmp.ne.s32.totalorder %s187, %s189
      %p193 = scmp.eq.s32.totalorder %s22, 0
      %p194 = por %p192, %p193
      %p195 = scmp.ne.s32.totalorder %s187, %s189
      %p196 = scmp.eq.s32.totalorder %s27, 1
      %p197 = por %p195, %p196
      %p198 = scmp.ne.s32.totalorder %s189, %s190
      %p199 = scmp.eq.s32.totalorder %s27, 0
      %p200 = por %p198, %p199
      %p201 = scmp.ne.s32.totalorder %s189, %s190
      %p202 = scmp.eq.s32.totalorder %s28, 1
      %p203 = por %p201, %p202
      %p205 = scmp.ne.s32.totalorder %s190, %s204
      %p206 = scmp.eq.s32.totalorder %s28, 0
      %p207 = por %p205, %p206
      %s208 = ssub.s32 %s22, %s29
      %p209 = scmp.eq.s32.totalorder %s208, 0
      %s211 = sadd.s32 %s210, 1
      %s212 = scalar_select %p209, %s210, %s211
      %p215 = pneg %p209
      %p216 = scmp.eq.s32.totalorder %s22, 1
      %p217 = por %p215, %p216
      %p218 = scmp.ne.s32.totalorder %s210, %s213
      %p219 = scmp.eq.s32.totalorder %s22, 0
      %p220 = por %p218, %p219
      %p221 = scmp.ne.s32.totalorder %s210, %s213
      %p222 = scmp.eq.s32.totalorder %s27, 1
      %p223 = por %p221, %p222
      %p224 = scmp.ne.s32.totalorder %s213, %s214
      %p225 = scmp.eq.s32.totalorder %s27, 0
      %p226 = por %p224, %p225
      %p227 = scmp.ne.s32.totalorder %s213, %s214
      %p228 = scmp.eq.s32.totalorder %s28, 1
      %p229 = por %p227, %p228
      %p231 = scmp.ne.s32.totalorder %s214, %s230
      %p232 = scmp.eq.s32.totalorder %s28, 0
      %p233 = por %p231, %p232
      %p234 = scmp.le.s32.totalorder 1, %s22
      %p235 = scmp.lt.s32.totalorder %s22, 3
      %p236 = pnand %p234, %p235
      %p237 = pneg %p236
      // Predicated region
      $region9: #{transformer_decoder_forward.1} parent=5 // pred_check
        _
      $region10: #{transformer_decoder_forward.1} parent=5 // pred_check_branch
        %239 = sbr.rel (%p236) target = $region12
      $region11: #{transformer_decoder_forward.1} parent=5 // pred_region
        %s240 = ssub.s32 %s22, 1
        // Predicated region
        $region13: #{transformer_decoder_forward.1} parent=11 // pred_check
          %p241 = pneg %p95
        $region14: #{transformer_decoder_forward.1} parent=11 // pred_check_branch
          %243 = sbr.rel (%p241) target = $region16
        $region15: #{transformer_decoder_forward.1} parent=11 // pred_region
          %s245 = ssub.s32 20480, 20480
          %246 = vsyncadd [#allocation6], %s245
          %s247 = sshll.u32 [#allocation5], 4
          %s248 = int_to_ptr.vmem [resolvable:$true] %s247
          %253 = dma.hbm_to_vmem [thread:$0]  %s2, 20480, %s248, [#allocation6], 640, 640, 40
        $region16: #{transformer_decoder_forward.1} parent=11 // pred_fallthru
          _
        // Predicated region
        $region17: #{transformer_decoder_forward.1} parent=11 // pred_check
          %p254 = pneg %p116
        $region18: #{transformer_decoder_forward.1} parent=11 // pred_check_branch
          %256 = sbr.rel (%p254) target = $region20
        $region19: #{transformer_decoder_forward.1} parent=11 // pred_region
          _
        $region20: #{transformer_decoder_forward.1} parent=11 // pred_fallthru
          _
        // Predicated region
        $region21: #{transformer_decoder_forward.1} parent=11 // pred_check
          %p257 = pneg %p137
        $region22: #{transformer_decoder_forward.1} parent=11 // pred_check_branch
          %259 = sbr.rel (%p257) target = $region24
        $region23: #{transformer_decoder_forward.1} parent=11 // pred_region
          %s261 = ssub.s32 352, 352
          %262 = vsyncadd [#allocation6], %s261
          %s263 = sshll.u32 [#allocation7], 4
          %s264 = int_to_ptr.vmem [resolvable:$true] %s263
          %269 = dma.hbm_to_vmem [thread:$0]  %s4, 352, %s264, [#allocation6], 176, 176, 11
        $region24: #{transformer_decoder_forward.1} parent=11 // pred_fallthru
          _
        // Predicated region
        $region25: #{transformer_decoder_forward.1} parent=11 // pred_check
          %p270 = pneg %p158
        $region26: #{transformer_decoder_forward.1} parent=11 // pred_check_branch
          %272 = sbr.rel (%p270) target = $region28
        $region27: #{transformer_decoder_forward.1} parent=11 // pred_region
          _
        $region28: #{transformer_decoder_forward.1} parent=11 // pred_fallthru
          _
        // Predicated region
        $region29: #{transformer_decoder_forward.1} parent=11 // pred_check
          %p273 = pneg %p179
        $region30: #{transformer_decoder_forward.1} parent=11 // pred_check_branch
          %275 = sbr.rel (%p273) target = $region32
        $region31: #{transformer_decoder_forward.1} parent=11 // pred_region
          %s277 = ssub.s32 2048, 2048
          %278 = vsyncadd [#allocation9], %s277
          %s279 = sshll.u32 [#allocation8], 4
          %s280 = int_to_ptr.vmem [resolvable:$true] %s279
          %285 = dma.hbm_to_vmem [thread:$0]  %s6, 2048, %s280, [#allocation9], 128, 128, 8
        $region32: #{transformer_decoder_forward.1} parent=11 // pred_fallthru
          _
        // Predicated region
        $region33: #{transformer_decoder_forward.1} parent=11 // pred_check
          %p286 = pneg %p200
        $region34: #{transformer_decoder_forward.1} parent=11 // pred_check_branch
          %288 = sbr.rel (%p286) target = $region36
        $region35: #{transformer_decoder_forward.1} parent=11 // pred_region
          _
        $region36: #{transformer_decoder_forward.1} parent=11 // pred_fallthru
          _
      $region12: #{transformer_decoder_forward.1} parent=5 // pred_fallthru
        _
      %p289 = scmp.lt.s32.totalorder %s22, 2
      // Predicated region
      $region37: #{transformer_decoder_forward.1} parent=5 // pred_check
        %p290 = pneg %p289
      $region38: #{transformer_decoder_forward.1} parent=5 // pred_check_branch
        %292 = sbr.rel (%p290) target = $region40
      $region39: #{transformer_decoder_forward.1} parent=5 // pred_region
        // Predicated region
        $region41: #{transformer_decoder_forward.1} parent=39 // pred_check
          %p293 = pneg %p42
        $region42: #{transformer_decoder_forward.1} parent=39 // pred_check_branch
          %295 = sbr.rel (%p293) target = $region44
        $region43: #{transformer_decoder_forward.1} parent=39 // pred_region
          %p296 = scmp.lt.s32.totalorder %s22, 1
          %s297 = scalar_select %p296, %s22, 1
          %s298 = smul.addr %s297, 8
          %s299 = scalar_lea.vmem %s0, %s298
        $region44: #{transformer_decoder_forward.1} parent=39 // pred_fallthru
          _
        // Predicated region
        $region45: #{transformer_decoder_forward.1} parent=39 // pred_check
          %p300 = pneg %p68
        $region46: #{transformer_decoder_forward.1} parent=39 // pred_check_branch
          %302 = sbr.rel (%p300) target = $region48
        $region47: #{transformer_decoder_forward.1} parent=39 // pred_region
          %s303 = sand.u32 %s58, 1
          %s304 = scalar_lea.sflag [#allocation3], %s303
          %s305 = sand.u32 %s58, 1
          %s306 = smul.addr %s305, 8
          %s307 = scalar_lea.vmem [#allocation2], %s306
          %s309 = ssub.s32 128, 128
          %310 = vsyncadd %s304, %s309
          %s311 = smul.addr %s22, 128
          %s312 = scalar_lea.hbm %s1, %s311
          %s314 = sshll.u32 %s307, 4
          %s315 = int_to_ptr.vmem [resolvable:$true] %s314
          %317 = dma.hbm_to_vmem [thread:$0]  %s312, 128, %s315, %s304
        $region48: #{transformer_decoder_forward.1} parent=39 // pred_fallthru
          _
      $region40: #{transformer_decoder_forward.1} parent=5 // pred_fallthru
        _
      %p318 = scmp.le.s32.totalorder 1, %s22
      %p319 = scmp.lt.s32.totalorder %s22, 3
      %p320 = pnand %p318, %p319
      %p321 = pneg %p320
      // Predicated region
      $region49: #{transformer_decoder_forward.1} parent=5 // pred_check
        _
      $region50: #{transformer_decoder_forward.1} parent=5 // pred_check_branch
        %323 = sbr.rel (%p320) target = $region52
      $region51: #{transformer_decoder_forward.1} parent=5 // pred_region
        %s324 = ssub.s32 %s22, 1
        %s325 = sand.u32 %s61, 1
        %s326 = scalar_lea.sflag [#allocation3], %s325
        %s327 = sand.u32 %s61, 1
        %s328 = smul.addr %s327, 8
        %s329 = scalar_lea.vmem [#allocation2], %s328
        // Predicated region
        $region53: #{transformer_decoder_forward.1} parent=51 // pred_check
          %p330 = pneg %p74
        $region54: #{transformer_decoder_forward.1} parent=51 // pred_check_branch
          %332 = sbr.rel (%p330) target = $region56
        $region55: #{transformer_decoder_forward.1} parent=51 // pred_region
          %333 = dma.done %s326, 128
        $region56: #{transformer_decoder_forward.1} parent=51 // pred_fallthru
          _
        // Predicated region
        $region57: #{transformer_decoder_forward.1} parent=51 // pred_check
          %p334 = pneg %p95
        $region58: #{transformer_decoder_forward.1} parent=51 // pred_check_branch
          %336 = sbr.rel (%p334) target = $region60
        $region59: #{transformer_decoder_forward.1} parent=51 // pred_region
          %337 = dma.done [#allocation6], 20480
        $region60: #{transformer_decoder_forward.1} parent=51 // pred_fallthru
          _
        // Predicated region
        $region61: #{transformer_decoder_forward.1} parent=51 // pred_check
          %p338 = pneg %p137
        $region62: #{transformer_decoder_forward.1} parent=51 // pred_check_branch
          %340 = sbr.rel (%p338) target = $region64
        $region63: #{transformer_decoder_forward.1} parent=51 // pred_region
          %341 = dma.done [#allocation6], 352
        $region64: #{transformer_decoder_forward.1} parent=51 // pred_fallthru
          _
        // Predicated region
        $region65: #{transformer_decoder_forward.1} parent=51 // pred_check
          %p342 = pneg %p179
        $region66: #{transformer_decoder_forward.1} parent=51 // pred_check_branch
          %344 = sbr.rel (%p342) target = $region68
        $region67: #{transformer_decoder_forward.1} parent=51 // pred_region
          %345 = dma.done [#allocation9], 2048
        $region68: #{transformer_decoder_forward.1} parent=51 // pred_fallthru
          _
        %p346 = scmp.lt.s32.totalorder %s27, 1
        %s347 = scalar_select %p346, %s27, 1
        %s348 = smul.addr %s347, 8
        %s349 = scalar_lea.vmem %s0, %s348
        %p350 = pneg %p48
        %p351 = pneg %p45
        %s352 = sand.u32 %s61, 1
        %s353 = scalar_lea.sflag [#allocation3], %s352
        %s354 = sand.u32 %s61, 1
        %s355 = smul.addr %s354, 8
        %s356 = scalar_lea.vmem [#allocation2], %s355
        %p357 = pneg %p74
        %p358 = pneg %p71
        %p359 = pneg %p95
        %p360 = pneg %p92
        %p361 = pneg %p116
        %p362 = pneg %p113
        %p363 = pneg %p137
        %p364 = pneg %p134
        %p365 = pneg %p158
        %p366 = pneg %p155
        %p367 = pneg %p179
        %p368 = pneg %p176
        %p369 = pneg %p200
        %p370 = pneg %p197
        %p371 = pneg %p226
        %p372 = pneg %p223
        %s373 = sand.u32 %s213, 1
        %s374 = scalar_lea.sflag [#allocation4], %s373
        %s375 = sand.u32 %s213, 1
        %s376 = smul.addr %s375, 16
        %s377 = scalar_lea.vmem [#allocation10], %s376
        %p378 = scmp.lt.s32.totalorder %s27, 1
        %s379 = scalar_select %p378, %s27, 1
        %s380 = smul.addr %s379, 8
        %s381 = scalar_lea.vmem %s0, %s380
        %v383 = vld [vmem:[%s381] sm:$0xff]
        %v384 = vld [vmem:[%s329] sm:$0xff]
        %v385 = vpack.c.bf16 %v384, %v384
        %v386 = vld [vmem:[%s5] sm:$0x3f]
        %v387 = vpack.c.bf16 %v383, %v383
        %v388 = vld [vmem:[#allocation5] sm:$0xff]
        %v389 = vld [vmem:[#allocation5 + $0x8] sm:$0xf]
        %v390 = vld [vmem:[#allocation5 + $0x28] sm:$0xff]
        %v391 = vld [vmem:[#allocation5 + $0x30] sm:$0xf]
        %v392 = vld [vmem:[#allocation5 + $0x50] sm:$0xff]
        %v393 = vld [vmem:[#allocation5 + $0x58] sm:$0xf]
        %v394 = vld [vmem:[#allocation5 + $0x78] sm:$0xff]
        %v395 = vld [vmem:[#allocation5 + $0x80] sm:$0xf]
        %v396 = vld [vmem:[#allocation5 + $0xa0] sm:$0xff]
        %v397 = vld [vmem:[#allocation5 + $0xa8] sm:$0xf]
        %v398 = vld [vmem:[#allocation5 + $0xc8] sm:$0xff]
        %v399 = vld [vmem:[#allocation5 + $0xd0] sm:$0xf]
        %v400 = vld [vmem:[#allocation5 + $0xf0] sm:$0xff]
        %v401 = vld [vmem:[#allocation5 + $0xf8] sm:$0xf]
        %v402 = vld [vmem:[#allocation5 + $0x118] sm:$0xff]
        %v403 = vld [vmem:[#allocation5 + $0x120] sm:$0xf]
        %v404 = vld [vmem:[#allocation5 + $0x140] sm:$0xff]
        %v405 = vld [vmem:[#allocation5 + $0x148] sm:$0xf]
        %v406 = vld [vmem:[#allocation5 + $0x168] sm:$0xff]
        %v407 = vld [vmem:[#allocation5 + $0x170] sm:$0xf]
        %v408 = vld [vmem:[#allocation5 + $0x190] sm:$0xff]
        %v409 = vld [vmem:[#allocation5 + $0x198] sm:$0xf]
        %v410 = vld [vmem:[#allocation5 + $0x1b8] sm:$0xff]
        %v411 = vld [vmem:[#allocation5 + $0x1c0] sm:$0xf]
        %v412 = vld [vmem:[#allocation5 + $0x1e0] sm:$0xff]
        %v413 = vld [vmem:[#allocation5 + $0x1e8] sm:$0xf]
        %v414 = vld [vmem:[#allocation5 + $0x208] sm:$0xff]
        %v415 = vld [vmem:[#allocation5 + $0x210] sm:$0xf]
        %v416 = vld [vmem:[#allocation5 + $0x230] sm:$0xff]
        %v417 = vld [vmem:[#allocation5 + $0x238] sm:$0xf]
        %v418 = vld [vmem:[#allocation5 + $0x258] sm:$0xff]
        %v419 = vld [vmem:[#allocation5 + $0x260] sm:$0xf]
        %v420 = vld [vmem:[#allocation7] sm:$0x7]
        %v422 = vlaneseq
        %v423 = vshrl.u32 %v422, 7
        %v424 = vsub.s32 0, %v423
        %v425 = vrot.slane %v420, %v424
        %v426 = vlaneseq
        %v427 = vshrl.u32 %v426, 7
        %v428 = vsub.s32 1, %v427
        %v429 = vrot.slane %v420, %v428
        %v430 = vlaneseq
        %v431 = vshrl.u32 %v430, 7
        %v432 = vsub.s32 2, %v431
        %v433 = vrot.slane %v420, %v432
        %v469 = vunpack.c.l.b16 %v388
        %v470 = vunpack.c.h.b16 %v388
        %v471 = vunpack.c.l.b16 %v389
        %v472 = vunpack.c.l.b16 %v390
        %v473 = vunpack.c.h.b16 %v390
        %v474 = vunpack.c.l.b16 %v391
        %v475 = vunpack.c.l.b16 %v392
        %v476 = vunpack.c.h.b16 %v392
        %v477 = vunpack.c.l.b16 %v393
        %v478 = vunpack.c.l.b16 %v394
        %v479 = vunpack.c.h.b16 %v394
        %v480 = vunpack.c.l.b16 %v395
        %v481 = vunpack.c.l.b16 %v396
        %v482 = vunpack.c.h.b16 %v396
        %v483 = vunpack.c.l.b16 %v397
        %v484 = vunpack.c.l.b16 %v398
        %v485 = vunpack.c.h.b16 %v398
        %v486 = vunpack.c.l.b16 %v399
        %v487 = vunpack.c.l.b16 %v400
        %v488 = vunpack.c.h.b16 %v400
        %v489 = vunpack.c.l.b16 %v401
        %v490 = vunpack.c.l.b16 %v402
        %v491 = vunpack.c.h.b16 %v402
        %v492 = vunpack.c.l.b16 %v403
        %v493 = vunpack.c.l.b16 %v404
        %v494 = vunpack.c.h.b16 %v404
        %v495 = vunpack.c.l.b16 %v405
        %v496 = vunpack.c.l.b16 %v406
        %v497 = vunpack.c.h.b16 %v406
        %v498 = vunpack.c.l.b16 %v407
        %v499 = vunpack.c.l.b16 %v408
        %v500 = vunpack.c.h.b16 %v408
        %v501 = vunpack.c.l.b16 %v409
        %v502 = vunpack.c.l.b16 %v410
        %v503 = vunpack.c.h.b16 %v410
        %v504 = vunpack.c.l.b16 %v411
        %v505 = vunpack.c.l.b16 %v412
        %v506 = vunpack.c.h.b16 %v412
        %v507 = vunpack.c.l.b16 %v413
        %v508 = vunpack.c.l.b16 %v414
        %v509 = vunpack.c.h.b16 %v414
        %v510 = vunpack.c.l.b16 %v415
        %v511 = vunpack.c.l.b16 %v416
        %v512 = vunpack.c.h.b16 %v416
        %v513 = vunpack.c.l.b16 %v417
        %v514 = vunpack.c.l.b16 %v418
        %v515 = vunpack.c.h.b16 %v418
        %v516 = vunpack.c.l.b16 %v419
        %v517 = vpack.c.b16 %v472, %v469
        %v518 = vpack.c.b16 %v473, %v470
        %v519 = vpack.c.b16 %v474, %v471
        %v520 = vpack.c.b16 %v478, %v475
        %v521 = vpack.c.b16 %v479, %v476
        %v522 = vpack.c.b16 %v480, %v477
        %v523 = vpack.c.b16 %v484, %v481
        %v524 = vpack.c.b16 %v485, %v482
        %v525 = vpack.c.b16 %v486, %v483
        %v526 = vpack.c.b16 %v490, %v487
        %v527 = vpack.c.b16 %v491, %v488
        %v528 = vpack.c.b16 %v492, %v489
        %v529 = vpack.c.b16 %v496, %v493
        %v530 = vpack.c.b16 %v497, %v494
        %v531 = vpack.c.b16 %v498, %v495
        %v532 = vpack.c.b16 %v502, %v499
        %v533 = vpack.c.b16 %v503, %v500
        %v534 = vpack.c.b16 %v504, %v501
        %v535 = vpack.c.b16 %v508, %v505
        %v536 = vpack.c.b16 %v509, %v506
        %v537 = vpack.c.b16 %v510, %v507
        %v538 = vpack.c.b16 %v514, %v511
        %v539 = vpack.c.b16 %v515, %v512
        %v540 = vpack.c.b16 %v516, %v513
        %565 = vmatprep.subr.bf16.mxu0 %v539
        %566 = vmatpush1.bf16.msra.mxu0 %v538
        %567 = vmatprep.subr.bf16.mxu0 %v536
        %568 = vmatpush1.bf16.msra.mxu0 %v535
        %569 = vmatprep.subr.bf16.mxu0 %v533
        %570 = vmatpush1.bf16.msra.mxu0 %v532
        %571 = vmatprep.subr.bf16.mxu0 %v530
        %572 = vmatpush1.bf16.msra.mxu0 %v529
        %573 = vmatprep.subr.bf16.mxu0 %v527
        %574 = vmatpush1.bf16.msra.mxu0 %v526
        %575 = vmatprep.subr.bf16.mxu0 %v524
        %576 = vmatpush1.bf16.msra.mxu0 %v523
        %577 = vmatprep.subr.bf16.mxu0 %v521
        %578 = vmatpush1.bf16.msra.mxu0 %v520
        %579 = vmatprep.subr.bf16.mxu0 %v518
        %580 = vmatpush1.bf16.msra.mxu0 %v517
        %581 = vmatprep.subr.bf16.mxu0 0
        %582 = vmatpush2.bf16.msra.mxu0 0
        %583 = vmatprep.subr.bf16.mxu0 0
        %584 = vmatpush2.bf16.msra.mxu0 0
        %585 = vmatprep.subr.bf16.mxu0 0
        %586 = vmatpush2.bf16.msra.mxu0 0
        %587 = vmatprep.subr.bf16.mxu0 0
        %588 = vmatpush2.bf16.msra.mxu0 0
        %589 = vmatprep.subr.bf16.mxu0 0
        %590 = vmatpush2.bf16.msra.mxu0 0
        %591 = vmatprep.subr.bf16.mxu0 0
        %592 = vmatpush2.bf16.msra.mxu0 0
        %593 = vmatprep.subr.bf16.mxu0 0
        %594 = vmatpush2.bf16.msra.mxu0 0
        %595 = vmatprep.subr.bf16.mxu0 0
        %596 = vmatpush2.bf16.msra.mxu0 0
        %597 = vmatprep.mubr.bf16.mxu0 0
        %598 = vmatmul.mubr.bf16.gmra.mxu0 %v387
        %v599 = vpop.f32.mrf.mxu0
        %v600 = vadd.f32 %v425, %v599
        %v601 = vpop.f32.mrf.mxu0
        %v602 = vadd.f32 %v429, %v601
        %v603 = vpop.f32.mrf.mxu0
        %v604 = vpop.f32.mrf.mxu0
        %605 = vdwg.mxu0
        %606 = vmatprep.subr.bf16.mxu0 0
        %607 = vmatpush1.bf16.msra.mxu0 %v540
        %608 = vmatprep.subr.bf16.mxu0 0
        %609 = vmatpush1.bf16.msra.mxu0 %v537
        %610 = vmatprep.subr.bf16.mxu0 0
        %611 = vmatpush1.bf16.msra.mxu0 %v534
        %612 = vmatprep.subr.bf16.mxu0 0
        %613 = vmatpush1.bf16.msra.mxu0 %v531
        %614 = vmatprep.subr.bf16.mxu0 0
        %615 = vmatpush1.bf16.msra.mxu0 %v528
        %616 = vmatprep.subr.bf16.mxu0 0
        %617 = vmatpush1.bf16.msra.mxu0 %v525
        %618 = vmatprep.subr.bf16.mxu0 0
        %619 = vmatpush1.bf16.msra.mxu0 %v522
        %620 = vmatprep.subr.bf16.mxu0 0
        %621 = vmatpush1.bf16.msra.mxu0 %v519
        %622 = vmatprep.subr.bf16.mxu0 0
        %623 = vmatpush2.bf16.msra.mxu0 0
        %624 = vmatprep.subr.bf16.mxu0 0
        %625 = vmatpush2.bf16.msra.mxu0 0
        %626 = vmatprep.subr.bf16.mxu0 0
        %627 = vmatpush2.bf16.msra.mxu0 0
        %628 = vmatprep.subr.bf16.mxu0 0
        %629 = vmatpush2.bf16.msra.mxu0 0
        %630 = vmatprep.subr.bf16.mxu0 0
        %631 = vmatpush2.bf16.msra.mxu0 0
        %632 = vmatprep.subr.bf16.mxu0 0
        %633 = vmatpush2.bf16.msra.mxu0 0
        %634 = vmatprep.subr.bf16.mxu0 0
        %635 = vmatpush2.bf16.msra.mxu0 0
        %636 = vmatprep.subr.bf16.mxu0 0
        %637 = vmatpush2.bf16.msra.mxu0 0
        %638 = vmatprep.mubr.bf16.mxu0 0
        %639 = vmatmul.mubr.bf16.gmra.mxu0 %v387
        %v640 = vpop.f32.mrf.mxu0
        %v641 = vadd.f32 %v433, %v640
        %v642 = vpop.f32.mrf.mxu0
        %v643 = vpop.f32.mrf.mxu0
        %v644 = vpop.f32.mrf.mxu0
        %645 = vdwg.mxu0
        %647 = vrot.lane.b32.xlu0 %v600, 96
        %v648 = vpop.permute.xlu0 %647
        %649 = vrot.lane.b32.xlu0 %v600, 64
        %v650 = vpop.permute.xlu0 %649
        %651 = vrot.lane.b32.xlu0 %v600, 32
        %v652 = vpop.permute.xlu0 %651
        %654 = vrot.lane.b32.xlu0 %v602, 96
        %v655 = vpop.permute.xlu0 %654
        %656 = vrot.lane.b32.xlu0 %v602, 64
        %v657 = vpop.permute.xlu0 %656
        %658 = vrot.lane.b32.xlu0 %v602, 32
        %v659 = vpop.permute.xlu0 %658
        %661 = vrot.lane.b32.xlu0 %v641, 96
        %v662 = vpop.permute.xlu0 %661
        %664 = vrot.lane.b32.xlu0 %v641, 64
        %v665 = vpop.permute.xlu0 %664
        %667 = vrot.lane.b32.xlu0 %v641, 32
        %v668 = vpop.permute.xlu0 %667
        %vm670 = vcmask 261120
        %v671 = vsel %vm670, %v600, 0
        %v673 = vsel %vm670, %v602, 0
        %675 = vmatprep.subr.mxu0 0.0
        %676 = vmatpush1.xpose.msra.mxu0 0.0
        %677 = vmatprep.subr.mxu0 0.0
        %678 = vmatpush1.xpose.msra.mxu0 0.0
        %679 = vmatprep.subr.mxu0 0.0
        %680 = vmatpush1.xpose.msra.mxu0 0.0
        %681 = vmatprep.subr.mxu0 0.0
        %682 = vmatpush1.xpose.msra.mxu0 0.0
        %683 = vmatprep.subr.mxu0 0.0
        %684 = vmatpush1.xpose.msra.mxu0 0.0
        %685 = vmatprep.subr.mxu0 0.0
        %686 = vmatpush1.xpose.msra.mxu0 0.0
        %687 = vmatprep.subr.mxu0 0.0
        %688 = vmatpush1.xpose.msra.mxu0 0.0
        %689 = vmatprep.subr.mxu0 0.0
        %690 = vmatpush1.xpose.msra.mxu0 0.0
        %691 = vmatprep.subr.mxu0 0.0
        %692 = vmatpush1.xpose.msra.mxu0 0.0
        %693 = vmatprep.subr.mxu0 0.0
        %694 = vmatpush1.xpose.msra.mxu0 0.0
        %695 = vmatprep.subr.mxu0 0.0
        %696 = vmatpush1.xpose.msra.mxu0 0.0
        %697 = vmatprep.subr.mxu0 0.0
        %698 = vmatpush1.xpose.msra.mxu0 0.0
        %699 = vmatprep.subr.mxu0 0.0
        %700 = vmatpush1.xpose.msra.mxu0 0.0
        %701 = vmatprep.subr.mxu0 0.0
        %702 = vmatpush1.xpose.msra.mxu0 0.0
        %703 = vmatprep.subr.mxu0 0.0
        %704 = vmatpush1.xpose.msra.mxu0 0.0
        %705 = vmatprep.subr.mxu0 0.0
        %706 = vmatpush1.xpose.msra.mxu0 %v673
        %707 = vmatprep.subr.mxu0 0.0
        %708 = vmatpush2.xpose.msra.mxu0 0.0
        %709 = vmatprep.subr.mxu0 0.0
        %710 = vmatpush2.xpose.msra.mxu0 0.0
        %711 = vmatprep.subr.mxu0 0.0
        %712 = vmatpush2.xpose.msra.mxu0 0.0
        %713 = vmatprep.subr.mxu0 0.0
        %714 = vmatpush2.xpose.msra.mxu0 0.0
        %715 = vmatprep.subr.mxu0 0.0
        %716 = vmatpush2.xpose.msra.mxu0 0.0
        %717 = vmatprep.subr.mxu0 0.0
        %718 = vmatpush2.xpose.msra.mxu0 0.0
        %719 = vmatprep.subr.mxu0 0.0
        %720 = vmatpush2.xpose.msra.mxu0 0.0
        %721 = vmatprep.subr.mxu0 0.0
        %722 = vmatpush2.xpose.msra.mxu0 0.0
        %723 = vmatprep.subr.mxu0 0.0
        %724 = vmatpush2.xpose.msra.mxu0 0.0
        %725 = vmatprep.subr.mxu0 0.0
        %726 = vmatpush2.xpose.msra.mxu0 0.0
        %727 = vmatprep.subr.mxu0 0.0
        %728 = vmatpush2.xpose.msra.mxu0 0.0
        %729 = vmatprep.subr.mxu0 0.0
        %730 = vmatpush2.xpose.msra.mxu0 0.0
        %731 = vmatprep.subr.mxu0 0.0
        %732 = vmatpush2.xpose.msra.mxu0 0.0
        %733 = vmatprep.subr.mxu0 0.0
        %734 = vmatpush2.xpose.msra.mxu0 0.0
        %735 = vmatprep.subr.mxu0 0.0
        %736 = vmatpush2.xpose.msra.mxu0 0.0
        %737 = vmatprep.subr.mxu0 0.0
        %738 = vmatpush2.xpose.msra.mxu0 0.0
        %739 = vmatprep.mubr.f32.mxu0 0.0
        %740 = vmatmul.mubr.f32.gmra.mxu0 %v671
        %v741 = vpop.f32.mrf.mxu0
        %v742 = vadd.f32 0.0, %v741
        %v743 = vpop.f32.mrf.mxu0
        %744 = vdwg.mxu0
        %v745 = vsel %vm670, %v648, 0
        %v747 = vsel %vm670, %v655, 0
        %749 = vmatprep.subr.mxu0 0.0
        %750 = vmatpush1.xpose.msra.mxu0 0.0
        %751 = vmatprep.subr.mxu0 0.0
        %752 = vmatpush1.xpose.msra.mxu0 0.0
        %753 = vmatprep.subr.mxu0 0.0
        %754 = vmatpush1.xpose.msra.mxu0 0.0
        %755 = vmatprep.subr.mxu0 0.0
        %756 = vmatpush1.xpose.msra.mxu0 0.0
        %757 = vmatprep.subr.mxu0 0.0
        %758 = vmatpush1.xpose.msra.mxu0 0.0
        %759 = vmatprep.subr.mxu0 0.0
        %760 = vmatpush1.xpose.msra.mxu0 0.0
        %761 = vmatprep.subr.mxu0 0.0
        %762 = vmatpush1.xpose.msra.mxu0 0.0
        %763 = vmatprep.subr.mxu0 0.0
        %764 = vmatpush1.xpose.msra.mxu0 0.0
        %765 = vmatprep.subr.mxu0 0.0
        %766 = vmatpush1.xpose.msra.mxu0 0.0
        %767 = vmatprep.subr.mxu0 0.0
        %768 = vmatpush1.xpose.msra.mxu0 0.0
        %769 = vmatprep.subr.mxu0 0.0
        %770 = vmatpush1.xpose.msra.mxu0 0.0
        %771 = vmatprep.subr.mxu0 0.0
        %772 = vmatpush1.xpose.msra.mxu0 0.0
        %773 = vmatprep.subr.mxu0 0.0
        %774 = vmatpush1.xpose.msra.mxu0 0.0
        %775 = vmatprep.subr.mxu0 0.0
        %776 = vmatpush1.xpose.msra.mxu0 0.0
        %777 = vmatprep.subr.mxu0 0.0
        %778 = vmatpush1.xpose.msra.mxu0 0.0
        %779 = vmatprep.subr.mxu0 0.0
        %780 = vmatpush1.xpose.msra.mxu0 %v747
        %781 = vmatprep.subr.mxu0 0.0
        %782 = vmatpush2.xpose.msra.mxu0 0.0
        %783 = vmatprep.subr.mxu0 0.0
        %784 = vmatpush2.xpose.msra.mxu0 0.0
        %785 = vmatprep.subr.mxu0 0.0
        %786 = vmatpush2.xpose.msra.mxu0 0.0
        %787 = vmatprep.subr.mxu0 0.0
        %788 = vmatpush2.xpose.msra.mxu0 0.0
        %789 = vmatprep.subr.mxu0 0.0
        %790 = vmatpush2.xpose.msra.mxu0 0.0
        %791 = vmatprep.subr.mxu0 0.0
        %792 = vmatpush2.xpose.msra.mxu0 0.0
        %793 = vmatprep.subr.mxu0 0.0
        %794 = vmatpush2.xpose.msra.mxu0 0.0
        %795 = vmatprep.subr.mxu0 0.0
        %796 = vmatpush2.xpose.msra.mxu0 0.0
        %797 = vmatprep.subr.mxu0 0.0
        %798 = vmatpush2.xpose.msra.mxu0 0.0
        %799 = vmatprep.subr.mxu0 0.0
        %800 = vmatpush2.xpose.msra.mxu0 0.0
        %801 = vmatprep.subr.mxu0 0.0
        %802 = vmatpush2.xpose.msra.mxu0 0.0
        %803 = vmatprep.subr.mxu0 0.0
        %804 = vmatpush2.xpose.msra.mxu0 0.0
        %805 = vmatprep.subr.mxu0 0.0
        %806 = vmatpush2.xpose.msra.mxu0 0.0
        %807 = vmatprep.subr.mxu0 0.0
        %808 = vmatpush2.xpose.msra.mxu0 0.0
        %809 = vmatprep.subr.mxu0 0.0
        %810 = vmatpush2.xpose.msra.mxu0 0.0
        %811 = vmatprep.subr.mxu0 0.0
        %812 = vmatpush2.xpose.msra.mxu0 0.0
        %813 = vmatprep.mubr.f32.mxu0 0.0
        %814 = vmatmul.mubr.f32.gmra.mxu0 %v745
        %v815 = vpop.f32.mrf.mxu0
        %v816 = vadd.f32 0.0, %v815
        %v817 = vpop.f32.mrf.mxu0
        %818 = vdwg.mxu0
        %v819 = vsel %vm670, %v650, 0
        %v821 = vsel %vm670, %v657, 0
        %823 = vmatprep.subr.mxu0 0.0
        %824 = vmatpush1.xpose.msra.mxu0 0.0
        %825 = vmatprep.subr.mxu0 0.0
        %826 = vmatpush1.xpose.msra.mxu0 0.0
        %827 = vmatprep.subr.mxu0 0.0
        %828 = vmatpush1.xpose.msra.mxu0 0.0
        %829 = vmatprep.subr.mxu0 0.0
        %830 = vmatpush1.xpose.msra.mxu0 0.0
        %831 = vmatprep.subr.mxu0 0.0
        %832 = vmatpush1.xpose.msra.mxu0 0.0
        %833 = vmatprep.subr.mxu0 0.0
        %834 = vmatpush1.xpose.msra.mxu0 0.0
        %835 = vmatprep.subr.mxu0 0.0
        %836 = vmatpush1.xpose.msra.mxu0 0.0
        %837 = vmatprep.subr.mxu0 0.0
        %838 = vmatpush1.xpose.msra.mxu0 0.0
        %839 = vmatprep.subr.mxu0 0.0
        %840 = vmatpush1.xpose.msra.mxu0 0.0
        %841 = vmatprep.subr.mxu0 0.0
        %842 = vmatpush1.xpose.msra.mxu0 0.0
        %843 = vmatprep.subr.mxu0 0.0
        %844 = vmatpush1.xpose.msra.mxu0 0.0
        %845 = vmatprep.subr.mxu0 0.0
        %846 = vmatpush1.xpose.msra.mxu0 0.0
        %847 = vmatprep.subr.mxu0 0.0
        %848 = vmatpush1.xpose.msra.mxu0 0.0
        %849 = vmatprep.subr.mxu0 0.0
        %850 = vmatpush1.xpose.msra.mxu0 0.0
        %851 = vmatprep.subr.mxu0 0.0
        %852 = vmatpush1.xpose.msra.mxu0 0.0
        %853 = vmatprep.subr.mxu0 0.0
        %854 = vmatpush1.xpose.msra.mxu0 %v821
        %855 = vmatprep.subr.mxu0 0.0
        %856 = vmatpush2.xpose.msra.mxu0 0.0
        %857 = vmatprep.subr.mxu0 0.0
        %858 = vmatpush2.xpose.msra.mxu0 0.0
        %859 = vmatprep.subr.mxu0 0.0
        %860 = vmatpush2.xpose.msra.mxu0 0.0
        %861 = vmatprep.subr.mxu0 0.0
        %862 = vmatpush2.xpose.msra.mxu0 0.0
        %863 = vmatprep.subr.mxu0 0.0
        %864 = vmatpush2.xpose.msra.mxu0 0.0
        %865 = vmatprep.subr.mxu0 0.0
        %866 = vmatpush2.xpose.msra.mxu0 0.0
        %867 = vmatprep.subr.mxu0 0.0
        %868 = vmatpush2.xpose.msra.mxu0 0.0
        %869 = vmatprep.subr.mxu0 0.0
        %870 = vmatpush2.xpose.msra.mxu0 0.0
        %871 = vmatprep.subr.mxu0 0.0
        %872 = vmatpush2.xpose.msra.mxu0 0.0
        %873 = vmatprep.subr.mxu0 0.0
        %874 = vmatpush2.xpose.msra.mxu0 0.0
        %875 = vmatprep.subr.mxu0 0.0
        %876 = vmatpush2.xpose.msra.mxu0 0.0
        %877 = vmatprep.subr.mxu0 0.0
        %878 = vmatpush2.xpose.msra.mxu0 0.0
        %879 = vmatprep.subr.mxu0 0.0
        %880 = vmatpush2.xpose.msra.mxu0 0.0
        %881 = vmatprep.subr.mxu0 0.0
        %882 = vmatpush2.xpose.msra.mxu0 0.0
        %883 = vmatprep.subr.mxu0 0.0
        %884 = vmatpush2.xpose.msra.mxu0 0.0
        %885 = vmatprep.subr.mxu0 0.0
        %886 = vmatpush2.xpose.msra.mxu0 0.0
        %887 = vmatprep.mubr.f32.mxu0 0.0
        %888 = vmatmul.mubr.f32.gmra.mxu0 %v819
        %v889 = vpop.f32.mrf.mxu0
        %v890 = vadd.f32 0.0, %v889
        %v891 = vpop.f32.mrf.mxu0
        %892 = vdwg.mxu0
        %v893 = vsel %vm670, %v652, 0
        %v895 = vsel %vm670, %v659, 0
        %897 = vmatprep.subr.mxu0 0.0
        %898 = vmatpush1.xpose.msra.mxu0 0.0
        %899 = vmatprep.subr.mxu0 0.0
        %900 = vmatpush1.xpose.msra.mxu0 0.0
        %901 = vmatprep.subr.mxu0 0.0
        %902 = vmatpush1.xpose.msra.mxu0 0.0
        %903 = vmatprep.subr.mxu0 0.0
        %904 = vmatpush1.xpose.msra.mxu0 0.0
        %905 = vmatprep.subr.mxu0 0.0
        %906 = vmatpush1.xpose.msra.mxu0 0.0
        %907 = vmatprep.subr.mxu0 0.0
        %908 = vmatpush1.xpose.msra.mxu0 0.0
        %909 = vmatprep.subr.mxu0 0.0
        %910 = vmatpush1.xpose.msra.mxu0 0.0
        %911 = vmatprep.subr.mxu0 0.0
        %912 = vmatpush1.xpose.msra.mxu0 0.0
        %913 = vmatprep.subr.mxu0 0.0
        %914 = vmatpush1.xpose.msra.mxu0 0.0
        %915 = vmatprep.subr.mxu0 0.0
        %916 = vmatpush1.xpose.msra.mxu0 0.0
        %917 = vmatprep.subr.mxu0 0.0
        %918 = vmatpush1.xpose.msra.mxu0 0.0
        %919 = vmatprep.subr.mxu0 0.0
        %920 = vmatpush1.xpose.msra.mxu0 0.0
        %921 = vmatprep.subr.mxu0 0.0
        %922 = vmatpush1.xpose.msra.mxu0 0.0
        %923 = vmatprep.subr.mxu0 0.0
        %924 = vmatpush1.xpose.msra.mxu0 0.0
        %925 = vmatprep.subr.mxu0 0.0
        %926 = vmatpush1.xpose.msra.mxu0 0.0
        %927 = vmatprep.subr.mxu0 0.0
        %928 = vmatpush1.xpose.msra.mxu0 %v895
        %929 = vmatprep.subr.mxu0 0.0
        %930 = vmatpush2.xpose.msra.mxu0 0.0
        %931 = vmatprep.subr.mxu0 0.0
        %932 = vmatpush2.xpose.msra.mxu0 0.0
        %933 = vmatprep.subr.mxu0 0.0
        %934 = vmatpush2.xpose.msra.mxu0 0.0
        %935 = vmatprep.subr.mxu0 0.0
        %936 = vmatpush2.xpose.msra.mxu0 0.0
        %937 = vmatprep.subr.mxu0 0.0
        %938 = vmatpush2.xpose.msra.mxu0 0.0
        %939 = vmatprep.subr.mxu0 0.0
        %940 = vmatpush2.xpose.msra.mxu0 0.0
        %941 = vmatprep.subr.mxu0 0.0
        %942 = vmatpush2.xpose.msra.mxu0 0.0
        %943 = vmatprep.subr.mxu0 0.0
        %944 = vmatpush2.xpose.msra.mxu0 0.0
        %945 = vmatprep.subr.mxu0 0.0
        %946 = vmatpush2.xpose.msra.mxu0 0.0
        %947 = vmatprep.subr.mxu0 0.0
        %948 = vmatpush2.xpose.msra.mxu0 0.0
        %949 = vmatprep.subr.mxu0 0.0
        %950 = vmatpush2.xpose.msra.mxu0 0.0
        %951 = vmatprep.subr.mxu0 0.0
        %952 = vmatpush2.xpose.msra.mxu0 0.0
        %953 = vmatprep.subr.mxu0 0.0
        %954 = vmatpush2.xpose.msra.mxu0 0.0
        %955 = vmatprep.subr.mxu0 0.0
        %956 = vmatpush2.xpose.msra.mxu0 0.0
        %957 = vmatprep.subr.mxu0 0.0
        %958 = vmatpush2.xpose.msra.mxu0 0.0
        %959 = vmatprep.subr.mxu0 0.0
        %960 = vmatpush2.xpose.msra.mxu0 0.0
        %961 = vmatprep.mubr.f32.mxu0 0.0
        %962 = vmatmul.mubr.f32.gmra.mxu0 %v893
        %v963 = vpop.f32.mrf.mxu0
        %v964 = vadd.f32 0.0, %v963
        %v965 = vpop.f32.mrf.mxu0
        %966 = vdwg.mxu0
        %vm967 = vcmask 64512
        %v968 = vsel %vm967, %v742, -inf
        %969 = vmax.xlane.f32.xlu0 %v968
        %v970 = vpop.xlane.xlu0 %969
        %v971 = vsel %vm967, %v816, -inf
        %972 = vmax.xlane.f32.xlu0 %v971
        %v973 = vpop.xlane.xlu0 %972
        %v974 = vsel %vm967, %v890, -inf
        %975 = vmax.xlane.f32.xlu0 %v974
        %v976 = vpop.xlane.xlu0 %975
        %v977 = vsel %vm967, %v964, -inf
        %978 = vmax.xlane.f32.xlu0 %v977
        %v979 = vpop.xlane.xlu0 %978
        %v980 = vsub.f32 %v742, %v970
        %v981 = vsub.f32 %v816, %v973
        %v982 = vsub.f32 %v890, %v976
        %v983 = vsub.f32 %v964, %v979
        %v984 = vmul.f32 %v980, 1.442695
        %v985 = vpow.pop %v984
        %v986 = vmul.f32 %v981, 1.442695
        %v987 = vpow.pop %v986
        %v988 = vmul.f32 %v982, 1.442695
        %v989 = vpow.pop %v988
        %v990 = vmul.f32 %v983, 1.442695
        %v991 = vpow.pop %v990
        %v992 = vsel %vm967, %v985, 0.0
        %993 = vadd.xlane.f32.xlu0 %v992
        %v994 = vpop.xlane.xlu0 %993
        %v995 = vsel %vm967, %v987, 0.0
        %996 = vadd.xlane.f32.xlu0 %v995
        %v997 = vpop.xlane.xlu0 %996
        %v998 = vsel %vm967, %v989, 0.0
        %999 = vadd.xlane.f32.xlu0 %v998
        %v1000 = vpop.xlane.xlu0 %999
        %v1001 = vsel %vm967, %v991, 0.0
        %1002 = vadd.xlane.f32.xlu0 %v1001
        %v1003 = vpop.xlane.xlu0 %1002
        %v1004 = vrcp.pop %v994
        %v1005 = vrcp.pop %v997
        %v1006 = vrcp.pop %v1000
        %v1007 = vrcp.pop %v1003
        %v1008 = vmul.f32 %v985, %v1004
        %v1009 = vmul.f32 %v987, %v1005
        %v1010 = vmul.f32 %v989, %v1006
        %v1011 = vmul.f32 %v991, %v1007
        %v1013 = vsel %vm967, %v1008, 0
        %1015 = vmatprep.subr.mxu0 0.0
        %1016 = vmatpush1.msra.mxu0 0.0
        %1017 = vmatprep.subr.mxu0 0.0
        %1018 = vmatpush1.msra.mxu0 0.0
        %1019 = vmatprep.subr.mxu0 0.0
        %1020 = vmatpush1.msra.mxu0 0.0
        %1021 = vmatprep.subr.mxu0 0.0
        %1022 = vmatpush1.msra.mxu0 0.0
        %1023 = vmatprep.subr.mxu0 0.0
        %1024 = vmatpush1.msra.mxu0 0.0
        %1025 = vmatprep.subr.mxu0 0.0
        %1026 = vmatpush1.msra.mxu0 0.0
        %1027 = vmatprep.subr.mxu0 0.0
        %1028 = vmatpush1.msra.mxu0 0.0
        %1029 = vmatprep.subr.mxu0 0.0
        %1030 = vmatpush1.msra.mxu0 0.0
        %1031 = vmatprep.subr.mxu0 0.0
        %1032 = vmatpush1.msra.mxu0 0.0
        %1033 = vmatprep.subr.mxu0 0.0
        %1034 = vmatpush1.msra.mxu0 0.0
        %1035 = vmatprep.subr.mxu0 0.0
        %1036 = vmatpush1.msra.mxu0 0.0
        %1037 = vmatprep.subr.mxu0 0.0
        %1038 = vmatpush1.msra.mxu0 0.0
        %1039 = vmatprep.subr.mxu0 0.0
        %1040 = vmatpush1.msra.mxu0 0.0
        %1041 = vmatprep.subr.mxu0 0.0
        %1042 = vmatpush1.msra.mxu0 0.0
        %1043 = vmatprep.subr.mxu0 0.0
        %1044 = vmatpush1.msra.mxu0 0.0
        %1045 = vmatprep.subr.mxu0 0.0
        %1046 = vmatpush1.msra.mxu0 %v641
        %1047 = vmatprep.subr.mxu0 0.0
        %1048 = vmatpush2.msra.mxu0 0.0
        %1049 = vmatprep.subr.mxu0 0.0
        %1050 = vmatpush2.msra.mxu0 0.0
        %1051 = vmatprep.subr.mxu0 0.0
        %1052 = vmatpush2.msra.mxu0 0.0
        %1053 = vmatprep.subr.mxu0 0.0
        %1054 = vmatpush2.msra.mxu0 0.0
        %1055 = vmatprep.subr.mxu0 0.0
        %1056 = vmatpush2.msra.mxu0 0.0
        %1057 = vmatprep.subr.mxu0 0.0
        %1058 = vmatpush2.msra.mxu0 0.0
        %1059 = vmatprep.subr.mxu0 0.0
        %1060 = vmatpush2.msra.mxu0 0.0
        %1061 = vmatprep.subr.mxu0 0.0
        %1062 = vmatpush2.msra.mxu0 0.0
        %1063 = vmatprep.subr.mxu0 0.0
        %1064 = vmatpush2.msra.mxu0 0.0
        %1065 = vmatprep.subr.mxu0 0.0
        %1066 = vmatpush2.msra.mxu0 0.0
        %1067 = vmatprep.subr.mxu0 0.0
        %1068 = vmatpush2.msra.mxu0 0.0
        %1069 = vmatprep.subr.mxu0 0.0
        %1070 = vmatpush2.msra.mxu0 0.0
        %1071 = vmatprep.subr.mxu0 0.0
        %1072 = vmatpush2.msra.mxu0 0.0
        %1073 = vmatprep.subr.mxu0 0.0
        %1074 = vmatpush2.msra.mxu0 0.0
        %1075 = vmatprep.subr.mxu0 0.0
        %1076 = vmatpush2.msra.mxu0 0.0
        %1077 = vmatprep.subr.mxu0 0.0
        %1078 = vmatpush2.msra.mxu0 0.0
        %1079 = vmatprep.mubr.f32.mxu0 0.0
        %1080 = vmatmul.mubr.f32.gmra.mxu0 %v1013
        %v1081 = vpop.f32.mrf.mxu0
        %v1082 = vadd.f32 0.0, %v1081
        %v1083 = vpop.f32.mrf.mxu0
        %1084 = vdwg.mxu0
        %v1086 = vsel %vm967, %v1009, 0
        %1088 = vmatprep.subr.mxu0 0.0
        %1089 = vmatpush1.msra.mxu0 0.0
        %1090 = vmatprep.subr.mxu0 0.0
        %1091 = vmatpush1.msra.mxu0 0.0
        %1092 = vmatprep.subr.mxu0 0.0
        %1093 = vmatpush1.msra.mxu0 0.0
        %1094 = vmatprep.subr.mxu0 0.0
        %1095 = vmatpush1.msra.mxu0 0.0
        %1096 = vmatprep.subr.mxu0 0.0
        %1097 = vmatpush1.msra.mxu0 0.0
        %1098 = vmatprep.subr.mxu0 0.0
        %1099 = vmatpush1.msra.mxu0 0.0
        %1100 = vmatprep.subr.mxu0 0.0
        %1101 = vmatpush1.msra.mxu0 0.0
        %1102 = vmatprep.subr.mxu0 0.0
        %1103 = vmatpush1.msra.mxu0 0.0
        %1104 = vmatprep.subr.mxu0 0.0
        %1105 = vmatpush1.msra.mxu0 0.0
        %1106 = vmatprep.subr.mxu0 0.0
        %1107 = vmatpush1.msra.mxu0 0.0
        %1108 = vmatprep.subr.mxu0 0.0
        %1109 = vmatpush1.msra.mxu0 0.0
        %1110 = vmatprep.subr.mxu0 0.0
        %1111 = vmatpush1.msra.mxu0 0.0
        %1112 = vmatprep.subr.mxu0 0.0
        %1113 = vmatpush1.msra.mxu0 0.0
        %1114 = vmatprep.subr.mxu0 0.0
        %1115 = vmatpush1.msra.mxu0 0.0
        %1116 = vmatprep.subr.mxu0 0.0
        %1117 = vmatpush1.msra.mxu0 0.0
        %1118 = vmatprep.subr.mxu0 0.0
        %1119 = vmatpush1.msra.mxu0 %v662
        %1120 = vmatprep.subr.mxu0 0.0
        %1121 = vmatpush2.msra.mxu0 0.0
        %1122 = vmatprep.subr.mxu0 0.0
        %1123 = vmatpush2.msra.mxu0 0.0
        %1124 = vmatprep.subr.mxu0 0.0
        %1125 = vmatpush2.msra.mxu0 0.0
        %1126 = vmatprep.subr.mxu0 0.0
        %1127 = vmatpush2.msra.mxu0 0.0
        %1128 = vmatprep.subr.mxu0 0.0
        %1129 = vmatpush2.msra.mxu0 0.0
        %1130 = vmatprep.subr.mxu0 0.0
        %1131 = vmatpush2.msra.mxu0 0.0
        %1132 = vmatprep.subr.mxu0 0.0
        %1133 = vmatpush2.msra.mxu0 0.0
        %1134 = vmatprep.subr.mxu0 0.0
        %1135 = vmatpush2.msra.mxu0 0.0
        %1136 = vmatprep.subr.mxu0 0.0
        %1137 = vmatpush2.msra.mxu0 0.0
        %1138 = vmatprep.subr.mxu0 0.0
        %1139 = vmatpush2.msra.mxu0 0.0
        %1140 = vmatprep.subr.mxu0 0.0
        %1141 = vmatpush2.msra.mxu0 0.0
        %1142 = vmatprep.subr.mxu0 0.0
        %1143 = vmatpush2.msra.mxu0 0.0
        %1144 = vmatprep.subr.mxu0 0.0
        %1145 = vmatpush2.msra.mxu0 0.0
        %1146 = vmatprep.subr.mxu0 0.0
        %1147 = vmatpush2.msra.mxu0 0.0
        %1148 = vmatprep.subr.mxu0 0.0
        %1149 = vmatpush2.msra.mxu0 0.0
        %1150 = vmatprep.subr.mxu0 0.0
        %1151 = vmatpush2.msra.mxu0 0.0
        %1152 = vmatprep.mubr.f32.mxu0 0.0
        %1153 = vmatmul.mubr.f32.gmra.mxu0 %v1086
        %v1154 = vpop.f32.mrf.mxu0
        %v1155 = vadd.f32 0.0, %v1154
        %v1156 = vpop.f32.mrf.mxu0
        %1157 = vdwg.mxu0
        %v1159 = vsel %vm967, %v1010, 0
        %1161 = vmatprep.subr.mxu0 0.0
        %1162 = vmatpush1.msra.mxu0 0.0
        %1163 = vmatprep.subr.mxu0 0.0
        %1164 = vmatpush1.msra.mxu0 0.0
        %1165 = vmatprep.subr.mxu0 0.0
        %1166 = vmatpush1.msra.mxu0 0.0
        %1167 = vmatprep.subr.mxu0 0.0
        %1168 = vmatpush1.msra.mxu0 0.0
        %1169 = vmatprep.subr.mxu0 0.0
        %1170 = vmatpush1.msra.mxu0 0.0
        %1171 = vmatprep.subr.mxu0 0.0
        %1172 = vmatpush1.msra.mxu0 0.0
        %1173 = vmatprep.subr.mxu0 0.0
        %1174 = vmatpush1.msra.mxu0 0.0
        %1175 = vmatprep.subr.mxu0 0.0
        %1176 = vmatpush1.msra.mxu0 0.0
        %1177 = vmatprep.subr.mxu0 0.0
        %1178 = vmatpush1.msra.mxu0 0.0
        %1179 = vmatprep.subr.mxu0 0.0
        %1180 = vmatpush1.msra.mxu0 0.0
        %1181 = vmatprep.subr.mxu0 0.0
        %1182 = vmatpush1.msra.mxu0 0.0
        %1183 = vmatprep.subr.mxu0 0.0
        %1184 = vmatpush1.msra.mxu0 0.0
        %1185 = vmatprep.subr.mxu0 0.0
        %1186 = vmatpush1.msra.mxu0 0.0
        %1187 = vmatprep.subr.mxu0 0.0
        %1188 = vmatpush1.msra.mxu0 0.0
        %1189 = vmatprep.subr.mxu0 0.0
        %1190 = vmatpush1.msra.mxu0 0.0
        %1191 = vmatprep.subr.mxu0 0.0
        %1192 = vmatpush1.msra.mxu0 %v665
        %1193 = vmatprep.subr.mxu0 0.0
        %1194 = vmatpush2.msra.mxu0 0.0
        %1195 = vmatprep.subr.mxu0 0.0
        %1196 = vmatpush2.msra.mxu0 0.0
        %1197 = vmatprep.subr.mxu0 0.0
        %1198 = vmatpush2.msra.mxu0 0.0
        %1199 = vmatprep.subr.mxu0 0.0
        %1200 = vmatpush2.msra.mxu0 0.0
        %1201 = vmatprep.subr.mxu0 0.0
        %1202 = vmatpush2.msra.mxu0 0.0
        %1203 = vmatprep.subr.mxu0 0.0
        %1204 = vmatpush2.msra.mxu0 0.0
        %1205 = vmatprep.subr.mxu0 0.0
        %1206 = vmatpush2.msra.mxu0 0.0
        %1207 = vmatprep.subr.mxu0 0.0
        %1208 = vmatpush2.msra.mxu0 0.0
        %1209 = vmatprep.subr.mxu0 0.0
        %1210 = vmatpush2.msra.mxu0 0.0
        %1211 = vmatprep.subr.mxu0 0.0
        %1212 = vmatpush2.msra.mxu0 0.0
        %1213 = vmatprep.subr.mxu0 0.0
        %1214 = vmatpush2.msra.mxu0 0.0
        %1215 = vmatprep.subr.mxu0 0.0
        %1216 = vmatpush2.msra.mxu0 0.0
        %1217 = vmatprep.subr.mxu0 0.0
        %1218 = vmatpush2.msra.mxu0 0.0
        %1219 = vmatprep.subr.mxu0 0.0
        %1220 = vmatpush2.msra.mxu0 0.0
        %1221 = vmatprep.subr.mxu0 0.0
        %1222 = vmatpush2.msra.mxu0 0.0
        %1223 = vmatprep.subr.mxu0 0.0
        %1224 = vmatpush2.msra.mxu0 0.0
        %1225 = vmatprep.mubr.f32.mxu0 0.0
        %1226 = vmatmul.mubr.f32.gmra.mxu0 %v1159
        %v1227 = vpop.f32.mrf.mxu0
        %v1228 = vadd.f32 0.0, %v1227
        %v1229 = vpop.f32.mrf.mxu0
        %1230 = vdwg.mxu0
        %v1232 = vsel %vm967, %v1011, 0
        %1234 = vmatprep.subr.mxu0 0.0
        %1235 = vmatpush1.msra.mxu0 0.0
        %1236 = vmatprep.subr.mxu0 0.0
        %1237 = vmatpush1.msra.mxu0 0.0
        %1238 = vmatprep.subr.mxu0 0.0
        %1239 = vmatpush1.msra.mxu0 0.0
        %1240 = vmatprep.subr.mxu0 0.0
        %1241 = vmatpush1.msra.mxu0 0.0
        %1242 = vmatprep.subr.mxu0 0.0
        %1243 = vmatpush1.msra.mxu0 0.0
        %1244 = vmatprep.subr.mxu0 0.0
        %1245 = vmatpush1.msra.mxu0 0.0
        %1246 = vmatprep.subr.mxu0 0.0
        %1247 = vmatpush1.msra.mxu0 0.0
        %1248 = vmatprep.subr.mxu0 0.0
        %1249 = vmatpush1.msra.mxu0 0.0
        %1250 = vmatprep.subr.mxu0 0.0
        %1251 = vmatpush1.msra.mxu0 0.0
        %1252 = vmatprep.subr.mxu0 0.0
        %1253 = vmatpush1.msra.mxu0 0.0
        %1254 = vmatprep.subr.mxu0 0.0
        %1255 = vmatpush1.msra.mxu0 0.0
        %1256 = vmatprep.subr.mxu0 0.0
        %1257 = vmatpush1.msra.mxu0 0.0
        %1258 = vmatprep.subr.mxu0 0.0
        %1259 = vmatpush1.msra.mxu0 0.0
        %1260 = vmatprep.subr.mxu0 0.0
        %1261 = vmatpush1.msra.mxu0 0.0
        %1262 = vmatprep.subr.mxu0 0.0
        %1263 = vmatpush1.msra.mxu0 0.0
        %1264 = vmatprep.subr.mxu0 0.0
        %1265 = vmatpush1.msra.mxu0 %v668
        %1266 = vmatprep.subr.mxu0 0.0
        %1267 = vmatpush2.msra.mxu0 0.0
        %1268 = vmatprep.subr.mxu0 0.0
        %1269 = vmatpush2.msra.mxu0 0.0
        %1270 = vmatprep.subr.mxu0 0.0
        %1271 = vmatpush2.msra.mxu0 0.0
        %1272 = vmatprep.subr.mxu0 0.0
        %1273 = vmatpush2.msra.mxu0 0.0
        %1274 = vmatprep.subr.mxu0 0.0
        %1275 = vmatpush2.msra.mxu0 0.0
        %1276 = vmatprep.subr.mxu0 0.0
        %1277 = vmatpush2.msra.mxu0 0.0
        %1278 = vmatprep.subr.mxu0 0.0
        %1279 = vmatpush2.msra.mxu0 0.0
        %1280 = vmatprep.subr.mxu0 0.0
        %1281 = vmatpush2.msra.mxu0 0.0
        %1282 = vmatprep.subr.mxu0 0.0
        %1283 = vmatpush2.msra.mxu0 0.0
        %1284 = vmatprep.subr.mxu0 0.0
        %1285 = vmatpush2.msra.mxu0 0.0
        %1286 = vmatprep.subr.mxu0 0.0
        %1287 = vmatpush2.msra.mxu0 0.0
        %1288 = vmatprep.subr.mxu0 0.0
        %1289 = vmatpush2.msra.mxu0 0.0
        %1290 = vmatprep.subr.mxu0 0.0
        %1291 = vmatpush2.msra.mxu0 0.0
        %1292 = vmatprep.subr.mxu0 0.0
        %1293 = vmatpush2.msra.mxu0 0.0
        %1294 = vmatprep.subr.mxu0 0.0
        %1295 = vmatpush2.msra.mxu0 0.0
        %1296 = vmatprep.subr.mxu0 0.0
        %1297 = vmatpush2.msra.mxu0 0.0
        %1298 = vmatprep.mubr.f32.mxu0 0.0
        %1299 = vmatmul.mubr.f32.gmra.mxu0 %v1232
        %v1300 = vpop.f32.mrf.mxu0
        %v1301 = vadd.f32 0.0, %v1300
        %v1302 = vpop.f32.mrf.mxu0
        %1303 = vdwg.mxu0
        %1305 = vrot.lane.b32.xlu0 %v1155, 32
        %v1306 = vpop.permute.xlu0 %1305
        %1309 = vrot.lane.b32.xlu0 %v1228, 64
        %v1310 = vpop.permute.xlu0 %1309
        %1313 = vrot.lane.b32.xlu0 %v1301, 96
        %v1314 = vpop.permute.xlu0 %1313
        %v1316 = vsel %vm670, %v1082, %v1306
        %vm1317 = vcmask 523264
        %v1318 = vsel %vm1317, %v1316, %v1310
        %vm1319 = vcmask 785408
        %v1320 = vsel %vm1319, %v1318, %v1314
        %v1321 = vpack.c.bf16 %v1320, %v1320
        %v1322 = vld [vmem:[#allocation5 + $0xc] sm:$0xf]
        %v1323 = vld [vmem:[#allocation5 + $0x34] sm:$0xf]
        %v1324 = vld [vmem:[#allocation5 + $0x5c] sm:$0xf]
        %v1325 = vld [vmem:[#allocation5 + $0x84] sm:$0xf]
        %v1326 = vld [vmem:[#allocation5 + $0xac] sm:$0xf]
        %v1327 = vld [vmem:[#allocation5 + $0xd4] sm:$0xf]
        %v1328 = vld [vmem:[#allocation5 + $0xfc] sm:$0xf]
        %v1329 = vld [vmem:[#allocation5 + $0x124] sm:$0xf]
        %v1330 = vld [vmem:[#allocation5 + $0x14c] sm:$0xf]
        %v1331 = vld [vmem:[#allocation5 + $0x174] sm:$0xf]
        %v1332 = vld [vmem:[#allocation5 + $0x19c] sm:$0xf]
        %v1333 = vld [vmem:[#allocation5 + $0x1c4] sm:$0xf]
        %v1334 = vld [vmem:[#allocation5 + $0x1ec] sm:$0xf]
        %v1335 = vld [vmem:[#allocation5 + $0x214] sm:$0xf]
        %v1336 = vld [vmem:[#allocation5 + $0x23c] sm:$0xf]
        %v1337 = vld [vmem:[#allocation5 + $0x264] sm:$0xf]
        %v1338 = vld [vmem:[#allocation7 + $0x3] sm:$0x1]
        %v1340 = vlaneseq
        %v1341 = vshrl.u32 %v1340, 7
        %v1342 = vsub.s32 0, %v1341
        %v1343 = vrot.slane %v1338, %v1342
        %v1361 = vunpack.c.l.b16 %v1322
        %v1362 = vunpack.c.l.b16 %v1323
        %v1363 = vunpack.c.l.b16 %v1324
        %v1364 = vunpack.c.l.b16 %v1325
        %v1365 = vunpack.c.l.b16 %v1326
        %v1366 = vunpack.c.l.b16 %v1327
        %v1367 = vunpack.c.l.b16 %v1328
        %v1368 = vunpack.c.l.b16 %v1329
        %v1369 = vunpack.c.l.b16 %v1330
        %v1370 = vunpack.c.l.b16 %v1331
        %v1371 = vunpack.c.l.b16 %v1332
        %v1372 = vunpack.c.l.b16 %v1333
        %v1373 = vunpack.c.l.b16 %v1334
        %v1374 = vunpack.c.l.b16 %v1335
        %v1375 = vunpack.c.l.b16 %v1336
        %v1376 = vunpack.c.l.b16 %v1337
        %v1377 = vpack.c.b16 %v1362, %v1361
        %v1378 = vpack.c.b16 %v1364, %v1363
        %v1379 = vpack.c.b16 %v1366, %v1365
        %v1380 = vpack.c.b16 %v1368, %v1367
        %v1381 = vpack.c.b16 %v1370, %v1369
        %v1382 = vpack.c.b16 %v1372, %v1371
        %v1383 = vpack.c.b16 %v1374, %v1373
        %v1384 = vpack.c.b16 %v1376, %v1375
        %1393 = vmatprep.subr.bf16.mxu0 0
        %1394 = vmatpush1.bf16.msra.mxu0 %v1384
        %1395 = vmatprep.subr.bf16.mxu0 0
        %1396 = vmatpush1.bf16.msra.mxu0 %v1383
        %1397 = vmatprep.subr.bf16.mxu0 0
        %1398 = vmatpush1.bf16.msra.mxu0 %v1382
        %1399 = vmatprep.subr.bf16.mxu0 0
        %1400 = vmatpush1.bf16.msra.mxu0 %v1381
        %1401 = vmatprep.subr.bf16.mxu0 0
        %1402 = vmatpush1.bf16.msra.mxu0 %v1380
        %1403 = vmatprep.subr.bf16.mxu0 0
        %1404 = vmatpush1.bf16.msra.mxu0 %v1379
        %1405 = vmatprep.subr.bf16.mxu0 0
        %1406 = vmatpush1.bf16.msra.mxu0 %v1378
        %1407 = vmatprep.subr.bf16.mxu0 0
        %1408 = vmatpush1.bf16.msra.mxu0 %v1377
        %1409 = vmatprep.subr.bf16.mxu0 0
        %1410 = vmatpush2.bf16.msra.mxu0 0
        %1411 = vmatprep.subr.bf16.mxu0 0
        %1412 = vmatpush2.bf16.msra.mxu0 0
        %1413 = vmatprep.subr.bf16.mxu0 0
        %1414 = vmatpush2.bf16.msra.mxu0 0
        %1415 = vmatprep.subr.bf16.mxu0 0
        %1416 = vmatpush2.bf16.msra.mxu0 0
        %1417 = vmatprep.subr.bf16.mxu0 0
        %1418 = vmatpush2.bf16.msra.mxu0 0
        %1419 = vmatprep.subr.bf16.mxu0 0
        %1420 = vmatpush2.bf16.msra.mxu0 0
        %1421 = vmatprep.subr.bf16.mxu0 0
        %1422 = vmatpush2.bf16.msra.mxu0 0
        %1423 = vmatprep.subr.bf16.mxu0 0
        %1424 = vmatpush2.bf16.msra.mxu0 0
        %1425 = vmatprep.mubr.bf16.mxu0 0
        %1426 = vmatmul.mubr.bf16.gmra.mxu0 %v1321
        %v1427 = vpop.f32.mrf.mxu0
        %v1428 = vadd.f32 %v1343, %v1427
        %v1429 = vpop.f32.mrf.mxu0
        %v1430 = vpop.f32.mrf.mxu0
        %v1431 = vpop.f32.mrf.mxu0
        %1432 = vdwg.mxu0
        %v1433 = vadd.f32 %v383, %v1428
        %1434 = vadd.xlane.f32.xlu0 %v1433
        %v1435 = vpop.xlane.xlu0 %1434
        %v1436 = vrcp.pop 128.0
        %v1437 = vmul.f32 %v1435, %v1436
        %v1438 = vsub.f32 %v1433, %v1437
        %v1439 = vmul.f32 %v1438, %v1438
        %1440 = vadd.xlane.f32.xlu0 %v1439
        %v1441 = vpop.xlane.xlu0 %1440
        %v1442 = vmul.f32 %v1441, %v1436
        %v1443 = vadd.f32 %v1442, 1e-05
        %v1444 = vrsqrt.pop %v1443
        %v1445 = vmul.f32 %v1438, %v1444
        %v1446 = vlaneseq
        %v1447 = vshrl.u32 %v1446, 7
        %v1448 = vsub.s32 0, %v1447
        %v1449 = vrot.slane %v386, %v1448
        %v1450 = vmul.f32 %v1445, %v1449
        %v1451 = vlaneseq
        %v1452 = vshrl.u32 %v1451, 7
        %v1453 = vsub.s32 1, %v1452
        %v1454 = vrot.slane %v386, %v1453
        %v1455 = vadd.f32 %v1450, %v1454
        %v1456 = vpack.c.bf16 %v1455, %v1455
        %v1457 = vld [vmem:[#allocation5 + $0x10] sm:$0xf]
        %v1458 = vld [vmem:[#allocation5 + $0x38] sm:$0xf]
        %v1459 = vld [vmem:[#allocation5 + $0x60] sm:$0xf]
        %v1460 = vld [vmem:[#allocation5 + $0x88] sm:$0xf]
        %v1461 = vld [vmem:[#allocation5 + $0xb0] sm:$0xf]
        %v1462 = vld [vmem:[#allocation5 + $0xd8] sm:$0xf]
        %v1463 = vld [vmem:[#allocation5 + $0x100] sm:$0xf]
        %v1464 = vld [vmem:[#allocation5 + $0x128] sm:$0xf]
        %v1465 = vld [vmem:[#allocation5 + $0x150] sm:$0xf]
        %v1466 = vld [vmem:[#allocation5 + $0x178] sm:$0xf]
        %v1467 = vld [vmem:[#allocation5 + $0x1a0] sm:$0xf]
        %v1468 = vld [vmem:[#allocation5 + $0x1c8] sm:$0xf]
        %v1469 = vld [vmem:[#allocation5 + $0x1f0] sm:$0xf]
        %v1470 = vld [vmem:[#allocation5 + $0x218] sm:$0xf]
        %v1471 = vld [vmem:[#allocation5 + $0x240] sm:$0xf]
        %v1472 = vld [vmem:[#allocation5 + $0x268] sm:$0xf]
        %v1473 = vld [vmem:[#allocation7 + $0x4] sm:$0x1]
        %v1475 = vlaneseq
        %v1476 = vshrl.u32 %v1475, 7
        %v1477 = vsub.s32 0, %v1476
        %v1478 = vrot.slane %v1473, %v1477
        %v1496 = vunpack.c.l.b16 %v1457
        %v1497 = vunpack.c.l.b16 %v1458
        %v1498 = vunpack.c.l.b16 %v1459
        %v1499 = vunpack.c.l.b16 %v1460
        %v1500 = vunpack.c.l.b16 %v1461
        %v1501 = vunpack.c.l.b16 %v1462
        %v1502 = vunpack.c.l.b16 %v1463
        %v1503 = vunpack.c.l.b16 %v1464
        %v1504 = vunpack.c.l.b16 %v1465
        %v1505 = vunpack.c.l.b16 %v1466
        %v1506 = vunpack.c.l.b16 %v1467
        %v1507 = vunpack.c.l.b16 %v1468
        %v1508 = vunpack.c.l.b16 %v1469
        %v1509 = vunpack.c.l.b16 %v1470
        %v1510 = vunpack.c.l.b16 %v1471
        %v1511 = vunpack.c.l.b16 %v1472
        %v1512 = vpack.c.b16 %v1497, %v1496
        %v1513 = vpack.c.b16 %v1499, %v1498
        %v1514 = vpack.c.b16 %v1501, %v1500
        %v1515 = vpack.c.b16 %v1503, %v1502
        %v1516 = vpack.c.b16 %v1505, %v1504
        %v1517 = vpack.c.b16 %v1507, %v1506
        %v1518 = vpack.c.b16 %v1509, %v1508
        %v1519 = vpack.c.b16 %v1511, %v1510
        %1528 = vmatprep.subr.bf16.mxu0 0
        %1529 = vmatpush1.bf16.msra.mxu0 %v1519
        %1530 = vmatprep.subr.bf16.mxu0 0
        %1531 = vmatpush1.bf16.msra.mxu0 %v1518
        %1532 = vmatprep.subr.bf16.mxu0 0
        %1533 = vmatpush1.bf16.msra.mxu0 %v1517
        %1534 = vmatprep.subr.bf16.mxu0 0
        %1535 = vmatpush1.bf16.msra.mxu0 %v1516
        %1536 = vmatprep.subr.bf16.mxu0 0
        %1537 = vmatpush1.bf16.msra.mxu0 %v1515
        %1538 = vmatprep.subr.bf16.mxu0 0
        %1539 = vmatpush1.bf16.msra.mxu0 %v1514
        %1540 = vmatprep.subr.bf16.mxu0 0
        %1541 = vmatpush1.bf16.msra.mxu0 %v1513
        %1542 = vmatprep.subr.bf16.mxu0 0
        %1543 = vmatpush1.bf16.msra.mxu0 %v1512
        %1544 = vmatprep.subr.bf16.mxu0 0
        %1545 = vmatpush2.bf16.msra.mxu0 0
        %1546 = vmatprep.subr.bf16.mxu0 0
        %1547 = vmatpush2.bf16.msra.mxu0 0
        %1548 = vmatprep.subr.bf16.mxu0 0
        %1549 = vmatpush2.bf16.msra.mxu0 0
        %1550 = vmatprep.subr.bf16.mxu0 0
        %1551 = vmatpush2.bf16.msra.mxu0 0
        %1552 = vmatprep.subr.bf16.mxu0 0
        %1553 = vmatpush2.bf16.msra.mxu0 0
        %1554 = vmatprep.subr.bf16.mxu0 0
        %1555 = vmatpush2.bf16.msra.mxu0 0
        %1556 = vmatprep.subr.bf16.mxu0 0
        %1557 = vmatpush2.bf16.msra.mxu0 0
        %1558 = vmatprep.subr.bf16.mxu0 0
        %1559 = vmatpush2.bf16.msra.mxu0 0
        %1560 = vmatprep.mubr.bf16.mxu0 0
        %1561 = vmatmul.mubr.bf16.gmra.mxu0 %v1456
        %v1562 = vpop.f32.mrf.mxu0
        %v1563 = vadd.f32 %v1478, %v1562
        %v1564 = vpop.f32.mrf.mxu0
        %v1565 = vpop.f32.mrf.mxu0
        %v1566 = vpop.f32.mrf.mxu0
        %1567 = vdwg.mxu0
        %v1568 = vld [vmem:[#allocation5 + $0x14] sm:$0xff]
        %v1569 = vld [vmem:[#allocation5 + $0x3c] sm:$0xff]
        %v1570 = vld [vmem:[#allocation5 + $0x64] sm:$0xff]
        %v1571 = vld [vmem:[#allocation5 + $0x8c] sm:$0xff]
        %v1572 = vld [vmem:[#allocation5 + $0xb4] sm:$0xff]
        %v1573 = vld [vmem:[#allocation5 + $0xdc] sm:$0xff]
        %v1574 = vld [vmem:[#allocation5 + $0x104] sm:$0xff]
        %v1575 = vld [vmem:[#allocation5 + $0x12c] sm:$0xff]
        %v1576 = vld [vmem:[#allocation5 + $0x154] sm:$0xff]
        %v1577 = vld [vmem:[#allocation5 + $0x17c] sm:$0xff]
        %v1578 = vld [vmem:[#allocation5 + $0x1a4] sm:$0xff]
        %v1579 = vld [vmem:[#allocation5 + $0x1cc] sm:$0xff]
        %v1580 = vld [vmem:[#allocation5 + $0x1f4] sm:$0xff]
        %v1581 = vld [vmem:[#allocation5 + $0x21c] sm:$0xff]
        %v1582 = vld [vmem:[#allocation5 + $0x244] sm:$0xff]
        %v1583 = vld [vmem:[#allocation5 + $0x26c] sm:$0xff]
        %v1584 = vld [vmem:[#allocation7 + $0x5] sm:$0x3]
        %v1586 = vlaneseq
        %v1587 = vshrl.u32 %v1586, 7
        %v1588 = vsub.s32 0, %v1587
        %v1589 = vrot.slane %v1584, %v1588
        %v1590 = vlaneseq
        %v1591 = vshrl.u32 %v1590, 7
        %v1592 = vsub.s32 1, %v1591
        %v1593 = vrot.slane %v1584, %v1592
        %v1612 = vunpack.c.l.b16 %v1568
        %v1613 = vunpack.c.h.b16 %v1568
        %v1614 = vunpack.c.l.b16 %v1569
        %v1615 = vunpack.c.h.b16 %v1569
        %v1616 = vunpack.c.l.b16 %v1570
        %v1617 = vunpack.c.h.b16 %v1570
        %v1618 = vunpack.c.l.b16 %v1571
        %v1619 = vunpack.c.h.b16 %v1571
        %v1620 = vunpack.c.l.b16 %v1572
        %v1621 = vunpack.c.h.b16 %v1572
        %v1622 = vunpack.c.l.b16 %v1573
        %v1623 = vunpack.c.h.b16 %v1573
        %v1624 = vunpack.c.l.b16 %v1574
        %v1625 = vunpack.c.h.b16 %v1574
        %v1626 = vunpack.c.l.b16 %v1575
        %v1627 = vunpack.c.h.b16 %v1575
        %v1628 = vunpack.c.l.b16 %v1576
        %v1629 = vunpack.c.h.b16 %v1576
        %v1630 = vunpack.c.l.b16 %v1577
        %v1631 = vunpack.c.h.b16 %v1577
        %v1632 = vunpack.c.l.b16 %v1578
        %v1633 = vunpack.c.h.b16 %v1578
        %v1634 = vunpack.c.l.b16 %v1579
        %v1635 = vunpack.c.h.b16 %v1579
        %v1636 = vunpack.c.l.b16 %v1580
        %v1637 = vunpack.c.h.b16 %v1580
        %v1638 = vunpack.c.l.b16 %v1581
        %v1639 = vunpack.c.h.b16 %v1581
        %v1640 = vunpack.c.l.b16 %v1582
        %v1641 = vunpack.c.h.b16 %v1582
        %v1642 = vunpack.c.l.b16 %v1583
        %v1643 = vunpack.c.h.b16 %v1583
        %v1644 = vpack.c.b16 %v1614, %v1612
        %v1645 = vpack.c.b16 %v1615, %v1613
        %v1646 = vpack.c.b16 %v1618, %v1616
        %v1647 = vpack.c.b16 %v1619, %v1617
        %v1648 = vpack.c.b16 %v1622, %v1620
        %v1649 = vpack.c.b16 %v1623, %v1621
        %v1650 = vpack.c.b16 %v1626, %v1624
        %v1651 = vpack.c.b16 %v1627, %v1625
        %v1652 = vpack.c.b16 %v1630, %v1628
        %v1653 = vpack.c.b16 %v1631, %v1629
        %v1654 = vpack.c.b16 %v1634, %v1632
        %v1655 = vpack.c.b16 %v1635, %v1633
        %v1656 = vpack.c.b16 %v1638, %v1636
        %v1657 = vpack.c.b16 %v1639, %v1637
        %v1658 = vpack.c.b16 %v1642, %v1640
        %v1659 = vpack.c.b16 %v1643, %v1641
        %1676 = vmatprep.subr.bf16.mxu0 %v1659
        %1677 = vmatpush1.bf16.msra.mxu0 %v1658
        %1678 = vmatprep.subr.bf16.mxu0 %v1657
        %1679 = vmatpush1.bf16.msra.mxu0 %v1656
        %1680 = vmatprep.subr.bf16.mxu0 %v1655
        %1681 = vmatpush1.bf16.msra.mxu0 %v1654
        %1682 = vmatprep.subr.bf16.mxu0 %v1653
        %1683 = vmatpush1.bf16.msra.mxu0 %v1652
        %1684 = vmatprep.subr.bf16.mxu0 %v1651
        %1685 = vmatpush1.bf16.msra.mxu0 %v1650
        %1686 = vmatprep.subr.bf16.mxu0 %v1649
        %1687 = vmatpush1.bf16.msra.mxu0 %v1648
        %1688 = vmatprep.subr.bf16.mxu0 %v1647
        %1689 = vmatpush1.bf16.msra.mxu0 %v1646
        %1690 = vmatprep.subr.bf16.mxu0 %v1645
        %1691 = vmatpush1.bf16.msra.mxu0 %v1644
        %1692 = vmatprep.subr.bf16.mxu0 0
        %1693 = vmatpush2.bf16.msra.mxu0 0
        %1694 = vmatprep.subr.bf16.mxu0 0
        %1695 = vmatpush2.bf16.msra.mxu0 0
        %1696 = vmatprep.subr.bf16.mxu0 0
        %1697 = vmatpush2.bf16.msra.mxu0 0
        %1698 = vmatprep.subr.bf16.mxu0 0
        %1699 = vmatpush2.bf16.msra.mxu0 0
        %1700 = vmatprep.subr.bf16.mxu0 0
        %1701 = vmatpush2.bf16.msra.mxu0 0
        %1702 = vmatprep.subr.bf16.mxu0 0
        %1703 = vmatpush2.bf16.msra.mxu0 0
        %1704 = vmatprep.subr.bf16.mxu0 0
        %1705 = vmatpush2.bf16.msra.mxu0 0
        %1706 = vmatprep.subr.bf16.mxu0 0
        %1707 = vmatpush2.bf16.msra.mxu0 0
        %1708 = vmatprep.mubr.bf16.mxu0 0
        %1709 = vmatmul.mubr.bf16.gmra.mxu0 %v385
        %v1710 = vpop.f32.mrf.mxu0
        %v1711 = vadd.f32 %v1589, %v1710
        %v1712 = vpop.f32.mrf.mxu0
        %v1713 = vadd.f32 %v1593, %v1712
        %v1714 = vpop.f32.mrf.mxu0
        %v1715 = vpop.f32.mrf.mxu0
        %1716 = vdwg.mxu0
        %1718 = vrot.lane.b32.xlu0 %v1563, 96
        %v1719 = vpop.permute.xlu0 %1718
        %1720 = vrot.lane.b32.xlu0 %v1563, 64
        %v1721 = vpop.permute.xlu0 %1720
        %1722 = vrot.lane.b32.xlu0 %v1563, 32
        %v1723 = vpop.permute.xlu0 %1722
        %1725 = vrot.lane.b32.xlu0 %v1711, 96
        %v1726 = vpop.permute.xlu0 %1725
        %1727 = vrot.lane.b32.xlu0 %v1711, 64
        %v1728 = vpop.permute.xlu0 %1727
        %1729 = vrot.lane.b32.xlu0 %v1711, 32
        %v1730 = vpop.permute.xlu0 %1729
        %1732 = vrot.lane.b32.xlu0 %v1713, 96
        %v1733 = vpop.permute.xlu0 %1732
        %1735 = vrot.lane.b32.xlu0 %v1713, 64
        %v1736 = vpop.permute.xlu0 %1735
        %1738 = vrot.lane.b32.xlu0 %v1713, 32
        %v1739 = vpop.permute.xlu0 %1738
        %v1741 = vsel %vm670, %v1563, 0
        %v1743 = vsel %vm670, %v1711, 0
        %1745 = vmatprep.subr.mxu0 0.0
        %1746 = vmatpush1.xpose.msra.mxu0 0.0
        %1747 = vmatprep.subr.mxu0 0.0
        %1748 = vmatpush1.xpose.msra.mxu0 0.0
        %1749 = vmatprep.subr.mxu0 0.0
        %1750 = vmatpush1.xpose.msra.mxu0 0.0
        %1751 = vmatprep.subr.mxu0 0.0
        %1752 = vmatpush1.xpose.msra.mxu0 0.0
        %1753 = vmatprep.subr.mxu0 0.0
        %1754 = vmatpush1.xpose.msra.mxu0 0.0
        %1755 = vmatprep.subr.mxu0 0.0
        %1756 = vmatpush1.xpose.msra.mxu0 0.0
        %1757 = vmatprep.subr.mxu0 0.0
        %1758 = vmatpush1.xpose.msra.mxu0 0.0
        %1759 = vmatprep.subr.mxu0 0.0
        %1760 = vmatpush1.xpose.msra.mxu0 0.0
        %1761 = vmatprep.subr.mxu0 0.0
        %1762 = vmatpush1.xpose.msra.mxu0 0.0
        %1763 = vmatprep.subr.mxu0 0.0
        %1764 = vmatpush1.xpose.msra.mxu0 0.0
        %1765 = vmatprep.subr.mxu0 0.0
        %1766 = vmatpush1.xpose.msra.mxu0 0.0
        %1767 = vmatprep.subr.mxu0 0.0
        %1768 = vmatpush1.xpose.msra.mxu0 0.0
        %1769 = vmatprep.subr.mxu0 0.0
        %1770 = vmatpush1.xpose.msra.mxu0 0.0
        %1771 = vmatprep.subr.mxu0 0.0
        %1772 = vmatpush1.xpose.msra.mxu0 0.0
        %1773 = vmatprep.subr.mxu0 0.0
        %1774 = vmatpush1.xpose.msra.mxu0 0.0
        %1775 = vmatprep.subr.mxu0 0.0
        %1776 = vmatpush1.xpose.msra.mxu0 %v1743
        %1777 = vmatprep.subr.mxu0 0.0
        %1778 = vmatpush2.xpose.msra.mxu0 0.0
        %1779 = vmatprep.subr.mxu0 0.0
        %1780 = vmatpush2.xpose.msra.mxu0 0.0
        %1781 = vmatprep.subr.mxu0 0.0
        %1782 = vmatpush2.xpose.msra.mxu0 0.0
        %1783 = vmatprep.subr.mxu0 0.0
        %1784 = vmatpush2.xpose.msra.mxu0 0.0
        %1785 = vmatprep.subr.mxu0 0.0
        %1786 = vmatpush2.xpose.msra.mxu0 0.0
        %1787 = vmatprep.subr.mxu0 0.0
        %1788 = vmatpush2.xpose.msra.mxu0 0.0
        %1789 = vmatprep.subr.mxu0 0.0
        %1790 = vmatpush2.xpose.msra.mxu0 0.0
        %1791 = vmatprep.subr.mxu0 0.0
        %1792 = vmatpush2.xpose.msra.mxu0 0.0
        %1793 = vmatprep.subr.mxu0 0.0
        %1794 = vmatpush2.xpose.msra.mxu0 0.0
        %1795 = vmatprep.subr.mxu0 0.0
        %1796 = vmatpush2.xpose.msra.mxu0 0.0
        %1797 = vmatprep.subr.mxu0 0.0
        %1798 = vmatpush2.xpose.msra.mxu0 0.0
        %1799 = vmatprep.subr.mxu0 0.0
        %1800 = vmatpush2.xpose.msra.mxu0 0.0
        %1801 = vmatprep.subr.mxu0 0.0
        %1802 = vmatpush2.xpose.msra.mxu0 0.0
        %1803 = vmatprep.subr.mxu0 0.0
        %1804 = vmatpush2.xpose.msra.mxu0 0.0
        %1805 = vmatprep.subr.mxu0 0.0
        %1806 = vmatpush2.xpose.msra.mxu0 0.0
        %1807 = vmatprep.subr.mxu0 0.0
        %1808 = vmatpush2.xpose.msra.mxu0 0.0
        %1809 = vmatprep.mubr.f32.mxu0 0.0
        %1810 = vmatmul.mubr.f32.gmra.mxu0 %v1741
        %v1811 = vpop.f32.mrf.mxu0
        %v1812 = vadd.f32 0.0, %v1811
        %v1813 = vpop.f32.mrf.mxu0
        %1814 = vdwg.mxu0
        %v1815 = vsel %vm670, %v1719, 0
        %v1817 = vsel %vm670, %v1726, 0
        %1819 = vmatprep.subr.mxu0 0.0
        %1820 = vmatpush1.xpose.msra.mxu0 0.0
        %1821 = vmatprep.subr.mxu0 0.0
        %1822 = vmatpush1.xpose.msra.mxu0 0.0
        %1823 = vmatprep.subr.mxu0 0.0
        %1824 = vmatpush1.xpose.msra.mxu0 0.0
        %1825 = vmatprep.subr.mxu0 0.0
        %1826 = vmatpush1.xpose.msra.mxu0 0.0
        %1827 = vmatprep.subr.mxu0 0.0
        %1828 = vmatpush1.xpose.msra.mxu0 0.0
        %1829 = vmatprep.subr.mxu0 0.0
        %1830 = vmatpush1.xpose.msra.mxu0 0.0
        %1831 = vmatprep.subr.mxu0 0.0
        %1832 = vmatpush1.xpose.msra.mxu0 0.0
        %1833 = vmatprep.subr.mxu0 0.0
        %1834 = vmatpush1.xpose.msra.mxu0 0.0
        %1835 = vmatprep.subr.mxu0 0.0
        %1836 = vmatpush1.xpose.msra.mxu0 0.0
        %1837 = vmatprep.subr.mxu0 0.0
        %1838 = vmatpush1.xpose.msra.mxu0 0.0
        %1839 = vmatprep.subr.mxu0 0.0
        %1840 = vmatpush1.xpose.msra.mxu0 0.0
        %1841 = vmatprep.subr.mxu0 0.0
        %1842 = vmatpush1.xpose.msra.mxu0 0.0
        %1843 = vmatprep.subr.mxu0 0.0
        %1844 = vmatpush1.xpose.msra.mxu0 0.0
        %1845 = vmatprep.subr.mxu0 0.0
        %1846 = vmatpush1.xpose.msra.mxu0 0.0
        %1847 = vmatprep.subr.mxu0 0.0
        %1848 = vmatpush1.xpose.msra.mxu0 0.0
        %1849 = vmatprep.subr.mxu0 0.0
        %1850 = vmatpush1.xpose.msra.mxu0 %v1817
        %1851 = vmatprep.subr.mxu0 0.0
        %1852 = vmatpush2.xpose.msra.mxu0 0.0
        %1853 = vmatprep.subr.mxu0 0.0
        %1854 = vmatpush2.xpose.msra.mxu0 0.0
        %1855 = vmatprep.subr.mxu0 0.0
        %1856 = vmatpush2.xpose.msra.mxu0 0.0
        %1857 = vmatprep.subr.mxu0 0.0
        %1858 = vmatpush2.xpose.msra.mxu0 0.0
        %1859 = vmatprep.subr.mxu0 0.0
        %1860 = vmatpush2.xpose.msra.mxu0 0.0
        %1861 = vmatprep.subr.mxu0 0.0
        %1862 = vmatpush2.xpose.msra.mxu0 0.0
        %1863 = vmatprep.subr.mxu0 0.0
        %1864 = vmatpush2.xpose.msra.mxu0 0.0
        %1865 = vmatprep.subr.mxu0 0.0
        %1866 = vmatpush2.xpose.msra.mxu0 0.0
        %1867 = vmatprep.subr.mxu0 0.0
        %1868 = vmatpush2.xpose.msra.mxu0 0.0
        %1869 = vmatprep.subr.mxu0 0.0
        %1870 = vmatpush2.xpose.msra.mxu0 0.0
        %1871 = vmatprep.subr.mxu0 0.0
        %1872 = vmatpush2.xpose.msra.mxu0 0.0
        %1873 = vmatprep.subr.mxu0 0.0
        %1874 = vmatpush2.xpose.msra.mxu0 0.0
        %1875 = vmatprep.subr.mxu0 0.0
        %1876 = vmatpush2.xpose.msra.mxu0 0.0
        %1877 = vmatprep.subr.mxu0 0.0
        %1878 = vmatpush2.xpose.msra.mxu0 0.0
        %1879 = vmatprep.subr.mxu0 0.0
        %1880 = vmatpush2.xpose.msra.mxu0 0.0
        %1881 = vmatprep.subr.mxu0 0.0
        %1882 = vmatpush2.xpose.msra.mxu0 0.0
        %1883 = vmatprep.mubr.f32.mxu0 0.0
        %1884 = vmatmul.mubr.f32.gmra.mxu0 %v1815
        %v1885 = vpop.f32.mrf.mxu0
        %v1886 = vadd.f32 0.0, %v1885
        %v1887 = vpop.f32.mrf.mxu0
        %1888 = vdwg.mxu0
        %v1889 = vsel %vm670, %v1721, 0
        %v1891 = vsel %vm670, %v1728, 0
        %1893 = vmatprep.subr.mxu0 0.0
        %1894 = vmatpush1.xpose.msra.mxu0 0.0
        %1895 = vmatprep.subr.mxu0 0.0
        %1896 = vmatpush1.xpose.msra.mxu0 0.0
        %1897 = vmatprep.subr.mxu0 0.0
        %1898 = vmatpush1.xpose.msra.mxu0 0.0
        %1899 = vmatprep.subr.mxu0 0.0
        %1900 = vmatpush1.xpose.msra.mxu0 0.0
        %1901 = vmatprep.subr.mxu0 0.0
        %1902 = vmatpush1.xpose.msra.mxu0 0.0
        %1903 = vmatprep.subr.mxu0 0.0
        %1904 = vmatpush1.xpose.msra.mxu0 0.0
        %1905 = vmatprep.subr.mxu0 0.0
        %1906 = vmatpush1.xpose.msra.mxu0 0.0
        %1907 = vmatprep.subr.mxu0 0.0
        %1908 = vmatpush1.xpose.msra.mxu0 0.0
        %1909 = vmatprep.subr.mxu0 0.0
        %1910 = vmatpush1.xpose.msra.mxu0 0.0
        %1911 = vmatprep.subr.mxu0 0.0
        %1912 = vmatpush1.xpose.msra.mxu0 0.0
        %1913 = vmatprep.subr.mxu0 0.0
        %1914 = vmatpush1.xpose.msra.mxu0 0.0
        %1915 = vmatprep.subr.mxu0 0.0
        %1916 = vmatpush1.xpose.msra.mxu0 0.0
        %1917 = vmatprep.subr.mxu0 0.0
        %1918 = vmatpush1.xpose.msra.mxu0 0.0
        %1919 = vmatprep.subr.mxu0 0.0
        %1920 = vmatpush1.xpose.msra.mxu0 0.0
        %1921 = vmatprep.subr.mxu0 0.0
        %1922 = vmatpush1.xpose.msra.mxu0 0.0
        %1923 = vmatprep.subr.mxu0 0.0
        %1924 = vmatpush1.xpose.msra.mxu0 %v1891
        %1925 = vmatprep.subr.mxu0 0.0
        %1926 = vmatpush2.xpose.msra.mxu0 0.0
        %1927 = vmatprep.subr.mxu0 0.0
        %1928 = vmatpush2.xpose.msra.mxu0 0.0
        %1929 = vmatprep.subr.mxu0 0.0
        %1930 = vmatpush2.xpose.msra.mxu0 0.0
        %1931 = vmatprep.subr.mxu0 0.0
        %1932 = vmatpush2.xpose.msra.mxu0 0.0
        %1933 = vmatprep.subr.mxu0 0.0
        %1934 = vmatpush2.xpose.msra.mxu0 0.0
        %1935 = vmatprep.subr.mxu0 0.0
        %1936 = vmatpush2.xpose.msra.mxu0 0.0
        %1937 = vmatprep.subr.mxu0 0.0
        %1938 = vmatpush2.xpose.msra.mxu0 0.0
        %1939 = vmatprep.subr.mxu0 0.0
        %1940 = vmatpush2.xpose.msra.mxu0 0.0
        %1941 = vmatprep.subr.mxu0 0.0
        %1942 = vmatpush2.xpose.msra.mxu0 0.0
        %1943 = vmatprep.subr.mxu0 0.0
        %1944 = vmatpush2.xpose.msra.mxu0 0.0
        %1945 = vmatprep.subr.mxu0 0.0
        %1946 = vmatpush2.xpose.msra.mxu0 0.0
        %1947 = vmatprep.subr.mxu0 0.0
        %1948 = vmatpush2.xpose.msra.mxu0 0.0
        %1949 = vmatprep.subr.mxu0 0.0
        %1950 = vmatpush2.xpose.msra.mxu0 0.0
        %1951 = vmatprep.subr.mxu0 0.0
        %1952 = vmatpush2.xpose.msra.mxu0 0.0
        %1953 = vmatprep.subr.mxu0 0.0
        %1954 = vmatpush2.xpose.msra.mxu0 0.0
        %1955 = vmatprep.subr.mxu0 0.0
        %1956 = vmatpush2.xpose.msra.mxu0 0.0
        %1957 = vmatprep.mubr.f32.mxu0 0.0
        %1958 = vmatmul.mubr.f32.gmra.mxu0 %v1889
        %v1959 = vpop.f32.mrf.mxu0
        %v1960 = vadd.f32 0.0, %v1959
        %v1961 = vpop.f32.mrf.mxu0
        %1962 = vdwg.mxu0
        %v1963 = vsel %vm670, %v1723, 0
        %v1965 = vsel %vm670, %v1730, 0
        %1967 = vmatprep.subr.mxu0 0.0
        %1968 = vmatpush1.xpose.msra.mxu0 0.0
        %1969 = vmatprep.subr.mxu0 0.0
        %1970 = vmatpush1.xpose.msra.mxu0 0.0
        %1971 = vmatprep.subr.mxu0 0.0
        %1972 = vmatpush1.xpose.msra.mxu0 0.0
        %1973 = vmatprep.subr.mxu0 0.0
        %1974 = vmatpush1.xpose.msra.mxu0 0.0
        %1975 = vmatprep.subr.mxu0 0.0
        %1976 = vmatpush1.xpose.msra.mxu0 0.0
        %1977 = vmatprep.subr.mxu0 0.0
        %1978 = vmatpush1.xpose.msra.mxu0 0.0
        %1979 = vmatprep.subr.mxu0 0.0
        %1980 = vmatpush1.xpose.msra.mxu0 0.0
        %1981 = vmatprep.subr.mxu0 0.0
        %1982 = vmatpush1.xpose.msra.mxu0 0.0
        %1983 = vmatprep.subr.mxu0 0.0
        %1984 = vmatpush1.xpose.msra.mxu0 0.0
        %1985 = vmatprep.subr.mxu0 0.0
        %1986 = vmatpush1.xpose.msra.mxu0 0.0
        %1987 = vmatprep.subr.mxu0 0.0
        %1988 = vmatpush1.xpose.msra.mxu0 0.0
        %1989 = vmatprep.subr.mxu0 0.0
        %1990 = vmatpush1.xpose.msra.mxu0 0.0
        %1991 = vmatprep.subr.mxu0 0.0
        %1992 = vmatpush1.xpose.msra.mxu0 0.0
        %1993 = vmatprep.subr.mxu0 0.0
        %1994 = vmatpush1.xpose.msra.mxu0 0.0
        %1995 = vmatprep.subr.mxu0 0.0
        %1996 = vmatpush1.xpose.msra.mxu0 0.0
        %1997 = vmatprep.subr.mxu0 0.0
        %1998 = vmatpush1.xpose.msra.mxu0 %v1965
        %1999 = vmatprep.subr.mxu0 0.0
        %2000 = vmatpush2.xpose.msra.mxu0 0.0
        %2001 = vmatprep.subr.mxu0 0.0
        %2002 = vmatpush2.xpose.msra.mxu0 0.0
        %2003 = vmatprep.subr.mxu0 0.0
        %2004 = vmatpush2.xpose.msra.mxu0 0.0
        %2005 = vmatprep.subr.mxu0 0.0
        %2006 = vmatpush2.xpose.msra.mxu0 0.0
        %2007 = vmatprep.subr.mxu0 0.0
        %2008 = vmatpush2.xpose.msra.mxu0 0.0
        %2009 = vmatprep.subr.mxu0 0.0
        %2010 = vmatpush2.xpose.msra.mxu0 0.0
        %2011 = vmatprep.subr.mxu0 0.0
        %2012 = vmatpush2.xpose.msra.mxu0 0.0
        %2013 = vmatprep.subr.mxu0 0.0
        %2014 = vmatpush2.xpose.msra.mxu0 0.0
        %2015 = vmatprep.subr.mxu0 0.0
        %2016 = vmatpush2.xpose.msra.mxu0 0.0
        %2017 = vmatprep.subr.mxu0 0.0
        %2018 = vmatpush2.xpose.msra.mxu0 0.0
        %2019 = vmatprep.subr.mxu0 0.0
        %2020 = vmatpush2.xpose.msra.mxu0 0.0
        %2021 = vmatprep.subr.mxu0 0.0
        %2022 = vmatpush2.xpose.msra.mxu0 0.0
        %2023 = vmatprep.subr.mxu0 0.0
        %2024 = vmatpush2.xpose.msra.mxu0 0.0
        %2025 = vmatprep.subr.mxu0 0.0
        %2026 = vmatpush2.xpose.msra.mxu0 0.0
        %2027 = vmatprep.subr.mxu0 0.0
        %2028 = vmatpush2.xpose.msra.mxu0 0.0
        %2029 = vmatprep.subr.mxu0 0.0
        %2030 = vmatpush2.xpose.msra.mxu0 0.0
        %2031 = vmatprep.mubr.f32.mxu0 0.0
        %2032 = vmatmul.mubr.f32.gmra.mxu0 %v1963
        %v2033 = vpop.f32.mrf.mxu0
        %v2034 = vadd.f32 0.0, %v2033
        %v2035 = vpop.f32.mrf.mxu0
        %2036 = vdwg.mxu0
        %v2037 = vsel %vm967, %v1812, -inf
        %2038 = vmax.xlane.f32.xlu0 %v2037
        %v2039 = vpop.xlane.xlu0 %2038
        %v2040 = vsel %vm967, %v1886, -inf
        %2041 = vmax.xlane.f32.xlu0 %v2040
        %v2042 = vpop.xlane.xlu0 %2041
        %v2043 = vsel %vm967, %v1960, -inf
        %2044 = vmax.xlane.f32.xlu0 %v2043
        %v2045 = vpop.xlane.xlu0 %2044
        %v2046 = vsel %vm967, %v2034, -inf
        %2047 = vmax.xlane.f32.xlu0 %v2046
        %v2048 = vpop.xlane.xlu0 %2047
        %v2049 = vsub.f32 %v1812, %v2039
        %v2050 = vsub.f32 %v1886, %v2042
        %v2051 = vsub.f32 %v1960, %v2045
        %v2052 = vsub.f32 %v2034, %v2048
        %v2053 = vmul.f32 %v2049, 1.442695
        %v2054 = vpow.pop %v2053
        %v2055 = vmul.f32 %v2050, 1.442695
        %v2056 = vpow.pop %v2055
        %v2057 = vmul.f32 %v2051, 1.442695
        %v2058 = vpow.pop %v2057
        %v2059 = vmul.f32 %v2052, 1.442695
        %v2060 = vpow.pop %v2059
        %v2061 = vsel %vm967, %v2054, 0.0
        %2062 = vadd.xlane.f32.xlu0 %v2061
        %v2063 = vpop.xlane.xlu0 %2062
        %v2064 = vsel %vm967, %v2056, 0.0
        %2065 = vadd.xlane.f32.xlu0 %v2064
        %v2066 = vpop.xlane.xlu0 %2065
        %v2067 = vsel %vm967, %v2058, 0.0
        %2068 = vadd.xlane.f32.xlu0 %v2067
        %v2069 = vpop.xlane.xlu0 %2068
        %v2070 = vsel %vm967, %v2060, 0.0
        %2071 = vadd.xlane.f32.xlu0 %v2070
        %v2072 = vpop.xlane.xlu0 %2071
        %v2073 = vrcp.pop %v2063
        %v2074 = vrcp.pop %v2066
        %v2075 = vrcp.pop %v2069
        %v2076 = vrcp.pop %v2072
        %v2077 = vmul.f32 %v2054, %v2073
        %v2078 = vmul.f32 %v2056, %v2074
        %v2079 = vmul.f32 %v2058, %v2075
        %v2080 = vmul.f32 %v2060, %v2076
        %v2082 = vsel %vm967, %v2077, 0
        %2084 = vmatprep.subr.mxu0 0.0
        %2085 = vmatpush1.msra.mxu0 0.0
        %2086 = vmatprep.subr.mxu0 0.0
        %2087 = vmatpush1.msra.mxu0 0.0
        %2088 = vmatprep.subr.mxu0 0.0
        %2089 = vmatpush1.msra.mxu0 0.0
        %2090 = vmatprep.subr.mxu0 0.0
        %2091 = vmatpush1.msra.mxu0 0.0
        %2092 = vmatprep.subr.mxu0 0.0
        %2093 = vmatpush1.msra.mxu0 0.0
        %2094 = vmatprep.subr.mxu0 0.0
        %2095 = vmatpush1.msra.mxu0 0.0
        %2096 = vmatprep.subr.mxu0 0.0
        %2097 = vmatpush1.msra.mxu0 0.0
        %2098 = vmatprep.subr.mxu0 0.0
        %2099 = vmatpush1.msra.mxu0 0.0
        %2100 = vmatprep.subr.mxu0 0.0
        %2101 = vmatpush1.msra.mxu0 0.0
        %2102 = vmatprep.subr.mxu0 0.0
        %2103 = vmatpush1.msra.mxu0 0.0
        %2104 = vmatprep.subr.mxu0 0.0
        %2105 = vmatpush1.msra.mxu0 0.0
        %2106 = vmatprep.subr.mxu0 0.0
        %2107 = vmatpush1.msra.mxu0 0.0
        %2108 = vmatprep.subr.mxu0 0.0
        %2109 = vmatpush1.msra.mxu0 0.0
        %2110 = vmatprep.subr.mxu0 0.0
        %2111 = vmatpush1.msra.mxu0 0.0
        %2112 = vmatprep.subr.mxu0 0.0
        %2113 = vmatpush1.msra.mxu0 0.0
        %2114 = vmatprep.subr.mxu0 0.0
        %2115 = vmatpush1.msra.mxu0 %v1713
        %2116 = vmatprep.subr.mxu0 0.0
        %2117 = vmatpush2.msra.mxu0 0.0
        %2118 = vmatprep.subr.mxu0 0.0
        %2119 = vmatpush2.msra.mxu0 0.0
        %2120 = vmatprep.subr.mxu0 0.0
        %2121 = vmatpush2.msra.mxu0 0.0
        %2122 = vmatprep.subr.mxu0 0.0
        %2123 = vmatpush2.msra.mxu0 0.0
        %2124 = vmatprep.subr.mxu0 0.0
        %2125 = vmatpush2.msra.mxu0 0.0
        %2126 = vmatprep.subr.mxu0 0.0
        %2127 = vmatpush2.msra.mxu0 0.0
        %2128 = vmatprep.subr.mxu0 0.0
        %2129 = vmatpush2.msra.mxu0 0.0
        %2130 = vmatprep.subr.mxu0 0.0
        %2131 = vmatpush2.msra.mxu0 0.0
        %2132 = vmatprep.subr.mxu0 0.0
        %2133 = vmatpush2.msra.mxu0 0.0
        %2134 = vmatprep.subr.mxu0 0.0
        %2135 = vmatpush2.msra.mxu0 0.0
        %2136 = vmatprep.subr.mxu0 0.0
        %2137 = vmatpush2.msra.mxu0 0.0
        %2138 = vmatprep.subr.mxu0 0.0
        %2139 = vmatpush2.msra.mxu0 0.0
        %2140 = vmatprep.subr.mxu0 0.0
        %2141 = vmatpush2.msra.mxu0 0.0
        %2142 = vmatprep.subr.mxu0 0.0
        %2143 = vmatpush2.msra.mxu0 0.0
        %2144 = vmatprep.subr.mxu0 0.0
        %2145 = vmatpush2.msra.mxu0 0.0
        %2146 = vmatprep.subr.mxu0 0.0
        %2147 = vmatpush2.msra.mxu0 0.0
        %2148 = vmatprep.mubr.f32.mxu0 0.0
        %2149 = vmatmul.mubr.f32.gmra.mxu0 %v2082
        %v2150 = vpop.f32.mrf.mxu0
        %v2151 = vadd.f32 0.0, %v2150
        %v2152 = vpop.f32.mrf.mxu0
        %2153 = vdwg.mxu0
        %v2155 = vsel %vm967, %v2078, 0
        %2157 = vmatprep.subr.mxu0 0.0
        %2158 = vmatpush1.msra.mxu0 0.0
        %2159 = vmatprep.subr.mxu0 0.0
        %2160 = vmatpush1.msra.mxu0 0.0
        %2161 = vmatprep.subr.mxu0 0.0
        %2162 = vmatpush1.msra.mxu0 0.0
        %2163 = vmatprep.subr.mxu0 0.0
        %2164 = vmatpush1.msra.mxu0 0.0
        %2165 = vmatprep.subr.mxu0 0.0
        %2166 = vmatpush1.msra.mxu0 0.0
        %2167 = vmatprep.subr.mxu0 0.0
        %2168 = vmatpush1.msra.mxu0 0.0
        %2169 = vmatprep.subr.mxu0 0.0
        %2170 = vmatpush1.msra.mxu0 0.0
        %2171 = vmatprep.subr.mxu0 0.0
        %2172 = vmatpush1.msra.mxu0 0.0
        %2173 = vmatprep.subr.mxu0 0.0
        %2174 = vmatpush1.msra.mxu0 0.0
        %2175 = vmatprep.subr.mxu0 0.0
        %2176 = vmatpush1.msra.mxu0 0.0
        %2177 = vmatprep.subr.mxu0 0.0
        %2178 = vmatpush1.msra.mxu0 0.0
        %2179 = vmatprep.subr.mxu0 0.0
        %2180 = vmatpush1.msra.mxu0 0.0
        %2181 = vmatprep.subr.mxu0 0.0
        %2182 = vmatpush1.msra.mxu0 0.0
        %2183 = vmatprep.subr.mxu0 0.0
        %2184 = vmatpush1.msra.mxu0 0.0
        %2185 = vmatprep.subr.mxu0 0.0
        %2186 = vmatpush1.msra.mxu0 0.0
        %2187 = vmatprep.subr.mxu0 0.0
        %2188 = vmatpush1.msra.mxu0 %v1733
        %2189 = vmatprep.subr.mxu0 0.0
        %2190 = vmatpush2.msra.mxu0 0.0
        %2191 = vmatprep.subr.mxu0 0.0
        %2192 = vmatpush2.msra.mxu0 0.0
        %2193 = vmatprep.subr.mxu0 0.0
        %2194 = vmatpush2.msra.mxu0 0.0
        %2195 = vmatprep.subr.mxu0 0.0
        %2196 = vmatpush2.msra.mxu0 0.0
        %2197 = vmatprep.subr.mxu0 0.0
        %2198 = vmatpush2.msra.mxu0 0.0
        %2199 = vmatprep.subr.mxu0 0.0
        %2200 = vmatpush2.msra.mxu0 0.0
        %2201 = vmatprep.subr.mxu0 0.0
        %2202 = vmatpush2.msra.mxu0 0.0
        %2203 = vmatprep.subr.mxu0 0.0
        %2204 = vmatpush2.msra.mxu0 0.0
        %2205 = vmatprep.subr.mxu0 0.0
        %2206 = vmatpush2.msra.mxu0 0.0
        %2207 = vmatprep.subr.mxu0 0.0
        %2208 = vmatpush2.msra.mxu0 0.0
        %2209 = vmatprep.subr.mxu0 0.0
        %2210 = vmatpush2.msra.mxu0 0.0
        %2211 = vmatprep.subr.mxu0 0.0
        %2212 = vmatpush2.msra.mxu0 0.0
        %2213 = vmatprep.subr.mxu0 0.0
        %2214 = vmatpush2.msra.mxu0 0.0
        %2215 = vmatprep.subr.mxu0 0.0
        %2216 = vmatpush2.msra.mxu0 0.0
        %2217 = vmatprep.subr.mxu0 0.0
        %2218 = vmatpush2.msra.mxu0 0.0
        %2219 = vmatprep.subr.mxu0 0.0
        %2220 = vmatpush2.msra.mxu0 0.0
        %2221 = vmatprep.mubr.f32.mxu0 0.0
        %2222 = vmatmul.mubr.f32.gmra.mxu0 %v2155
        %v2223 = vpop.f32.mrf.mxu0
        %v2224 = vadd.f32 0.0, %v2223
        %v2225 = vpop.f32.mrf.mxu0
        %2226 = vdwg.mxu0
        %v2228 = vsel %vm967, %v2079, 0
        %2230 = vmatprep.subr.mxu0 0.0
        %2231 = vmatpush1.msra.mxu0 0.0
        %2232 = vmatprep.subr.mxu0 0.0
        %2233 = vmatpush1.msra.mxu0 0.0
        %2234 = vmatprep.subr.mxu0 0.0
        %2235 = vmatpush1.msra.mxu0 0.0
        %2236 = vmatprep.subr.mxu0 0.0
        %2237 = vmatpush1.msra.mxu0 0.0
        %2238 = vmatprep.subr.mxu0 0.0
        %2239 = vmatpush1.msra.mxu0 0.0
        %2240 = vmatprep.subr.mxu0 0.0
        %2241 = vmatpush1.msra.mxu0 0.0
        %2242 = vmatprep.subr.mxu0 0.0
        %2243 = vmatpush1.msra.mxu0 0.0
        %2244 = vmatprep.subr.mxu0 0.0
        %2245 = vmatpush1.msra.mxu0 0.0
        %2246 = vmatprep.subr.mxu0 0.0
        %2247 = vmatpush1.msra.mxu0 0.0
        %2248 = vmatprep.subr.mxu0 0.0
        %2249 = vmatpush1.msra.mxu0 0.0
        %2250 = vmatprep.subr.mxu0 0.0
        %2251 = vmatpush1.msra.mxu0 0.0
        %2252 = vmatprep.subr.mxu0 0.0
        %2253 = vmatpush1.msra.mxu0 0.0
        %2254 = vmatprep.subr.mxu0 0.0
        %2255 = vmatpush1.msra.mxu0 0.0
        %2256 = vmatprep.subr.mxu0 0.0
        %2257 = vmatpush1.msra.mxu0 0.0
        %2258 = vmatprep.subr.mxu0 0.0
        %2259 = vmatpush1.msra.mxu0 0.0
        %2260 = vmatprep.subr.mxu0 0.0
        %2261 = vmatpush1.msra.mxu0 %v1736
        %2262 = vmatprep.subr.mxu0 0.0
        %2263 = vmatpush2.msra.mxu0 0.0
        %2264 = vmatprep.subr.mxu0 0.0
        %2265 = vmatpush2.msra.mxu0 0.0
        %2266 = vmatprep.subr.mxu0 0.0
        %2267 = vmatpush2.msra.mxu0 0.0
        %2268 = vmatprep.subr.mxu0 0.0
        %2269 = vmatpush2.msra.mxu0 0.0
        %2270 = vmatprep.subr.mxu0 0.0
        %2271 = vmatpush2.msra.mxu0 0.0
        %2272 = vmatprep.subr.mxu0 0.0
        %2273 = vmatpush2.msra.mxu0 0.0
        %2274 = vmatprep.subr.mxu0 0.0
        %2275 = vmatpush2.msra.mxu0 0.0
        %2276 = vmatprep.subr.mxu0 0.0
        %2277 = vmatpush2.msra.mxu0 0.0
        %2278 = vmatprep.subr.mxu0 0.0
        %2279 = vmatpush2.msra.mxu0 0.0
        %2280 = vmatprep.subr.mxu0 0.0
        %2281 = vmatpush2.msra.mxu0 0.0
        %2282 = vmatprep.subr.mxu0 0.0
        %2283 = vmatpush2.msra.mxu0 0.0
        %2284 = vmatprep.subr.mxu0 0.0
        %2285 = vmatpush2.msra.mxu0 0.0
        %2286 = vmatprep.subr.mxu0 0.0
        %2287 = vmatpush2.msra.mxu0 0.0
        %2288 = vmatprep.subr.mxu0 0.0
        %2289 = vmatpush2.msra.mxu0 0.0
        %2290 = vmatprep.subr.mxu0 0.0
        %2291 = vmatpush2.msra.mxu0 0.0
        %2292 = vmatprep.subr.mxu0 0.0
        %2293 = vmatpush2.msra.mxu0 0.0
        %2294 = vmatprep.mubr.f32.mxu0 0.0
        %2295 = vmatmul.mubr.f32.gmra.mxu0 %v2228
        %v2296 = vpop.f32.mrf.mxu0
        %v2297 = vadd.f32 0.0, %v2296
        %v2298 = vpop.f32.mrf.mxu0
        %2299 = vdwg.mxu0
        %v2301 = vsel %vm967, %v2080, 0
        %2303 = vmatprep.subr.mxu0 0.0
        %2304 = vmatpush1.msra.mxu0 0.0
        %2305 = vmatprep.subr.mxu0 0.0
        %2306 = vmatpush1.msra.mxu0 0.0
        %2307 = vmatprep.subr.mxu0 0.0
        %2308 = vmatpush1.msra.mxu0 0.0
        %2309 = vmatprep.subr.mxu0 0.0
        %2310 = vmatpush1.msra.mxu0 0.0
        %2311 = vmatprep.subr.mxu0 0.0
        %2312 = vmatpush1.msra.mxu0 0.0
        %2313 = vmatprep.subr.mxu0 0.0
        %2314 = vmatpush1.msra.mxu0 0.0
        %2315 = vmatprep.subr.mxu0 0.0
        %2316 = vmatpush1.msra.mxu0 0.0
        %2317 = vmatprep.subr.mxu0 0.0
        %2318 = vmatpush1.msra.mxu0 0.0
        %2319 = vmatprep.subr.mxu0 0.0
        %2320 = vmatpush1.msra.mxu0 0.0
        %2321 = vmatprep.subr.mxu0 0.0
        %2322 = vmatpush1.msra.mxu0 0.0
        %2323 = vmatprep.subr.mxu0 0.0
        %2324 = vmatpush1.msra.mxu0 0.0
        %2325 = vmatprep.subr.mxu0 0.0
        %2326 = vmatpush1.msra.mxu0 0.0
        %2327 = vmatprep.subr.mxu0 0.0
        %2328 = vmatpush1.msra.mxu0 0.0
        %2329 = vmatprep.subr.mxu0 0.0
        %2330 = vmatpush1.msra.mxu0 0.0
        %2331 = vmatprep.subr.mxu0 0.0
        %2332 = vmatpush1.msra.mxu0 0.0
        %2333 = vmatprep.subr.mxu0 0.0
        %2334 = vmatpush1.msra.mxu0 %v1739
        %2335 = vmatprep.subr.mxu0 0.0
        %2336 = vmatpush2.msra.mxu0 0.0
        %2337 = vmatprep.subr.mxu0 0.0
        %2338 = vmatpush2.msra.mxu0 0.0
        %2339 = vmatprep.subr.mxu0 0.0
        %2340 = vmatpush2.msra.mxu0 0.0
        %2341 = vmatprep.subr.mxu0 0.0
        %2342 = vmatpush2.msra.mxu0 0.0
        %2343 = vmatprep.subr.mxu0 0.0
        %2344 = vmatpush2.msra.mxu0 0.0
        %2345 = vmatprep.subr.mxu0 0.0
        %2346 = vmatpush2.msra.mxu0 0.0
        %2347 = vmatprep.subr.mxu0 0.0
        %2348 = vmatpush2.msra.mxu0 0.0
        %2349 = vmatprep.subr.mxu0 0.0
        %2350 = vmatpush2.msra.mxu0 0.0
        %2351 = vmatprep.subr.mxu0 0.0
        %2352 = vmatpush2.msra.mxu0 0.0
        %2353 = vmatprep.subr.mxu0 0.0
        %2354 = vmatpush2.msra.mxu0 0.0
        %2355 = vmatprep.subr.mxu0 0.0
        %2356 = vmatpush2.msra.mxu0 0.0
        %2357 = vmatprep.subr.mxu0 0.0
        %2358 = vmatpush2.msra.mxu0 0.0
        %2359 = vmatprep.subr.mxu0 0.0
        %2360 = vmatpush2.msra.mxu0 0.0
        %2361 = vmatprep.subr.mxu0 0.0
        %2362 = vmatpush2.msra.mxu0 0.0
        %2363 = vmatprep.subr.mxu0 0.0
        %2364 = vmatpush2.msra.mxu0 0.0
        %2365 = vmatprep.subr.mxu0 0.0
        %2366 = vmatpush2.msra.mxu0 0.0
        %2367 = vmatprep.mubr.f32.mxu0 0.0
        %2368 = vmatmul.mubr.f32.gmra.mxu0 %v2301
        %v2369 = vpop.f32.mrf.mxu0
        %v2370 = vadd.f32 0.0, %v2369
        %v2371 = vpop.f32.mrf.mxu0
        %2372 = vdwg.mxu0
        %2374 = vrot.lane.b32.xlu0 %v2224, 32
        %v2375 = vpop.permute.xlu0 %2374
        %2378 = vrot.lane.b32.xlu0 %v2297, 64
        %v2379 = vpop.permute.xlu0 %2378
        %2382 = vrot.lane.b32.xlu0 %v2370, 96
        %v2383 = vpop.permute.xlu0 %2382
        %v2385 = vsel %vm670, %v2151, %v2375
        %v2386 = vsel %vm1317, %v2385, %v2379
        %v2387 = vsel %vm1319, %v2386, %v2383
        %v2388 = vpack.c.bf16 %v2387, %v2387
        %v2389 = vld [vmem:[#allocation5 + $0x1c] sm:$0xf]
        %v2390 = vld [vmem:[#allocation5 + $0x44] sm:$0xf]
        %v2391 = vld [vmem:[#allocation5 + $0x6c] sm:$0xf]
        %v2392 = vld [vmem:[#allocation5 + $0x94] sm:$0xf]
        %v2393 = vld [vmem:[#allocation5 + $0xbc] sm:$0xf]
        %v2394 = vld [vmem:[#allocation5 + $0xe4] sm:$0xf]
        %v2395 = vld [vmem:[#allocation5 + $0x10c] sm:$0xf]
        %v2396 = vld [vmem:[#allocation5 + $0x134] sm:$0xf]
        %v2397 = vld [vmem:[#allocation5 + $0x15c] sm:$0xf]
        %v2398 = vld [vmem:[#allocation5 + $0x184] sm:$0xf]
        %v2399 = vld [vmem:[#allocation5 + $0x1ac] sm:$0xf]
        %v2400 = vld [vmem:[#allocation5 + $0x1d4] sm:$0xf]
        %v2401 = vld [vmem:[#allocation5 + $0x1fc] sm:$0xf]
        %v2402 = vld [vmem:[#allocation5 + $0x224] sm:$0xf]
        %v2403 = vld [vmem:[#allocation5 + $0x24c] sm:$0xf]
        %v2404 = vld [vmem:[#allocation5 + $0x274] sm:$0xf]
        %v2405 = vld [vmem:[#allocation7 + $0x7] sm:$0x1]
        %v2407 = vlaneseq
        %v2408 = vshrl.u32 %v2407, 7
        %v2409 = vsub.s32 0, %v2408
        %v2410 = vrot.slane %v2405, %v2409
        %v2428 = vunpack.c.l.b16 %v2389
        %v2429 = vunpack.c.l.b16 %v2390
        %v2430 = vunpack.c.l.b16 %v2391
        %v2431 = vunpack.c.l.b16 %v2392
        %v2432 = vunpack.c.l.b16 %v2393
        %v2433 = vunpack.c.l.b16 %v2394
        %v2434 = vunpack.c.l.b16 %v2395
        %v2435 = vunpack.c.l.b16 %v2396
        %v2436 = vunpack.c.l.b16 %v2397
        %v2437 = vunpack.c.l.b16 %v2398
        %v2438 = vunpack.c.l.b16 %v2399
        %v2439 = vunpack.c.l.b16 %v2400
        %v2440 = vunpack.c.l.b16 %v2401
        %v2441 = vunpack.c.l.b16 %v2402
        %v2442 = vunpack.c.l.b16 %v2403
        %v2443 = vunpack.c.l.b16 %v2404
        %v2444 = vpack.c.b16 %v2429, %v2428
        %v2445 = vpack.c.b16 %v2431, %v2430
        %v2446 = vpack.c.b16 %v2433, %v2432
        %v2447 = vpack.c.b16 %v2435, %v2434
        %v2448 = vpack.c.b16 %v2437, %v2436
        %v2449 = vpack.c.b16 %v2439, %v2438
        %v2450 = vpack.c.b16 %v2441, %v2440
        %v2451 = vpack.c.b16 %v2443, %v2442
        %2460 = vmatprep.subr.bf16.mxu0 0
        %2461 = vmatpush1.bf16.msra.mxu0 %v2451
        %2462 = vmatprep.subr.bf16.mxu0 0
        %2463 = vmatpush1.bf16.msra.mxu0 %v2450
        %2464 = vmatprep.subr.bf16.mxu0 0
        %2465 = vmatpush1.bf16.msra.mxu0 %v2449
        %2466 = vmatprep.subr.bf16.mxu0 0
        %2467 = vmatpush1.bf16.msra.mxu0 %v2448
        %2468 = vmatprep.subr.bf16.mxu0 0
        %2469 = vmatpush1.bf16.msra.mxu0 %v2447
        %2470 = vmatprep.subr.bf16.mxu0 0
        %2471 = vmatpush1.bf16.msra.mxu0 %v2446
        %2472 = vmatprep.subr.bf16.mxu0 0
        %2473 = vmatpush1.bf16.msra.mxu0 %v2445
        %2474 = vmatprep.subr.bf16.mxu0 0
        %2475 = vmatpush1.bf16.msra.mxu0 %v2444
        %2476 = vmatprep.subr.bf16.mxu0 0
        %2477 = vmatpush2.bf16.msra.mxu0 0
        %2478 = vmatprep.subr.bf16.mxu0 0
        %2479 = vmatpush2.bf16.msra.mxu0 0
        %2480 = vmatprep.subr.bf16.mxu0 0
        %2481 = vmatpush2.bf16.msra.mxu0 0
        %2482 = vmatprep.subr.bf16.mxu0 0
        %2483 = vmatpush2.bf16.msra.mxu0 0
        %2484 = vmatprep.subr.bf16.mxu0 0
        %2485 = vmatpush2.bf16.msra.mxu0 0
        %2486 = vmatprep.subr.bf16.mxu0 0
        %2487 = vmatpush2.bf16.msra.mxu0 0
        %2488 = vmatprep.subr.bf16.mxu0 0
        %2489 = vmatpush2.bf16.msra.mxu0 0
        %2490 = vmatprep.subr.bf16.mxu0 0
        %2491 = vmatpush2.bf16.msra.mxu0 0
        %2492 = vmatprep.mubr.bf16.mxu0 0
        %2493 = vmatmul.mubr.bf16.gmra.mxu0 %v2388
        %v2494 = vpop.f32.mrf.mxu0
        %v2495 = vadd.f32 %v2410, %v2494
        %v2496 = vpop.f32.mrf.mxu0
        %v2497 = vpop.f32.mrf.mxu0
        %v2498 = vpop.f32.mrf.mxu0
        %2499 = vdwg.mxu0
        %v2500 = vadd.f32 %v1455, %v2495
        %2501 = vadd.xlane.f32.xlu0 %v2500
        %v2502 = vpop.xlane.xlu0 %2501
        %v2503 = vmul.f32 %v2502, %v1436
        %v2504 = vsub.f32 %v2500, %v2503
        %v2505 = vmul.f32 %v2504, %v2504
        %2506 = vadd.xlane.f32.xlu0 %v2505
        %v2507 = vpop.xlane.xlu0 %2506
        %v2508 = vmul.f32 %v2507, %v1436
        %v2509 = vadd.f32 %v2508, 1e-05
        %v2510 = vrsqrt.pop %v2509
        %v2511 = vmul.f32 %v2504, %v2510
        %v2512 = vlaneseq
        %v2513 = vshrl.u32 %v2512, 7
        %v2514 = vsub.s32 2, %v2513
        %v2515 = vrot.slane %v386, %v2514
        %v2516 = vmul.f32 %v2511, %v2515
        %v2517 = vlaneseq
        %v2518 = vshrl.u32 %v2517, 7
        %v2519 = vsub.s32 3, %v2518
        %v2520 = vrot.slane %v386, %v2519
        %v2521 = vadd.f32 %v2516, %v2520
        %v2522 = vpack.c.bf16 %v2521, %v2521
        %v2523 = vld [vmem:[#allocation5 + $0x20] sm:$0xff]
        %v2524 = vld [vmem:[#allocation5 + $0x48] sm:$0xff]
        %v2525 = vld [vmem:[#allocation5 + $0x70] sm:$0xff]
        %v2526 = vld [vmem:[#allocation5 + $0x98] sm:$0xff]
        %v2527 = vld [vmem:[#allocation5 + $0xc0] sm:$0xff]
        %v2528 = vld [vmem:[#allocation5 + $0xe8] sm:$0xff]
        %v2529 = vld [vmem:[#allocation5 + $0x110] sm:$0xff]
        %v2530 = vld [vmem:[#allocation5 + $0x138] sm:$0xff]
        %v2531 = vld [vmem:[#allocation5 + $0x160] sm:$0xff]
        %v2532 = vld [vmem:[#allocation5 + $0x188] sm:$0xff]
        %v2533 = vld [vmem:[#allocation5 + $0x1b0] sm:$0xff]
        %v2534 = vld [vmem:[#allocation5 + $0x1d8] sm:$0xff]
        %v2535 = vld [vmem:[#allocation5 + $0x200] sm:$0xff]
        %v2536 = vld [vmem:[#allocation5 + $0x228] sm:$0xff]
        %v2537 = vld [vmem:[#allocation5 + $0x250] sm:$0xff]
        %v2538 = vld [vmem:[#allocation5 + $0x278] sm:$0xff]
        %v2539 = vld [vmem:[#allocation7 + $0x8] sm:$0x3]
        %v2541 = vlaneseq
        %v2542 = vshrl.u32 %v2541, 7
        %v2543 = vsub.s32 0, %v2542
        %v2544 = vrot.slane %v2539, %v2543
        %v2545 = vlaneseq
        %v2546 = vshrl.u32 %v2545, 7
        %v2547 = vsub.s32 1, %v2546
        %v2548 = vrot.slane %v2539, %v2547
        %v2567 = vunpack.c.l.b16 %v2523
        %v2568 = vunpack.c.h.b16 %v2523
        %v2569 = vunpack.c.l.b16 %v2524
        %v2570 = vunpack.c.h.b16 %v2524
        %v2571 = vunpack.c.l.b16 %v2525
        %v2572 = vunpack.c.h.b16 %v2525
        %v2573 = vunpack.c.l.b16 %v2526
        %v2574 = vunpack.c.h.b16 %v2526
        %v2575 = vunpack.c.l.b16 %v2527
        %v2576 = vunpack.c.h.b16 %v2527
        %v2577 = vunpack.c.l.b16 %v2528
        %v2578 = vunpack.c.h.b16 %v2528
        %v2579 = vunpack.c.l.b16 %v2529
        %v2580 = vunpack.c.h.b16 %v2529
        %v2581 = vunpack.c.l.b16 %v2530
        %v2582 = vunpack.c.h.b16 %v2530
        %v2583 = vunpack.c.l.b16 %v2531
        %v2584 = vunpack.c.h.b16 %v2531
        %v2585 = vunpack.c.l.b16 %v2532
        %v2586 = vunpack.c.h.b16 %v2532
        %v2587 = vunpack.c.l.b16 %v2533
        %v2588 = vunpack.c.h.b16 %v2533
        %v2589 = vunpack.c.l.b16 %v2534
        %v2590 = vunpack.c.h.b16 %v2534
        %v2591 = vunpack.c.l.b16 %v2535
        %v2592 = vunpack.c.h.b16 %v2535
        %v2593 = vunpack.c.l.b16 %v2536
        %v2594 = vunpack.c.h.b16 %v2536
        %v2595 = vunpack.c.l.b16 %v2537
        %v2596 = vunpack.c.h.b16 %v2537
        %v2597 = vunpack.c.l.b16 %v2538
        %v2598 = vunpack.c.h.b16 %v2538
        %v2599 = vpack.c.b16 %v2569, %v2567
        %v2600 = vpack.c.b16 %v2570, %v2568
        %v2601 = vpack.c.b16 %v2573, %v2571
        %v2602 = vpack.c.b16 %v2574, %v2572
        %v2603 = vpack.c.b16 %v2577, %v2575
        %v2604 = vpack.c.b16 %v2578, %v2576
        %v2605 = vpack.c.b16 %v2581, %v2579
        %v2606 = vpack.c.b16 %v2582, %v2580
        %v2607 = vpack.c.b16 %v2585, %v2583
        %v2608 = vpack.c.b16 %v2586, %v2584
        %v2609 = vpack.c.b16 %v2589, %v2587
        %v2610 = vpack.c.b16 %v2590, %v2588
        %v2611 = vpack.c.b16 %v2593, %v2591
        %v2612 = vpack.c.b16 %v2594, %v2592
        %v2613 = vpack.c.b16 %v2597, %v2595
        %v2614 = vpack.c.b16 %v2598, %v2596
        %2631 = vmatprep.subr.bf16.mxu0 %v2614
        %2632 = vmatpush1.bf16.msra.mxu0 %v2613
        %2633 = vmatprep.subr.bf16.mxu0 %v2612
        %2634 = vmatpush1.bf16.msra.mxu0 %v2611
        %2635 = vmatprep.subr.bf16.mxu0 %v2610
        %2636 = vmatpush1.bf16.msra.mxu0 %v2609
        %2637 = vmatprep.subr.bf16.mxu0 %v2608
        %2638 = vmatpush1.bf16.msra.mxu0 %v2607
        %2639 = vmatprep.subr.bf16.mxu0 %v2606
        %2640 = vmatpush1.bf16.msra.mxu0 %v2605
        %2641 = vmatprep.subr.bf16.mxu0 %v2604
        %2642 = vmatpush1.bf16.msra.mxu0 %v2603
        %2643 = vmatprep.subr.bf16.mxu0 %v2602
        %2644 = vmatpush1.bf16.msra.mxu0 %v2601
        %2645 = vmatprep.subr.bf16.mxu0 %v2600
        %2646 = vmatpush1.bf16.msra.mxu0 %v2599
        %2647 = vmatprep.subr.bf16.mxu0 0
        %2648 = vmatpush2.bf16.msra.mxu0 0
        %2649 = vmatprep.subr.bf16.mxu0 0
        %2650 = vmatpush2.bf16.msra.mxu0 0
        %2651 = vmatprep.subr.bf16.mxu0 0
        %2652 = vmatpush2.bf16.msra.mxu0 0
        %2653 = vmatprep.subr.bf16.mxu0 0
        %2654 = vmatpush2.bf16.msra.mxu0 0
        %2655 = vmatprep.subr.bf16.mxu0 0
        %2656 = vmatpush2.bf16.msra.mxu0 0
        %2657 = vmatprep.subr.bf16.mxu0 0
        %2658 = vmatpush2.bf16.msra.mxu0 0
        %2659 = vmatprep.subr.bf16.mxu0 0
        %2660 = vmatpush2.bf16.msra.mxu0 0
        %2661 = vmatprep.subr.bf16.mxu0 0
        %2662 = vmatpush2.bf16.msra.mxu0 0
        %2663 = vmatprep.mubr.bf16.mxu0 0
        %2664 = vmatmul.mubr.bf16.gmra.mxu0 %v2522
        %v2665 = vpop.f32.mrf.mxu0
        %v2666 = vadd.f32 %v2544, %v2665
        %v2667 = vpop.f32.mrf.mxu0
        %v2668 = vadd.f32 %v2548, %v2667
        %v2669 = vpop.f32.mrf.mxu0
        %v2670 = vpop.f32.mrf.mxu0
        %2671 = vdwg.mxu0
        %v2672 = vmax.f32 %v2666, 0.0
        %v2673 = vmax.f32 %v2668, 0.0
        %v2674 = vpack.c.bf16 %v2672, %v2672
        %v2675 = vpack.c.bf16 %v2673, %v2673
        %v2676 = vld [vmem:[%s3] sm:$0xf]
        %v2677 = vld [vmem:[%s3 + $0x4] sm:$0xf]
        %v2678 = vld [vmem:[%s3 + $0x8] sm:$0xf]
        %v2679 = vld [vmem:[%s3 + $0xc] sm:$0xf]
        %v2680 = vld [vmem:[%s3 + $0x10] sm:$0xf]
        %v2681 = vld [vmem:[%s3 + $0x14] sm:$0xf]
        %v2682 = vld [vmem:[%s3 + $0x18] sm:$0xf]
        %v2683 = vld [vmem:[%s3 + $0x1c] sm:$0xf]
        %v2684 = vld [vmem:[%s3 + $0x20] sm:$0xf]
        %v2685 = vld [vmem:[%s3 + $0x24] sm:$0xf]
        %v2686 = vld [vmem:[%s3 + $0x28] sm:$0xf]
        %v2687 = vld [vmem:[%s3 + $0x2c] sm:$0xf]
        %v2688 = vld [vmem:[%s3 + $0x30] sm:$0xf]
        %v2689 = vld [vmem:[%s3 + $0x34] sm:$0xf]
        %v2690 = vld [vmem:[%s3 + $0x38] sm:$0xf]
        %v2691 = vld [vmem:[%s3 + $0x3c] sm:$0xf]
        %v2692 = vld [vmem:[%s3 + $0x40] sm:$0xf]
        %v2693 = vld [vmem:[%s3 + $0x44] sm:$0xf]
        %v2694 = vld [vmem:[%s3 + $0x48] sm:$0xf]
        %v2695 = vld [vmem:[%s3 + $0x4c] sm:$0xf]
        %v2696 = vld [vmem:[%s3 + $0x50] sm:$0xf]
        %v2697 = vld [vmem:[%s3 + $0x54] sm:$0xf]
        %v2698 = vld [vmem:[%s3 + $0x58] sm:$0xf]
        %v2699 = vld [vmem:[%s3 + $0x5c] sm:$0xf]
        %v2700 = vld [vmem:[%s3 + $0x60] sm:$0xf]
        %v2701 = vld [vmem:[%s3 + $0x64] sm:$0xf]
        %v2702 = vld [vmem:[%s3 + $0x68] sm:$0xf]
        %v2703 = vld [vmem:[%s3 + $0x6c] sm:$0xf]
        %v2704 = vld [vmem:[%s3 + $0x70] sm:$0xf]
        %v2705 = vld [vmem:[%s3 + $0x74] sm:$0xf]
        %v2706 = vld [vmem:[%s3 + $0x78] sm:$0xf]
        %v2707 = vld [vmem:[%s3 + $0x7c] sm:$0xf]
        %v2708 = vld [vmem:[#allocation7 + $0xa] sm:$0x1]
        %v2710 = vlaneseq
        %v2711 = vshrl.u32 %v2710, 7
        %v2712 = vsub.s32 0, %v2711
        %v2713 = vrot.slane %v2708, %v2712
        %v2747 = vunpack.c.l.b16 %v2676
        %v2748 = vunpack.c.l.b16 %v2677
        %v2749 = vunpack.c.l.b16 %v2678
        %v2750 = vunpack.c.l.b16 %v2679
        %v2751 = vunpack.c.l.b16 %v2680
        %v2752 = vunpack.c.l.b16 %v2681
        %v2753 = vunpack.c.l.b16 %v2682
        %v2754 = vunpack.c.l.b16 %v2683
        %v2755 = vunpack.c.l.b16 %v2684
        %v2756 = vunpack.c.l.b16 %v2685
        %v2757 = vunpack.c.l.b16 %v2686
        %v2758 = vunpack.c.l.b16 %v2687
        %v2759 = vunpack.c.l.b16 %v2688
        %v2760 = vunpack.c.l.b16 %v2689
        %v2761 = vunpack.c.l.b16 %v2690
        %v2762 = vunpack.c.l.b16 %v2691
        %v2763 = vunpack.c.l.b16 %v2692
        %v2764 = vunpack.c.l.b16 %v2693
        %v2765 = vunpack.c.l.b16 %v2694
        %v2766 = vunpack.c.l.b16 %v2695
        %v2767 = vunpack.c.l.b16 %v2696
        %v2768 = vunpack.c.l.b16 %v2697
        %v2769 = vunpack.c.l.b16 %v2698
        %v2770 = vunpack.c.l.b16 %v2699
        %v2771 = vunpack.c.l.b16 %v2700
        %v2772 = vunpack.c.l.b16 %v2701
        %v2773 = vunpack.c.l.b16 %v2702
        %v2774 = vunpack.c.l.b16 %v2703
        %v2775 = vunpack.c.l.b16 %v2704
        %v2776 = vunpack.c.l.b16 %v2705
        %v2777 = vunpack.c.l.b16 %v2706
        %v2778 = vunpack.c.l.b16 %v2707
        %v2779 = vpack.c.b16 %v2748, %v2747
        %v2780 = vpack.c.b16 %v2750, %v2749
        %v2781 = vpack.c.b16 %v2752, %v2751
        %v2782 = vpack.c.b16 %v2754, %v2753
        %v2783 = vpack.c.b16 %v2756, %v2755
        %v2784 = vpack.c.b16 %v2758, %v2757
        %v2785 = vpack.c.b16 %v2760, %v2759
        %v2786 = vpack.c.b16 %v2762, %v2761
        %v2787 = vpack.c.b16 %v2764, %v2763
        %v2788 = vpack.c.b16 %v2766, %v2765
        %v2789 = vpack.c.b16 %v2768, %v2767
        %v2790 = vpack.c.b16 %v2770, %v2769
        %v2791 = vpack.c.b16 %v2772, %v2771
        %v2792 = vpack.c.b16 %v2774, %v2773
        %v2793 = vpack.c.b16 %v2776, %v2775
        %v2794 = vpack.c.b16 %v2778, %v2777
        %2811 = vmatprep.subr.bf16.mxu0 0
        %2812 = vmatpush1.bf16.msra.mxu0 %v2786
        %2813 = vmatprep.subr.bf16.mxu0 0
        %2814 = vmatpush1.bf16.msra.mxu0 %v2785
        %2815 = vmatprep.subr.bf16.mxu0 0
        %2816 = vmatpush1.bf16.msra.mxu0 %v2784
        %2817 = vmatprep.subr.bf16.mxu0 0
        %2818 = vmatpush1.bf16.msra.mxu0 %v2783
        %2819 = vmatprep.subr.bf16.mxu0 0
        %2820 = vmatpush1.bf16.msra.mxu0 %v2782
        %2821 = vmatprep.subr.bf16.mxu0 0
        %2822 = vmatpush1.bf16.msra.mxu0 %v2781
        %2823 = vmatprep.subr.bf16.mxu0 0
        %2824 = vmatpush1.bf16.msra.mxu0 %v2780
        %2825 = vmatprep.subr.bf16.mxu0 0
        %2826 = vmatpush1.bf16.msra.mxu0 %v2779
        %2827 = vmatprep.subr.bf16.mxu0 0
        %2828 = vmatpush2.bf16.msra.mxu0 %v2794
        %2829 = vmatprep.subr.bf16.mxu0 0
        %2830 = vmatpush2.bf16.msra.mxu0 %v2793
        %2831 = vmatprep.subr.bf16.mxu0 0
        %2832 = vmatpush2.bf16.msra.mxu0 %v2792
        %2833 = vmatprep.subr.bf16.mxu0 0
        %2834 = vmatpush2.bf16.msra.mxu0 %v2791
        %2835 = vmatprep.subr.bf16.mxu0 0
        %2836 = vmatpush2.bf16.msra.mxu0 %v2790
        %2837 = vmatprep.subr.bf16.mxu0 0
        %2838 = vmatpush2.bf16.msra.mxu0 %v2789
        %2839 = vmatprep.subr.bf16.mxu0 0
        %2840 = vmatpush2.bf16.msra.mxu0 %v2788
        %2841 = vmatprep.subr.bf16.mxu0 0
        %2842 = vmatpush2.bf16.msra.mxu0 %v2787
        %2843 = vmatprep.mubr.bf16.mxu0 %v2675
        %2844 = vmatmul.mubr.bf16.gmra.mxu0 %v2674
        %v2845 = vpop.f32.mrf.mxu0
        %v2846 = vadd.f32 %v2713, %v2845
        %v2847 = vpop.f32.mrf.mxu0
        %v2848 = vpop.f32.mrf.mxu0
        %v2849 = vpop.f32.mrf.mxu0
        %2850 = vdwg.mxu0
        %v2851 = vadd.f32 %v2521, %v2846
        %2852 = vadd.xlane.f32.xlu0 %v2851
        %v2853 = vpop.xlane.xlu0 %2852
        %v2854 = vmul.f32 %v2853, %v1436
        %v2855 = vsub.f32 %v2851, %v2854
        %v2856 = vmul.f32 %v2855, %v2855
        %2857 = vadd.xlane.f32.xlu0 %v2856
        %v2858 = vpop.xlane.xlu0 %2857
        %v2859 = vmul.f32 %v2858, %v1436
        %v2860 = vadd.f32 %v2859, 1e-05
        %v2861 = vrsqrt.pop %v2860
        %v2862 = vmul.f32 %v2855, %v2861
        %v2863 = vlaneseq
        %v2864 = vshrl.u32 %v2863, 7
        %v2865 = vsub.s32 4, %v2864
        %v2866 = vrot.slane %v386, %v2865
        %v2867 = vmul.f32 %v2862, %v2866
        %v2868 = vlaneseq
        %v2869 = vshrl.u32 %v2868, 7
        %v2870 = vsub.s32 5, %v2869
        %v2871 = vrot.slane %v386, %v2870
        %v2872 = vadd.f32 %v2867, %v2871
        %s2873 = scalar_lea.vmem %s5, 8
        %v2874 = vld [vmem:[%s2873] sm:$0x3f]
        %v2875 = vpack.c.bf16 %v2872, %v2872
        %s2876 = scalar_lea.vmem [#allocation5], 640
        %v2877 = vld [vmem:[%s2876] sm:$0xff]
        %v2878 = vld [vmem:[%s2876 + $0x8] sm:$0xf]
        %v2879 = vld [vmem:[%s2876 + $0x28] sm:$0xff]
        %v2880 = vld [vmem:[%s2876 + $0x30] sm:$0xf]
        %v2881 = vld [vmem:[%s2876 + $0x50] sm:$0xff]
        %v2882 = vld [vmem:[%s2876 + $0x58] sm:$0xf]
        %v2883 = vld [vmem:[%s2876 + $0x78] sm:$0xff]
        %v2884 = vld [vmem:[%s2876 + $0x80] sm:$0xf]
        %v2885 = vld [vmem:[%s2876 + $0xa0] sm:$0xff]
        %v2886 = vld [vmem:[%s2876 + $0xa8] sm:$0xf]
        %v2887 = vld [vmem:[%s2876 + $0xc8] sm:$0xff]
        %v2888 = vld [vmem:[%s2876 + $0xd0] sm:$0xf]
        %v2889 = vld [vmem:[%s2876 + $0xf0] sm:$0xff]
        %v2890 = vld [vmem:[%s2876 + $0xf8] sm:$0xf]
        %v2891 = vld [vmem:[%s2876 + $0x118] sm:$0xff]
        %v2892 = vld [vmem:[%s2876 + $0x120] sm:$0xf]
        %v2893 = vld [vmem:[%s2876 + $0x140] sm:$0xff]
        %v2894 = vld [vmem:[%s2876 + $0x148] sm:$0xf]
        %v2895 = vld [vmem:[%s2876 + $0x168] sm:$0xff]
        %v2896 = vld [vmem:[%s2876 + $0x170] sm:$0xf]
        %v2897 = vld [vmem:[%s2876 + $0x190] sm:$0xff]
        %v2898 = vld [vmem:[%s2876 + $0x198] sm:$0xf]
        %v2899 = vld [vmem:[%s2876 + $0x1b8] sm:$0xff]
        %v2900 = vld [vmem:[%s2876 + $0x1c0] sm:$0xf]
        %v2901 = vld [vmem:[%s2876 + $0x1e0] sm:$0xff]
        %v2902 = vld [vmem:[%s2876 + $0x1e8] sm:$0xf]
        %v2903 = vld [vmem:[%s2876 + $0x208] sm:$0xff]
        %v2904 = vld [vmem:[%s2876 + $0x210] sm:$0xf]
        %v2905 = vld [vmem:[%s2876 + $0x230] sm:$0xff]
        %v2906 = vld [vmem:[%s2876 + $0x238] sm:$0xf]
        %v2907 = vld [vmem:[%s2876 + $0x258] sm:$0xff]
        %v2908 = vld [vmem:[%s2876 + $0x260] sm:$0xf]
        %s2909 = scalar_lea.vmem [#allocation7], 11
        %v2910 = vld [vmem:[%s2909] sm:$0x7]
        %v2912 = vlaneseq
        %v2913 = vshrl.u32 %v2912, 7
        %v2914 = vsub.s32 0, %v2913
        %v2915 = vrot.slane %v2910, %v2914
        %v2916 = vlaneseq
        %v2917 = vshrl.u32 %v2916, 7
        %v2918 = vsub.s32 1, %v2917
        %v2919 = vrot.slane %v2910, %v2918
        %v2920 = vlaneseq
        %v2921 = vshrl.u32 %v2920, 7
        %v2922 = vsub.s32 2, %v2921
        %v2923 = vrot.slane %v2910, %v2922
        %v2959 = vunpack.c.l.b16 %v2877
        %v2960 = vunpack.c.h.b16 %v2877
        %v2961 = vunpack.c.l.b16 %v2878
        %v2962 = vunpack.c.l.b16 %v2879
        %v2963 = vunpack.c.h.b16 %v2879
        %v2964 = vunpack.c.l.b16 %v2880
        %v2965 = vunpack.c.l.b16 %v2881
        %v2966 = vunpack.c.h.b16 %v2881
        %v2967 = vunpack.c.l.b16 %v2882
        %v2968 = vunpack.c.l.b16 %v2883
        %v2969 = vunpack.c.h.b16 %v2883
        %v2970 = vunpack.c.l.b16 %v2884
        %v2971 = vunpack.c.l.b16 %v2885
        %v2972 = vunpack.c.h.b16 %v2885
        %v2973 = vunpack.c.l.b16 %v2886
        %v2974 = vunpack.c.l.b16 %v2887
        %v2975 = vunpack.c.h.b16 %v2887
        %v2976 = vunpack.c.l.b16 %v2888
        %v2977 = vunpack.c.l.b16 %v2889
        %v2978 = vunpack.c.h.b16 %v2889
        %v2979 = vunpack.c.l.b16 %v2890
        %v2980 = vunpack.c.l.b16 %v2891
        %v2981 = vunpack.c.h.b16 %v2891
        %v2982 = vunpack.c.l.b16 %v2892
        %v2983 = vunpack.c.l.b16 %v2893
        %v2984 = vunpack.c.h.b16 %v2893
        %v2985 = vunpack.c.l.b16 %v2894
        %v2986 = vunpack.c.l.b16 %v2895
        %v2987 = vunpack.c.h.b16 %v2895
        %v2988 = vunpack.c.l.b16 %v2896
        %v2989 = vunpack.c.l.b16 %v2897
        %v2990 = vunpack.c.h.b16 %v2897
        %v2991 = vunpack.c.l.b16 %v2898
        %v2992 = vunpack.c.l.b16 %v2899
        %v2993 = vunpack.c.h.b16 %v2899
        %v2994 = vunpack.c.l.b16 %v2900
        %v2995 = vunpack.c.l.b16 %v2901
        %v2996 = vunpack.c.h.b16 %v2901
        %v2997 = vunpack.c.l.b16 %v2902
        %v2998 = vunpack.c.l.b16 %v2903
        %v2999 = vunpack.c.h.b16 %v2903
        %v3000 = vunpack.c.l.b16 %v2904
        %v3001 = vunpack.c.l.b16 %v2905
        %v3002 = vunpack.c.h.b16 %v2905
        %v3003 = vunpack.c.l.b16 %v2906
        %v3004 = vunpack.c.l.b16 %v2907
        %v3005 = vunpack.c.h.b16 %v2907
        %v3006 = vunpack.c.l.b16 %v2908
        %v3007 = vpack.c.b16 %v2962, %v2959
        %v3008 = vpack.c.b16 %v2963, %v2960
        %v3009 = vpack.c.b16 %v2964, %v2961
        %v3010 = vpack.c.b16 %v2968, %v2965
        %v3011 = vpack.c.b16 %v2969, %v2966
        %v3012 = vpack.c.b16 %v2970, %v2967
        %v3013 = vpack.c.b16 %v2974, %v2971
        %v3014 = vpack.c.b16 %v2975, %v2972
        %v3015 = vpack.c.b16 %v2976, %v2973
        %v3016 = vpack.c.b16 %v2980, %v2977
        %v3017 = vpack.c.b16 %v2981, %v2978
        %v3018 = vpack.c.b16 %v2982, %v2979
        %v3019 = vpack.c.b16 %v2986, %v2983
        %v3020 = vpack.c.b16 %v2987, %v2984
        %v3021 = vpack.c.b16 %v2988, %v2985
        %v3022 = vpack.c.b16 %v2992, %v2989
        %v3023 = vpack.c.b16 %v2993, %v2990
        %v3024 = vpack.c.b16 %v2994, %v2991
        %v3025 = vpack.c.b16 %v2998, %v2995
        %v3026 = vpack.c.b16 %v2999, %v2996
        %v3027 = vpack.c.b16 %v3000, %v2997
        %v3028 = vpack.c.b16 %v3004, %v3001
        %v3029 = vpack.c.b16 %v3005, %v3002
        %v3030 = vpack.c.b16 %v3006, %v3003
        %3055 = vmatprep.subr.bf16.mxu0 %v3029
        %3056 = vmatpush1.bf16.msra.mxu0 %v3028
        %3057 = vmatprep.subr.bf16.mxu0 %v3026
        %3058 = vmatpush1.bf16.msra.mxu0 %v3025
        %3059 = vmatprep.subr.bf16.mxu0 %v3023
        %3060 = vmatpush1.bf16.msra.mxu0 %v3022
        %3061 = vmatprep.subr.bf16.mxu0 %v3020
        %3062 = vmatpush1.bf16.msra.mxu0 %v3019
        %3063 = vmatprep.subr.bf16.mxu0 %v3017
        %3064 = vmatpush1.bf16.msra.mxu0 %v3016
        %3065 = vmatprep.subr.bf16.mxu0 %v3014
        %3066 = vmatpush1.bf16.msra.mxu0 %v3013
        %3067 = vmatprep.subr.bf16.mxu0 %v3011
        %3068 = vmatpush1.bf16.msra.mxu0 %v3010
        %3069 = vmatprep.subr.bf16.mxu0 %v3008
        %3070 = vmatpush1.bf16.msra.mxu0 %v3007
        %3071 = vmatprep.subr.bf16.mxu0 0
        %3072 = vmatpush2.bf16.msra.mxu0 0
        %3073 = vmatprep.subr.bf16.mxu0 0
        %3074 = vmatpush2.bf16.msra.mxu0 0
        %3075 = vmatprep.subr.bf16.mxu0 0
        %3076 = vmatpush2.bf16.msra.mxu0 0
        %3077 = vmatprep.subr.bf16.mxu0 0
        %3078 = vmatpush2.bf16.msra.mxu0 0
        %3079 = vmatprep.subr.bf16.mxu0 0
        %3080 = vmatpush2.bf16.msra.mxu0 0
        %3081 = vmatprep.subr.bf16.mxu0 0
        %3082 = vmatpush2.bf16.msra.mxu0 0
        %3083 = vmatprep.subr.bf16.mxu0 0
        %3084 = vmatpush2.bf16.msra.mxu0 0
        %3085 = vmatprep.subr.bf16.mxu0 0
        %3086 = vmatpush2.bf16.msra.mxu0 0
        %3087 = vmatprep.mubr.bf16.mxu0 0
        %3088 = vmatmul.mubr.bf16.gmra.mxu0 %v2875
        %v3089 = vpop.f32.mrf.mxu0
        %v3090 = vadd.f32 %v2915, %v3089
        %v3091 = vpop.f32.mrf.mxu0
        %v3092 = vadd.f32 %v2919, %v3091
        %v3093 = vpop.f32.mrf.mxu0
        %v3094 = vpop.f32.mrf.mxu0
        %3095 = vdwg.mxu0
        %3096 = vmatprep.subr.bf16.mxu0 0
        %3097 = vmatpush1.bf16.msra.mxu0 %v3030
        %3098 = vmatprep.subr.bf16.mxu0 0
        %3099 = vmatpush1.bf16.msra.mxu0 %v3027
        %3100 = vmatprep.subr.bf16.mxu0 0
        %3101 = vmatpush1.bf16.msra.mxu0 %v3024
        %3102 = vmatprep.subr.bf16.mxu0 0
        %3103 = vmatpush1.bf16.msra.mxu0 %v3021
        %3104 = vmatprep.subr.bf16.mxu0 0
        %3105 = vmatpush1.bf16.msra.mxu0 %v3018
        %3106 = vmatprep.subr.bf16.mxu0 0
        %3107 = vmatpush1.bf16.msra.mxu0 %v3015
        %3108 = vmatprep.subr.bf16.mxu0 0
        %3109 = vmatpush1.bf16.msra.mxu0 %v3012
        %3110 = vmatprep.subr.bf16.mxu0 0
        %3111 = vmatpush1.bf16.msra.mxu0 %v3009
        %3112 = vmatprep.subr.bf16.mxu0 0
        %3113 = vmatpush2.bf16.msra.mxu0 0
        %3114 = vmatprep.subr.bf16.mxu0 0
        %3115 = vmatpush2.bf16.msra.mxu0 0
        %3116 = vmatprep.subr.bf16.mxu0 0
        %3117 = vmatpush2.bf16.msra.mxu0 0
        %3118 = vmatprep.subr.bf16.mxu0 0
        %3119 = vmatpush2.bf16.msra.mxu0 0
        %3120 = vmatprep.subr.bf16.mxu0 0
        %3121 = vmatpush2.bf16.msra.mxu0 0
        %3122 = vmatprep.subr.bf16.mxu0 0
        %3123 = vmatpush2.bf16.msra.mxu0 0
        %3124 = vmatprep.subr.bf16.mxu0 0
        %3125 = vmatpush2.bf16.msra.mxu0 0
        %3126 = vmatprep.subr.bf16.mxu0 0
        %3127 = vmatpush2.bf16.msra.mxu0 0
        %3128 = vmatprep.mubr.bf16.mxu0 0
        %3129 = vmatmul.mubr.bf16.gmra.mxu0 %v2875
        %v3130 = vpop.f32.mrf.mxu0
        %v3131 = vadd.f32 %v2923, %v3130
        %v3132 = vpop.f32.mrf.mxu0
        %v3133 = vpop.f32.mrf.mxu0
        %v3134 = vpop.f32.mrf.mxu0
        %3135 = vdwg.mxu0
        %3137 = vrot.lane.b32.xlu0 %v3090, 96
        %v3138 = vpop.permute.xlu0 %3137
        %3139 = vrot.lane.b32.xlu0 %v3090, 64
        %v3140 = vpop.permute.xlu0 %3139
        %3141 = vrot.lane.b32.xlu0 %v3090, 32
        %v3142 = vpop.permute.xlu0 %3141
        %3144 = vrot.lane.b32.xlu0 %v3092, 96
        %v3145 = vpop.permute.xlu0 %3144
        %3146 = vrot.lane.b32.xlu0 %v3092, 64
        %v3147 = vpop.permute.xlu0 %3146
        %3148 = vrot.lane.b32.xlu0 %v3092, 32
        %v3149 = vpop.permute.xlu0 %3148
        %3151 = vrot.lane.b32.xlu0 %v3131, 96
        %v3152 = vpop.permute.xlu0 %3151
        %3154 = vrot.lane.b32.xlu0 %v3131, 64
        %v3155 = vpop.permute.xlu0 %3154
        %3157 = vrot.lane.b32.xlu0 %v3131, 32
        %v3158 = vpop.permute.xlu0 %3157
        %v3160 = vsel %vm670, %v3090, 0
        %v3162 = vsel %vm670, %v3092, 0
        %3164 = vmatprep.subr.mxu0 0.0
        %3165 = vmatpush1.xpose.msra.mxu0 0.0
        %3166 = vmatprep.subr.mxu0 0.0
        %3167 = vmatpush1.xpose.msra.mxu0 0.0
        %3168 = vmatprep.subr.mxu0 0.0
        %3169 = vmatpush1.xpose.msra.mxu0 0.0
        %3170 = vmatprep.subr.mxu0 0.0
        %3171 = vmatpush1.xpose.msra.mxu0 0.0
        %3172 = vmatprep.subr.mxu0 0.0
        %3173 = vmatpush1.xpose.msra.mxu0 0.0
        %3174 = vmatprep.subr.mxu0 0.0
        %3175 = vmatpush1.xpose.msra.mxu0 0.0
        %3176 = vmatprep.subr.mxu0 0.0
        %3177 = vmatpush1.xpose.msra.mxu0 0.0
        %3178 = vmatprep.subr.mxu0 0.0
        %3179 = vmatpush1.xpose.msra.mxu0 0.0
        %3180 = vmatprep.subr.mxu0 0.0
        %3181 = vmatpush1.xpose.msra.mxu0 0.0
        %3182 = vmatprep.subr.mxu0 0.0
        %3183 = vmatpush1.xpose.msra.mxu0 0.0
        %3184 = vmatprep.subr.mxu0 0.0
        %3185 = vmatpush1.xpose.msra.mxu0 0.0
        %3186 = vmatprep.subr.mxu0 0.0
        %3187 = vmatpush1.xpose.msra.mxu0 0.0
        %3188 = vmatprep.subr.mxu0 0.0
        %3189 = vmatpush1.xpose.msra.mxu0 0.0
        %3190 = vmatprep.subr.mxu0 0.0
        %3191 = vmatpush1.xpose.msra.mxu0 0.0
        %3192 = vmatprep.subr.mxu0 0.0
        %3193 = vmatpush1.xpose.msra.mxu0 0.0
        %3194 = vmatprep.subr.mxu0 0.0
        %3195 = vmatpush1.xpose.msra.mxu0 %v3162
        %3196 = vmatprep.subr.mxu0 0.0
        %3197 = vmatpush2.xpose.msra.mxu0 0.0
        %3198 = vmatprep.subr.mxu0 0.0
        %3199 = vmatpush2.xpose.msra.mxu0 0.0
        %3200 = vmatprep.subr.mxu0 0.0
        %3201 = vmatpush2.xpose.msra.mxu0 0.0
        %3202 = vmatprep.subr.mxu0 0.0
        %3203 = vmatpush2.xpose.msra.mxu0 0.0
        %3204 = vmatprep.subr.mxu0 0.0
        %3205 = vmatpush2.xpose.msra.mxu0 0.0
        %3206 = vmatprep.subr.mxu0 0.0
        %3207 = vmatpush2.xpose.msra.mxu0 0.0
        %3208 = vmatprep.subr.mxu0 0.0
        %3209 = vmatpush2.xpose.msra.mxu0 0.0
        %3210 = vmatprep.subr.mxu0 0.0
        %3211 = vmatpush2.xpose.msra.mxu0 0.0
        %3212 = vmatprep.subr.mxu0 0.0
        %3213 = vmatpush2.xpose.msra.mxu0 0.0
        %3214 = vmatprep.subr.mxu0 0.0
        %3215 = vmatpush2.xpose.msra.mxu0 0.0
        %3216 = vmatprep.subr.mxu0 0.0
        %3217 = vmatpush2.xpose.msra.mxu0 0.0
        %3218 = vmatprep.subr.mxu0 0.0
        %3219 = vmatpush2.xpose.msra.mxu0 0.0
        %3220 = vmatprep.subr.mxu0 0.0
        %3221 = vmatpush2.xpose.msra.mxu0 0.0
        %3222 = vmatprep.subr.mxu0 0.0
        %3223 = vmatpush2.xpose.msra.mxu0 0.0
        %3224 = vmatprep.subr.mxu0 0.0
        %3225 = vmatpush2.xpose.msra.mxu0 0.0
        %3226 = vmatprep.subr.mxu0 0.0
        %3227 = vmatpush2.xpose.msra.mxu0 0.0
        %3228 = vmatprep.mubr.f32.mxu0 0.0
        %3229 = vmatmul.mubr.f32.gmra.mxu0 %v3160
        %v3230 = vpop.f32.mrf.mxu0
        %v3231 = vadd.f32 0.0, %v3230
        %v3232 = vpop.f32.mrf.mxu0
        %3233 = vdwg.mxu0
        %v3234 = vsel %vm670, %v3138, 0
        %v3236 = vsel %vm670, %v3145, 0
        %3238 = vmatprep.subr.mxu0 0.0
        %3239 = vmatpush1.xpose.msra.mxu0 0.0
        %3240 = vmatprep.subr.mxu0 0.0
        %3241 = vmatpush1.xpose.msra.mxu0 0.0
        %3242 = vmatprep.subr.mxu0 0.0
        %3243 = vmatpush1.xpose.msra.mxu0 0.0
        %3244 = vmatprep.subr.mxu0 0.0
        %3245 = vmatpush1.xpose.msra.mxu0 0.0
        %3246 = vmatprep.subr.mxu0 0.0
        %3247 = vmatpush1.xpose.msra.mxu0 0.0
        %3248 = vmatprep.subr.mxu0 0.0
        %3249 = vmatpush1.xpose.msra.mxu0 0.0
        %3250 = vmatprep.subr.mxu0 0.0
        %3251 = vmatpush1.xpose.msra.mxu0 0.0
        %3252 = vmatprep.subr.mxu0 0.0
        %3253 = vmatpush1.xpose.msra.mxu0 0.0
        %3254 = vmatprep.subr.mxu0 0.0
        %3255 = vmatpush1.xpose.msra.mxu0 0.0
        %3256 = vmatprep.subr.mxu0 0.0
        %3257 = vmatpush1.xpose.msra.mxu0 0.0
        %3258 = vmatprep.subr.mxu0 0.0
        %3259 = vmatpush1.xpose.msra.mxu0 0.0
        %3260 = vmatprep.subr.mxu0 0.0
        %3261 = vmatpush1.xpose.msra.mxu0 0.0
        %3262 = vmatprep.subr.mxu0 0.0
        %3263 = vmatpush1.xpose.msra.mxu0 0.0
        %3264 = vmatprep.subr.mxu0 0.0
        %3265 = vmatpush1.xpose.msra.mxu0 0.0
        %3266 = vmatprep.subr.mxu0 0.0
        %3267 = vmatpush1.xpose.msra.mxu0 0.0
        %3268 = vmatprep.subr.mxu0 0.0
        %3269 = vmatpush1.xpose.msra.mxu0 %v3236
        %3270 = vmatprep.subr.mxu0 0.0
        %3271 = vmatpush2.xpose.msra.mxu0 0.0
        %3272 = vmatprep.subr.mxu0 0.0
        %3273 = vmatpush2.xpose.msra.mxu0 0.0
        %3274 = vmatprep.subr.mxu0 0.0
        %3275 = vmatpush2.xpose.msra.mxu0 0.0
        %3276 = vmatprep.subr.mxu0 0.0
        %3277 = vmatpush2.xpose.msra.mxu0 0.0
        %3278 = vmatprep.subr.mxu0 0.0
        %3279 = vmatpush2.xpose.msra.mxu0 0.0
        %3280 = vmatprep.subr.mxu0 0.0
        %3281 = vmatpush2.xpose.msra.mxu0 0.0
        %3282 = vmatprep.subr.mxu0 0.0
        %3283 = vmatpush2.xpose.msra.mxu0 0.0
        %3284 = vmatprep.subr.mxu0 0.0
        %3285 = vmatpush2.xpose.msra.mxu0 0.0
        %3286 = vmatprep.subr.mxu0 0.0
        %3287 = vmatpush2.xpose.msra.mxu0 0.0
        %3288 = vmatprep.subr.mxu0 0.0
        %3289 = vmatpush2.xpose.msra.mxu0 0.0
        %3290 = vmatprep.subr.mxu0 0.0
        %3291 = vmatpush2.xpose.msra.mxu0 0.0
        %3292 = vmatprep.subr.mxu0 0.0
        %3293 = vmatpush2.xpose.msra.mxu0 0.0
        %3294 = vmatprep.subr.mxu0 0.0
        %3295 = vmatpush2.xpose.msra.mxu0 0.0
        %3296 = vmatprep.subr.mxu0 0.0
        %3297 = vmatpush2.xpose.msra.mxu0 0.0
        %3298 = vmatprep.subr.mxu0 0.0
        %3299 = vmatpush2.xpose.msra.mxu0 0.0
        %3300 = vmatprep.subr.mxu0 0.0
        %3301 = vmatpush2.xpose.msra.mxu0 0.0
        %3302 = vmatprep.mubr.f32.mxu0 0.0
        %3303 = vmatmul.mubr.f32.gmra.mxu0 %v3234
        %v3304 = vpop.f32.mrf.mxu0
        %v3305 = vadd.f32 0.0, %v3304
        %v3306 = vpop.f32.mrf.mxu0
        %3307 = vdwg.mxu0
        %v3308 = vsel %vm670, %v3140, 0
        %v3310 = vsel %vm670, %v3147, 0
        %3312 = vmatprep.subr.mxu0 0.0
        %3313 = vmatpush1.xpose.msra.mxu0 0.0
        %3314 = vmatprep.subr.mxu0 0.0
        %3315 = vmatpush1.xpose.msra.mxu0 0.0
        %3316 = vmatprep.subr.mxu0 0.0
        %3317 = vmatpush1.xpose.msra.mxu0 0.0
        %3318 = vmatprep.subr.mxu0 0.0
        %3319 = vmatpush1.xpose.msra.mxu0 0.0
        %3320 = vmatprep.subr.mxu0 0.0
        %3321 = vmatpush1.xpose.msra.mxu0 0.0
        %3322 = vmatprep.subr.mxu0 0.0
        %3323 = vmatpush1.xpose.msra.mxu0 0.0
        %3324 = vmatprep.subr.mxu0 0.0
        %3325 = vmatpush1.xpose.msra.mxu0 0.0
        %3326 = vmatprep.subr.mxu0 0.0
        %3327 = vmatpush1.xpose.msra.mxu0 0.0
        %3328 = vmatprep.subr.mxu0 0.0
        %3329 = vmatpush1.xpose.msra.mxu0 0.0
        %3330 = vmatprep.subr.mxu0 0.0
        %3331 = vmatpush1.xpose.msra.mxu0 0.0
        %3332 = vmatprep.subr.mxu0 0.0
        %3333 = vmatpush1.xpose.msra.mxu0 0.0
        %3334 = vmatprep.subr.mxu0 0.0
        %3335 = vmatpush1.xpose.msra.mxu0 0.0
        %3336 = vmatprep.subr.mxu0 0.0
        %3337 = vmatpush1.xpose.msra.mxu0 0.0
        %3338 = vmatprep.subr.mxu0 0.0
        %3339 = vmatpush1.xpose.msra.mxu0 0.0
        %3340 = vmatprep.subr.mxu0 0.0
        %3341 = vmatpush1.xpose.msra.mxu0 0.0
        %3342 = vmatprep.subr.mxu0 0.0
        %3343 = vmatpush1.xpose.msra.mxu0 %v3310
        %3344 = vmatprep.subr.mxu0 0.0
        %3345 = vmatpush2.xpose.msra.mxu0 0.0
        %3346 = vmatprep.subr.mxu0 0.0
        %3347 = vmatpush2.xpose.msra.mxu0 0.0
        %3348 = vmatprep.subr.mxu0 0.0
        %3349 = vmatpush2.xpose.msra.mxu0 0.0
        %3350 = vmatprep.subr.mxu0 0.0
        %3351 = vmatpush2.xpose.msra.mxu0 0.0
        %3352 = vmatprep.subr.mxu0 0.0
        %3353 = vmatpush2.xpose.msra.mxu0 0.0
        %3354 = vmatprep.subr.mxu0 0.0
        %3355 = vmatpush2.xpose.msra.mxu0 0.0
        %3356 = vmatprep.subr.mxu0 0.0
        %3357 = vmatpush2.xpose.msra.mxu0 0.0
        %3358 = vmatprep.subr.mxu0 0.0
        %3359 = vmatpush2.xpose.msra.mxu0 0.0
        %3360 = vmatprep.subr.mxu0 0.0
        %3361 = vmatpush2.xpose.msra.mxu0 0.0
        %3362 = vmatprep.subr.mxu0 0.0
        %3363 = vmatpush2.xpose.msra.mxu0 0.0
        %3364 = vmatprep.subr.mxu0 0.0
        %3365 = vmatpush2.xpose.msra.mxu0 0.0
        %3366 = vmatprep.subr.mxu0 0.0
        %3367 = vmatpush2.xpose.msra.mxu0 0.0
        %3368 = vmatprep.subr.mxu0 0.0
        %3369 = vmatpush2.xpose.msra.mxu0 0.0
        %3370 = vmatprep.subr.mxu0 0.0
        %3371 = vmatpush2.xpose.msra.mxu0 0.0
        %3372 = vmatprep.subr.mxu0 0.0
        %3373 = vmatpush2.xpose.msra.mxu0 0.0
        %3374 = vmatprep.subr.mxu0 0.0
        %3375 = vmatpush2.xpose.msra.mxu0 0.0
        %3376 = vmatprep.mubr.f32.mxu0 0.0
        %3377 = vmatmul.mubr.f32.gmra.mxu0 %v3308
        %v3378 = vpop.f32.mrf.mxu0
        %v3379 = vadd.f32 0.0, %v3378
        %v3380 = vpop.f32.mrf.mxu0
        %3381 = vdwg.mxu0
        %v3382 = vsel %vm670, %v3142, 0
        %v3384 = vsel %vm670, %v3149, 0
        %3386 = vmatprep.subr.mxu0 0.0
        %3387 = vmatpush1.xpose.msra.mxu0 0.0
        %3388 = vmatprep.subr.mxu0 0.0
        %3389 = vmatpush1.xpose.msra.mxu0 0.0
        %3390 = vmatprep.subr.mxu0 0.0
        %3391 = vmatpush1.xpose.msra.mxu0 0.0
        %3392 = vmatprep.subr.mxu0 0.0
        %3393 = vmatpush1.xpose.msra.mxu0 0.0
        %3394 = vmatprep.subr.mxu0 0.0
        %3395 = vmatpush1.xpose.msra.mxu0 0.0
        %3396 = vmatprep.subr.mxu0 0.0
        %3397 = vmatpush1.xpose.msra.mxu0 0.0
        %3398 = vmatprep.subr.mxu0 0.0
        %3399 = vmatpush1.xpose.msra.mxu0 0.0
        %3400 = vmatprep.subr.mxu0 0.0
        %3401 = vmatpush1.xpose.msra.mxu0 0.0
        %3402 = vmatprep.subr.mxu0 0.0
        %3403 = vmatpush1.xpose.msra.mxu0 0.0
        %3404 = vmatprep.subr.mxu0 0.0
        %3405 = vmatpush1.xpose.msra.mxu0 0.0
        %3406 = vmatprep.subr.mxu0 0.0
        %3407 = vmatpush1.xpose.msra.mxu0 0.0
        %3408 = vmatprep.subr.mxu0 0.0
        %3409 = vmatpush1.xpose.msra.mxu0 0.0
        %3410 = vmatprep.subr.mxu0 0.0
        %3411 = vmatpush1.xpose.msra.mxu0 0.0
        %3412 = vmatprep.subr.mxu0 0.0
        %3413 = vmatpush1.xpose.msra.mxu0 0.0
        %3414 = vmatprep.subr.mxu0 0.0
        %3415 = vmatpush1.xpose.msra.mxu0 0.0
        %3416 = vmatprep.subr.mxu0 0.0
        %3417 = vmatpush1.xpose.msra.mxu0 %v3384
        %3418 = vmatprep.subr.mxu0 0.0
        %3419 = vmatpush2.xpose.msra.mxu0 0.0
        %3420 = vmatprep.subr.mxu0 0.0
        %3421 = vmatpush2.xpose.msra.mxu0 0.0
        %3422 = vmatprep.subr.mxu0 0.0
        %3423 = vmatpush2.xpose.msra.mxu0 0.0
        %3424 = vmatprep.subr.mxu0 0.0
        %3425 = vmatpush2.xpose.msra.mxu0 0.0
        %3426 = vmatprep.subr.mxu0 0.0
        %3427 = vmatpush2.xpose.msra.mxu0 0.0
        %3428 = vmatprep.subr.mxu0 0.0
        %3429 = vmatpush2.xpose.msra.mxu0 0.0
        %3430 = vmatprep.subr.mxu0 0.0
        %3431 = vmatpush2.xpose.msra.mxu0 0.0
        %3432 = vmatprep.subr.mxu0 0.0
        %3433 = vmatpush2.xpose.msra.mxu0 0.0
        %3434 = vmatprep.subr.mxu0 0.0
        %3435 = vmatpush2.xpose.msra.mxu0 0.0
        %3436 = vmatprep.subr.mxu0 0.0
        %3437 = vmatpush2.xpose.msra.mxu0 0.0
        %3438 = vmatprep.subr.mxu0 0.0
        %3439 = vmatpush2.xpose.msra.mxu0 0.0
        %3440 = vmatprep.subr.mxu0 0.0
        %3441 = vmatpush2.xpose.msra.mxu0 0.0
        %3442 = vmatprep.subr.mxu0 0.0
        %3443 = vmatpush2.xpose.msra.mxu0 0.0
        %3444 = vmatprep.subr.mxu0 0.0
        %3445 = vmatpush2.xpose.msra.mxu0 0.0
        %3446 = vmatprep.subr.mxu0 0.0
        %3447 = vmatpush2.xpose.msra.mxu0 0.0
        %3448 = vmatprep.subr.mxu0 0.0
        %3449 = vmatpush2.xpose.msra.mxu0 0.0
        %3450 = vmatprep.mubr.f32.mxu0 0.0
        %3451 = vmatmul.mubr.f32.gmra.mxu0 %v3382
        %v3452 = vpop.f32.mrf.mxu0
        %v3453 = vadd.f32 0.0, %v3452
        %v3454 = vpop.f32.mrf.mxu0
        %3455 = vdwg.mxu0
        %v3456 = vsel %vm967, %v3231, -inf
        %3457 = vmax.xlane.f32.xlu0 %v3456
        %v3458 = vpop.xlane.xlu0 %3457
        %v3459 = vsel %vm967, %v3305, -inf
        %3460 = vmax.xlane.f32.xlu0 %v3459
        %v3461 = vpop.xlane.xlu0 %3460
        %v3462 = vsel %vm967, %v3379, -inf
        %3463 = vmax.xlane.f32.xlu0 %v3462
        %v3464 = vpop.xlane.xlu0 %3463
        %v3465 = vsel %vm967, %v3453, -inf
        %3466 = vmax.xlane.f32.xlu0 %v3465
        %v3467 = vpop.xlane.xlu0 %3466
        %v3468 = vsub.f32 %v3231, %v3458
        %v3469 = vsub.f32 %v3305, %v3461
        %v3470 = vsub.f32 %v3379, %v3464
        %v3471 = vsub.f32 %v3453, %v3467
        %v3472 = vmul.f32 %v3468, 1.442695
        %v3473 = vpow.pop %v3472
        %v3474 = vmul.f32 %v3469, 1.442695
        %v3475 = vpow.pop %v3474
        %v3476 = vmul.f32 %v3470, 1.442695
        %v3477 = vpow.pop %v3476
        %v3478 = vmul.f32 %v3471, 1.442695
        %v3479 = vpow.pop %v3478
        %v3480 = vsel %vm967, %v3473, 0.0
        %3481 = vadd.xlane.f32.xlu0 %v3480
        %v3482 = vpop.xlane.xlu0 %3481
        %v3483 = vsel %vm967, %v3475, 0.0
        %3484 = vadd.xlane.f32.xlu0 %v3483
        %v3485 = vpop.xlane.xlu0 %3484
        %v3486 = vsel %vm967, %v3477, 0.0
        %3487 = vadd.xlane.f32.xlu0 %v3486
        %v3488 = vpop.xlane.xlu0 %3487
        %v3489 = vsel %vm967, %v3479, 0.0
        %3490 = vadd.xlane.f32.xlu0 %v3489
        %v3491 = vpop.xlane.xlu0 %3490
        %v3492 = vrcp.pop %v3482
        %v3493 = vrcp.pop %v3485
        %v3494 = vrcp.pop %v3488
        %v3495 = vrcp.pop %v3491
        %v3496 = vmul.f32 %v3473, %v3492
        %v3497 = vmul.f32 %v3475, %v3493
        %v3498 = vmul.f32 %v3477, %v3494
        %v3499 = vmul.f32 %v3479, %v3495
        %v3501 = vsel %vm967, %v3496, 0
        %3503 = vmatprep.subr.mxu0 0.0
        %3504 = vmatpush1.msra.mxu0 0.0
        %3505 = vmatprep.subr.mxu0 0.0
        %3506 = vmatpush1.msra.mxu0 0.0
        %3507 = vmatprep.subr.mxu0 0.0
        %3508 = vmatpush1.msra.mxu0 0.0
        %3509 = vmatprep.subr.mxu0 0.0
        %3510 = vmatpush1.msra.mxu0 0.0
        %3511 = vmatprep.subr.mxu0 0.0
        %3512 = vmatpush1.msra.mxu0 0.0
        %3513 = vmatprep.subr.mxu0 0.0
        %3514 = vmatpush1.msra.mxu0 0.0
        %3515 = vmatprep.subr.mxu0 0.0
        %3516 = vmatpush1.msra.mxu0 0.0
        %3517 = vmatprep.subr.mxu0 0.0
        %3518 = vmatpush1.msra.mxu0 0.0
        %3519 = vmatprep.subr.mxu0 0.0
        %3520 = vmatpush1.msra.mxu0 0.0
        %3521 = vmatprep.subr.mxu0 0.0
        %3522 = vmatpush1.msra.mxu0 0.0
        %3523 = vmatprep.subr.mxu0 0.0
        %3524 = vmatpush1.msra.mxu0 0.0
        %3525 = vmatprep.subr.mxu0 0.0
        %3526 = vmatpush1.msra.mxu0 0.0
        %3527 = vmatprep.subr.mxu0 0.0
        %3528 = vmatpush1.msra.mxu0 0.0
        %3529 = vmatprep.subr.mxu0 0.0
        %3530 = vmatpush1.msra.mxu0 0.0
        %3531 = vmatprep.subr.mxu0 0.0
        %3532 = vmatpush1.msra.mxu0 0.0
        %3533 = vmatprep.subr.mxu0 0.0
        %3534 = vmatpush1.msra.mxu0 %v3131
        %3535 = vmatprep.subr.mxu0 0.0
        %3536 = vmatpush2.msra.mxu0 0.0
        %3537 = vmatprep.subr.mxu0 0.0
        %3538 = vmatpush2.msra.mxu0 0.0
        %3539 = vmatprep.subr.mxu0 0.0
        %3540 = vmatpush2.msra.mxu0 0.0
        %3541 = vmatprep.subr.mxu0 0.0
        %3542 = vmatpush2.msra.mxu0 0.0
        %3543 = vmatprep.subr.mxu0 0.0
        %3544 = vmatpush2.msra.mxu0 0.0
        %3545 = vmatprep.subr.mxu0 0.0
        %3546 = vmatpush2.msra.mxu0 0.0
        %3547 = vmatprep.subr.mxu0 0.0
        %3548 = vmatpush2.msra.mxu0 0.0
        %3549 = vmatprep.subr.mxu0 0.0
        %3550 = vmatpush2.msra.mxu0 0.0
        %3551 = vmatprep.subr.mxu0 0.0
        %3552 = vmatpush2.msra.mxu0 0.0
        %3553 = vmatprep.subr.mxu0 0.0
        %3554 = vmatpush2.msra.mxu0 0.0
        %3555 = vmatprep.subr.mxu0 0.0
        %3556 = vmatpush2.msra.mxu0 0.0
        %3557 = vmatprep.subr.mxu0 0.0
        %3558 = vmatpush2.msra.mxu0 0.0
        %3559 = vmatprep.subr.mxu0 0.0
        %3560 = vmatpush2.msra.mxu0 0.0
        %3561 = vmatprep.subr.mxu0 0.0
        %3562 = vmatpush2.msra.mxu0 0.0
        %3563 = vmatprep.subr.mxu0 0.0
        %3564 = vmatpush2.msra.mxu0 0.0
        %3565 = vmatprep.subr.mxu0 0.0
        %3566 = vmatpush2.msra.mxu0 0.0
        %3567 = vmatprep.mubr.f32.mxu0 0.0
        %3568 = vmatmul.mubr.f32.gmra.mxu0 %v3501
        %v3569 = vpop.f32.mrf.mxu0
        %v3570 = vadd.f32 0.0, %v3569
        %v3571 = vpop.f32.mrf.mxu0
        %3572 = vdwg.mxu0
        %v3574 = vsel %vm967, %v3497, 0
        %3576 = vmatprep.subr.mxu0 0.0
        %3577 = vmatpush1.msra.mxu0 0.0
        %3578 = vmatprep.subr.mxu0 0.0
        %3579 = vmatpush1.msra.mxu0 0.0
        %3580 = vmatprep.subr.mxu0 0.0
        %3581 = vmatpush1.msra.mxu0 0.0
        %3582 = vmatprep.subr.mxu0 0.0
        %3583 = vmatpush1.msra.mxu0 0.0
        %3584 = vmatprep.subr.mxu0 0.0
        %3585 = vmatpush1.msra.mxu0 0.0
        %3586 = vmatprep.subr.mxu0 0.0
        %3587 = vmatpush1.msra.mxu0 0.0
        %3588 = vmatprep.subr.mxu0 0.0
        %3589 = vmatpush1.msra.mxu0 0.0
        %3590 = vmatprep.subr.mxu0 0.0
        %3591 = vmatpush1.msra.mxu0 0.0
        %3592 = vmatprep.subr.mxu0 0.0
        %3593 = vmatpush1.msra.mxu0 0.0
        %3594 = vmatprep.subr.mxu0 0.0
        %3595 = vmatpush1.msra.mxu0 0.0
        %3596 = vmatprep.subr.mxu0 0.0
        %3597 = vmatpush1.msra.mxu0 0.0
        %3598 = vmatprep.subr.mxu0 0.0
        %3599 = vmatpush1.msra.mxu0 0.0
        %3600 = vmatprep.subr.mxu0 0.0
        %3601 = vmatpush1.msra.mxu0 0.0
        %3602 = vmatprep.subr.mxu0 0.0
        %3603 = vmatpush1.msra.mxu0 0.0
        %3604 = vmatprep.subr.mxu0 0.0
        %3605 = vmatpush1.msra.mxu0 0.0
        %3606 = vmatprep.subr.mxu0 0.0
        %3607 = vmatpush1.msra.mxu0 %v3152
        %3608 = vmatprep.subr.mxu0 0.0
        %3609 = vmatpush2.msra.mxu0 0.0
        %3610 = vmatprep.subr.mxu0 0.0
        %3611 = vmatpush2.msra.mxu0 0.0
        %3612 = vmatprep.subr.mxu0 0.0
        %3613 = vmatpush2.msra.mxu0 0.0
        %3614 = vmatprep.subr.mxu0 0.0
        %3615 = vmatpush2.msra.mxu0 0.0
        %3616 = vmatprep.subr.mxu0 0.0
        %3617 = vmatpush2.msra.mxu0 0.0
        %3618 = vmatprep.subr.mxu0 0.0
        %3619 = vmatpush2.msra.mxu0 0.0
        %3620 = vmatprep.subr.mxu0 0.0
        %3621 = vmatpush2.msra.mxu0 0.0
        %3622 = vmatprep.subr.mxu0 0.0
        %3623 = vmatpush2.msra.mxu0 0.0
        %3624 = vmatprep.subr.mxu0 0.0
        %3625 = vmatpush2.msra.mxu0 0.0
        %3626 = vmatprep.subr.mxu0 0.0
        %3627 = vmatpush2.msra.mxu0 0.0
        %3628 = vmatprep.subr.mxu0 0.0
        %3629 = vmatpush2.msra.mxu0 0.0
        %3630 = vmatprep.subr.mxu0 0.0
        %3631 = vmatpush2.msra.mxu0 0.0
        %3632 = vmatprep.subr.mxu0 0.0
        %3633 = vmatpush2.msra.mxu0 0.0
        %3634 = vmatprep.subr.mxu0 0.0
        %3635 = vmatpush2.msra.mxu0 0.0
        %3636 = vmatprep.subr.mxu0 0.0
        %3637 = vmatpush2.msra.mxu0 0.0
        %3638 = vmatprep.subr.mxu0 0.0
        %3639 = vmatpush2.msra.mxu0 0.0
        %3640 = vmatprep.mubr.f32.mxu0 0.0
        %3641 = vmatmul.mubr.f32.gmra.mxu0 %v3574
        %v3642 = vpop.f32.mrf.mxu0
        %v3643 = vadd.f32 0.0, %v3642
        %v3644 = vpop.f32.mrf.mxu0
        %3645 = vdwg.mxu0
        %v3647 = vsel %vm967, %v3498, 0
        %3649 = vmatprep.subr.mxu0 0.0
        %3650 = vmatpush1.msra.mxu0 0.0
        %3651 = vmatprep.subr.mxu0 0.0
        %3652 = vmatpush1.msra.mxu0 0.0
        %3653 = vmatprep.subr.mxu0 0.0
        %3654 = vmatpush1.msra.mxu0 0.0
        %3655 = vmatprep.subr.mxu0 0.0
        %3656 = vmatpush1.msra.mxu0 0.0
        %3657 = vmatprep.subr.mxu0 0.0
        %3658 = vmatpush1.msra.mxu0 0.0
        %3659 = vmatprep.subr.mxu0 0.0
        %3660 = vmatpush1.msra.mxu0 0.0
        %3661 = vmatprep.subr.mxu0 0.0
        %3662 = vmatpush1.msra.mxu0 0.0
        %3663 = vmatprep.subr.mxu0 0.0
        %3664 = vmatpush1.msra.mxu0 0.0
        %3665 = vmatprep.subr.mxu0 0.0
        %3666 = vmatpush1.msra.mxu0 0.0
        %3667 = vmatprep.subr.mxu0 0.0
        %3668 = vmatpush1.msra.mxu0 0.0
        %3669 = vmatprep.subr.mxu0 0.0
        %3670 = vmatpush1.msra.mxu0 0.0
        %3671 = vmatprep.subr.mxu0 0.0
        %3672 = vmatpush1.msra.mxu0 0.0
        %3673 = vmatprep.subr.mxu0 0.0
        %3674 = vmatpush1.msra.mxu0 0.0
        %3675 = vmatprep.subr.mxu0 0.0
        %3676 = vmatpush1.msra.mxu0 0.0
        %3677 = vmatprep.subr.mxu0 0.0
        %3678 = vmatpush1.msra.mxu0 0.0
        %3679 = vmatprep.subr.mxu0 0.0
        %3680 = vmatpush1.msra.mxu0 %v3155
        %3681 = vmatprep.subr.mxu0 0.0
        %3682 = vmatpush2.msra.mxu0 0.0
        %3683 = vmatprep.subr.mxu0 0.0
        %3684 = vmatpush2.msra.mxu0 0.0
        %3685 = vmatprep.subr.mxu0 0.0
        %3686 = vmatpush2.msra.mxu0 0.0
        %3687 = vmatprep.subr.mxu0 0.0
        %3688 = vmatpush2.msra.mxu0 0.0
        %3689 = vmatprep.subr.mxu0 0.0
        %3690 = vmatpush2.msra.mxu0 0.0
        %3691 = vmatprep.subr.mxu0 0.0
        %3692 = vmatpush2.msra.mxu0 0.0
        %3693 = vmatprep.subr.mxu0 0.0
        %3694 = vmatpush2.msra.mxu0 0.0
        %3695 = vmatprep.subr.mxu0 0.0
        %3696 = vmatpush2.msra.mxu0 0.0
        %3697 = vmatprep.subr.mxu0 0.0
        %3698 = vmatpush2.msra.mxu0 0.0
        %3699 = vmatprep.subr.mxu0 0.0
        %3700 = vmatpush2.msra.mxu0 0.0
        %3701 = vmatprep.subr.mxu0 0.0
        %3702 = vmatpush2.msra.mxu0 0.0
        %3703 = vmatprep.subr.mxu0 0.0
        %3704 = vmatpush2.msra.mxu0 0.0
        %3705 = vmatprep.subr.mxu0 0.0
        %3706 = vmatpush2.msra.mxu0 0.0
        %3707 = vmatprep.subr.mxu0 0.0
        %3708 = vmatpush2.msra.mxu0 0.0
        %3709 = vmatprep.subr.mxu0 0.0
        %3710 = vmatpush2.msra.mxu0 0.0
        %3711 = vmatprep.subr.mxu0 0.0
        %3712 = vmatpush2.msra.mxu0 0.0
        %3713 = vmatprep.mubr.f32.mxu0 0.0
        %3714 = vmatmul.mubr.f32.gmra.mxu0 %v3647
        %v3715 = vpop.f32.mrf.mxu0
        %v3716 = vadd.f32 0.0, %v3715
        %v3717 = vpop.f32.mrf.mxu0
        %3718 = vdwg.mxu0
        %v3720 = vsel %vm967, %v3499, 0
        %3722 = vmatprep.subr.mxu0 0.0
        %3723 = vmatpush1.msra.mxu0 0.0
        %3724 = vmatprep.subr.mxu0 0.0
        %3725 = vmatpush1.msra.mxu0 0.0
        %3726 = vmatprep.subr.mxu0 0.0
        %3727 = vmatpush1.msra.mxu0 0.0
        %3728 = vmatprep.subr.mxu0 0.0
        %3729 = vmatpush1.msra.mxu0 0.0
        %3730 = vmatprep.subr.mxu0 0.0
        %3731 = vmatpush1.msra.mxu0 0.0
        %3732 = vmatprep.subr.mxu0 0.0
        %3733 = vmatpush1.msra.mxu0 0.0
        %3734 = vmatprep.subr.mxu0 0.0
        %3735 = vmatpush1.msra.mxu0 0.0
        %3736 = vmatprep.subr.mxu0 0.0
        %3737 = vmatpush1.msra.mxu0 0.0
        %3738 = vmatprep.subr.mxu0 0.0
        %3739 = vmatpush1.msra.mxu0 0.0
        %3740 = vmatprep.subr.mxu0 0.0
        %3741 = vmatpush1.msra.mxu0 0.0
        %3742 = vmatprep.subr.mxu0 0.0
        %3743 = vmatpush1.msra.mxu0 0.0
        %3744 = vmatprep.subr.mxu0 0.0
        %3745 = vmatpush1.msra.mxu0 0.0
        %3746 = vmatprep.subr.mxu0 0.0
        %3747 = vmatpush1.msra.mxu0 0.0
        %3748 = vmatprep.subr.mxu0 0.0
        %3749 = vmatpush1.msra.mxu0 0.0
        %3750 = vmatprep.subr.mxu0 0.0
        %3751 = vmatpush1.msra.mxu0 0.0
        %3752 = vmatprep.subr.mxu0 0.0
        %3753 = vmatpush1.msra.mxu0 %v3158
        %3754 = vmatprep.subr.mxu0 0.0
        %3755 = vmatpush2.msra.mxu0 0.0
        %3756 = vmatprep.subr.mxu0 0.0
        %3757 = vmatpush2.msra.mxu0 0.0
        %3758 = vmatprep.subr.mxu0 0.0
        %3759 = vmatpush2.msra.mxu0 0.0
        %3760 = vmatprep.subr.mxu0 0.0
        %3761 = vmatpush2.msra.mxu0 0.0
        %3762 = vmatprep.subr.mxu0 0.0
        %3763 = vmatpush2.msra.mxu0 0.0
        %3764 = vmatprep.subr.mxu0 0.0
        %3765 = vmatpush2.msra.mxu0 0.0
        %3766 = vmatprep.subr.mxu0 0.0
        %3767 = vmatpush2.msra.mxu0 0.0
        %3768 = vmatprep.subr.mxu0 0.0
        %3769 = vmatpush2.msra.mxu0 0.0
        %3770 = vmatprep.subr.mxu0 0.0
        %3771 = vmatpush2.msra.mxu0 0.0
        %3772 = vmatprep.subr.mxu0 0.0
        %3773 = vmatpush2.msra.mxu0 0.0
        %3774 = vmatprep.subr.mxu0 0.0
        %3775 = vmatpush2.msra.mxu0 0.0
        %3776 = vmatprep.subr.mxu0 0.0
        %3777 = vmatpush2.msra.mxu0 0.0
        %3778 = vmatprep.subr.mxu0 0.0
        %3779 = vmatpush2.msra.mxu0 0.0
        %3780 = vmatprep.subr.mxu0 0.0
        %3781 = vmatpush2.msra.mxu0 0.0
        %3782 = vmatprep.subr.mxu0 0.0
        %3783 = vmatpush2.msra.mxu0 0.0
        %3784 = vmatprep.subr.mxu0 0.0
        %3785 = vmatpush2.msra.mxu0 0.0
        %3786 = vmatprep.mubr.f32.mxu0 0.0
        %3787 = vmatmul.mubr.f32.gmra.mxu0 %v3720
        %v3788 = vpop.f32.mrf.mxu0
        %v3789 = vadd.f32 0.0, %v3788
        %v3790 = vpop.f32.mrf.mxu0
        %3791 = vdwg.mxu0
        %3793 = vrot.lane.b32.xlu0 %v3643, 32
        %v3794 = vpop.permute.xlu0 %3793
        %3797 = vrot.lane.b32.xlu0 %v3716, 64
        %v3798 = vpop.permute.xlu0 %3797
        %3801 = vrot.lane.b32.xlu0 %v3789, 96
        %v3802 = vpop.permute.xlu0 %3801
        %v3804 = vsel %vm670, %v3570, %v3794
        %v3805 = vsel %vm1317, %v3804, %v3798
        %v3806 = vsel %vm1319, %v3805, %v3802
        %v3807 = vpack.c.bf16 %v3806, %v3806
        %v3808 = vld [vmem:[%s2876 + $0xc] sm:$0xf]
        %v3809 = vld [vmem:[%s2876 + $0x34] sm:$0xf]
        %v3810 = vld [vmem:[%s2876 + $0x5c] sm:$0xf]
        %v3811 = vld [vmem:[%s2876 + $0x84] sm:$0xf]
        %v3812 = vld [vmem:[%s2876 + $0xac] sm:$0xf]
        %v3813 = vld [vmem:[%s2876 + $0xd4] sm:$0xf]
        %v3814 = vld [vmem:[%s2876 + $0xfc] sm:$0xf]
        %v3815 = vld [vmem:[%s2876 + $0x124] sm:$0xf]
        %v3816 = vld [vmem:[%s2876 + $0x14c] sm:$0xf]
        %v3817 = vld [vmem:[%s2876 + $0x174] sm:$0xf]
        %v3818 = vld [vmem:[%s2876 + $0x19c] sm:$0xf]
        %v3819 = vld [vmem:[%s2876 + $0x1c4] sm:$0xf]
        %v3820 = vld [vmem:[%s2876 + $0x1ec] sm:$0xf]
        %v3821 = vld [vmem:[%s2876 + $0x214] sm:$0xf]
        %v3822 = vld [vmem:[%s2876 + $0x23c] sm:$0xf]
        %v3823 = vld [vmem:[%s2876 + $0x264] sm:$0xf]
        %v3824 = vld [vmem:[%s2909 + $0x3] sm:$0x1]
        %v3826 = vlaneseq
        %v3827 = vshrl.u32 %v3826, 7
        %v3828 = vsub.s32 0, %v3827
        %v3829 = vrot.slane %v3824, %v3828
        %v3847 = vunpack.c.l.b16 %v3808
        %v3848 = vunpack.c.l.b16 %v3809
        %v3849 = vunpack.c.l.b16 %v3810
        %v3850 = vunpack.c.l.b16 %v3811
        %v3851 = vunpack.c.l.b16 %v3812
        %v3852 = vunpack.c.l.b16 %v3813
        %v3853 = vunpack.c.l.b16 %v3814
        %v3854 = vunpack.c.l.b16 %v3815
        %v3855 = vunpack.c.l.b16 %v3816
        %v3856 = vunpack.c.l.b16 %v3817
        %v3857 = vunpack.c.l.b16 %v3818
        %v3858 = vunpack.c.l.b16 %v3819
        %v3859 = vunpack.c.l.b16 %v3820
        %v3860 = vunpack.c.l.b16 %v3821
        %v3861 = vunpack.c.l.b16 %v3822
        %v3862 = vunpack.c.l.b16 %v3823
        %v3863 = vpack.c.b16 %v3848, %v3847
        %v3864 = vpack.c.b16 %v3850, %v3849
        %v3865 = vpack.c.b16 %v3852, %v3851
        %v3866 = vpack.c.b16 %v3854, %v3853
        %v3867 = vpack.c.b16 %v3856, %v3855
        %v3868 = vpack.c.b16 %v3858, %v3857
        %v3869 = vpack.c.b16 %v3860, %v3859
        %v3870 = vpack.c.b16 %v3862, %v3861
        %3879 = vmatprep.subr.bf16.mxu0 0
        %3880 = vmatpush1.bf16.msra.mxu0 %v3870
        %3881 = vmatprep.subr.bf16.mxu0 0
        %3882 = vmatpush1.bf16.msra.mxu0 %v3869
        %3883 = vmatprep.subr.bf16.mxu0 0
        %3884 = vmatpush1.bf16.msra.mxu0 %v3868
        %3885 = vmatprep.subr.bf16.mxu0 0
        %3886 = vmatpush1.bf16.msra.mxu0 %v3867
        %3887 = vmatprep.subr.bf16.mxu0 0
        %3888 = vmatpush1.bf16.msra.mxu0 %v3866
        %3889 = vmatprep.subr.bf16.mxu0 0
        %3890 = vmatpush1.bf16.msra.mxu0 %v3865
        %3891 = vmatprep.subr.bf16.mxu0 0
        %3892 = vmatpush1.bf16.msra.mxu0 %v3864
        %3893 = vmatprep.subr.bf16.mxu0 0
        %3894 = vmatpush1.bf16.msra.mxu0 %v3863
        %3895 = vmatprep.subr.bf16.mxu0 0
        %3896 = vmatpush2.bf16.msra.mxu0 0
        %3897 = vmatprep.subr.bf16.mxu0 0
        %3898 = vmatpush2.bf16.msra.mxu0 0
        %3899 = vmatprep.subr.bf16.mxu0 0
        %3900 = vmatpush2.bf16.msra.mxu0 0
        %3901 = vmatprep.subr.bf16.mxu0 0
        %3902 = vmatpush2.bf16.msra.mxu0 0
        %3903 = vmatprep.subr.bf16.mxu0 0
        %3904 = vmatpush2.bf16.msra.mxu0 0
        %3905 = vmatprep.subr.bf16.mxu0 0
        %3906 = vmatpush2.bf16.msra.mxu0 0
        %3907 = vmatprep.subr.bf16.mxu0 0
        %3908 = vmatpush2.bf16.msra.mxu0 0
        %3909 = vmatprep.subr.bf16.mxu0 0
        %3910 = vmatpush2.bf16.msra.mxu0 0
        %3911 = vmatprep.mubr.bf16.mxu0 0
        %3912 = vmatmul.mubr.bf16.gmra.mxu0 %v3807
        %v3913 = vpop.f32.mrf.mxu0
        %v3914 = vadd.f32 %v3829, %v3913
        %v3915 = vpop.f32.mrf.mxu0
        %v3916 = vpop.f32.mrf.mxu0
        %v3917 = vpop.f32.mrf.mxu0
        %3918 = vdwg.mxu0
        %v3919 = vadd.f32 %v2872, %v3914
        %3920 = vadd.xlane.f32.xlu0 %v3919
        %v3921 = vpop.xlane.xlu0 %3920
        %v3922 = vmul.f32 %v3921, %v1436
        %v3923 = vsub.f32 %v3919, %v3922
        %v3924 = vmul.f32 %v3923, %v3923
        %3925 = vadd.xlane.f32.xlu0 %v3924
        %v3926 = vpop.xlane.xlu0 %3925
        %v3927 = vmul.f32 %v3926, %v1436
        %v3928 = vadd.f32 %v3927, 1e-05
        %v3929 = vrsqrt.pop %v3928
        %v3930 = vmul.f32 %v3923, %v3929
        %v3931 = vlaneseq
        %v3932 = vshrl.u32 %v3931, 7
        %v3933 = vsub.s32 0, %v3932
        %v3934 = vrot.slane %v2874, %v3933
        %v3935 = vmul.f32 %v3930, %v3934
        %v3936 = vlaneseq
        %v3937 = vshrl.u32 %v3936, 7
        %v3938 = vsub.s32 1, %v3937
        %v3939 = vrot.slane %v2874, %v3938
        %v3940 = vadd.f32 %v3935, %v3939
        %v3941 = vpack.c.bf16 %v3940, %v3940
        %v3942 = vld [vmem:[%s2876 + $0x10] sm:$0xf]
        %v3943 = vld [vmem:[%s2876 + $0x38] sm:$0xf]
        %v3944 = vld [vmem:[%s2876 + $0x60] sm:$0xf]
        %v3945 = vld [vmem:[%s2876 + $0x88] sm:$0xf]
        %v3946 = vld [vmem:[%s2876 + $0xb0] sm:$0xf]
        %v3947 = vld [vmem:[%s2876 + $0xd8] sm:$0xf]
        %v3948 = vld [vmem:[%s2876 + $0x100] sm:$0xf]
        %v3949 = vld [vmem:[%s2876 + $0x128] sm:$0xf]
        %v3950 = vld [vmem:[%s2876 + $0x150] sm:$0xf]
        %v3951 = vld [vmem:[%s2876 + $0x178] sm:$0xf]
        %v3952 = vld [vmem:[%s2876 + $0x1a0] sm:$0xf]
        %v3953 = vld [vmem:[%s2876 + $0x1c8] sm:$0xf]
        %v3954 = vld [vmem:[%s2876 + $0x1f0] sm:$0xf]
        %v3955 = vld [vmem:[%s2876 + $0x218] sm:$0xf]
        %v3956 = vld [vmem:[%s2876 + $0x240] sm:$0xf]
        %v3957 = vld [vmem:[%s2876 + $0x268] sm:$0xf]
        %v3958 = vld [vmem:[%s2909 + $0x4] sm:$0x1]
        %v3960 = vlaneseq
        %v3961 = vshrl.u32 %v3960, 7
        %v3962 = vsub.s32 0, %v3961
        %v3963 = vrot.slane %v3958, %v3962
        %v3981 = vunpack.c.l.b16 %v3942
        %v3982 = vunpack.c.l.b16 %v3943
        %v3983 = vunpack.c.l.b16 %v3944
        %v3984 = vunpack.c.l.b16 %v3945
        %v3985 = vunpack.c.l.b16 %v3946
        %v3986 = vunpack.c.l.b16 %v3947
        %v3987 = vunpack.c.l.b16 %v3948
        %v3988 = vunpack.c.l.b16 %v3949
        %v3989 = vunpack.c.l.b16 %v3950
        %v3990 = vunpack.c.l.b16 %v3951
        %v3991 = vunpack.c.l.b16 %v3952
        %v3992 = vunpack.c.l.b16 %v3953
        %v3993 = vunpack.c.l.b16 %v3954
        %v3994 = vunpack.c.l.b16 %v3955
        %v3995 = vunpack.c.l.b16 %v3956
        %v3996 = vunpack.c.l.b16 %v3957
        %v3997 = vpack.c.b16 %v3982, %v3981
        %v3998 = vpack.c.b16 %v3984, %v3983
        %v3999 = vpack.c.b16 %v3986, %v3985
        %v4000 = vpack.c.b16 %v3988, %v3987
        %v4001 = vpack.c.b16 %v3990, %v3989
        %v4002 = vpack.c.b16 %v3992, %v3991
        %v4003 = vpack.c.b16 %v3994, %v3993
        %v4004 = vpack.c.b16 %v3996, %v3995
        %4013 = vmatprep.subr.bf16.mxu0 0
        %4014 = vmatpush1.bf16.msra.mxu0 %v4004
        %4015 = vmatprep.subr.bf16.mxu0 0
        %4016 = vmatpush1.bf16.msra.mxu0 %v4003
        %4017 = vmatprep.subr.bf16.mxu0 0
        %4018 = vmatpush1.bf16.msra.mxu0 %v4002
        %4019 = vmatprep.subr.bf16.mxu0 0
        %4020 = vmatpush1.bf16.msra.mxu0 %v4001
        %4021 = vmatprep.subr.bf16.mxu0 0
        %4022 = vmatpush1.bf16.msra.mxu0 %v4000
        %4023 = vmatprep.subr.bf16.mxu0 0
        %4024 = vmatpush1.bf16.msra.mxu0 %v3999
        %4025 = vmatprep.subr.bf16.mxu0 0
        %4026 = vmatpush1.bf16.msra.mxu0 %v3998
        %4027 = vmatprep.subr.bf16.mxu0 0
        %4028 = vmatpush1.bf16.msra.mxu0 %v3997
        %4029 = vmatprep.subr.bf16.mxu0 0
        %4030 = vmatpush2.bf16.msra.mxu0 0
        %4031 = vmatprep.subr.bf16.mxu0 0
        %4032 = vmatpush2.bf16.msra.mxu0 0
        %4033 = vmatprep.subr.bf16.mxu0 0
        %4034 = vmatpush2.bf16.msra.mxu0 0
        %4035 = vmatprep.subr.bf16.mxu0 0
        %4036 = vmatpush2.bf16.msra.mxu0 0
        %4037 = vmatprep.subr.bf16.mxu0 0
        %4038 = vmatpush2.bf16.msra.mxu0 0
        %4039 = vmatprep.subr.bf16.mxu0 0
        %4040 = vmatpush2.bf16.msra.mxu0 0
        %4041 = vmatprep.subr.bf16.mxu0 0
        %4042 = vmatpush2.bf16.msra.mxu0 0
        %4043 = vmatprep.subr.bf16.mxu0 0
        %4044 = vmatpush2.bf16.msra.mxu0 0
        %4045 = vmatprep.mubr.bf16.mxu0 0
        %4046 = vmatmul.mubr.bf16.gmra.mxu0 %v3941
        %v4047 = vpop.f32.mrf.mxu0
        %v4048 = vadd.f32 %v3963, %v4047
        %v4049 = vpop.f32.mrf.mxu0
        %v4050 = vpop.f32.mrf.mxu0
        %v4051 = vpop.f32.mrf.mxu0
        %4052 = vdwg.mxu0
        %v4053 = vld [vmem:[%s2876 + $0x14] sm:$0xff]
        %v4054 = vld [vmem:[%s2876 + $0x3c] sm:$0xff]
        %v4055 = vld [vmem:[%s2876 + $0x64] sm:$0xff]
        %v4056 = vld [vmem:[%s2876 + $0x8c] sm:$0xff]
        %v4057 = vld [vmem:[%s2876 + $0xb4] sm:$0xff]
        %v4058 = vld [vmem:[%s2876 + $0xdc] sm:$0xff]
        %v4059 = vld [vmem:[%s2876 + $0x104] sm:$0xff]
        %v4060 = vld [vmem:[%s2876 + $0x12c] sm:$0xff]
        %v4061 = vld [vmem:[%s2876 + $0x154] sm:$0xff]
        %v4062 = vld [vmem:[%s2876 + $0x17c] sm:$0xff]
        %v4063 = vld [vmem:[%s2876 + $0x1a4] sm:$0xff]
        %v4064 = vld [vmem:[%s2876 + $0x1cc] sm:$0xff]
        %v4065 = vld [vmem:[%s2876 + $0x1f4] sm:$0xff]
        %v4066 = vld [vmem:[%s2876 + $0x21c] sm:$0xff]
        %v4067 = vld [vmem:[%s2876 + $0x244] sm:$0xff]
        %v4068 = vld [vmem:[%s2876 + $0x26c] sm:$0xff]
        %v4069 = vld [vmem:[%s2909 + $0x5] sm:$0x3]
        %v4071 = vlaneseq
        %v4072 = vshrl.u32 %v4071, 7
        %v4073 = vsub.s32 0, %v4072
        %v4074 = vrot.slane %v4069, %v4073
        %v4075 = vlaneseq
        %v4076 = vshrl.u32 %v4075, 7
        %v4077 = vsub.s32 1, %v4076
        %v4078 = vrot.slane %v4069, %v4077
        %v4097 = vunpack.c.l.b16 %v4053
        %v4098 = vunpack.c.h.b16 %v4053
        %v4099 = vunpack.c.l.b16 %v4054
        %v4100 = vunpack.c.h.b16 %v4054
        %v4101 = vunpack.c.l.b16 %v4055
        %v4102 = vunpack.c.h.b16 %v4055
        %v4103 = vunpack.c.l.b16 %v4056
        %v4104 = vunpack.c.h.b16 %v4056
        %v4105 = vunpack.c.l.b16 %v4057
        %v4106 = vunpack.c.h.b16 %v4057
        %v4107 = vunpack.c.l.b16 %v4058
        %v4108 = vunpack.c.h.b16 %v4058
        %v4109 = vunpack.c.l.b16 %v4059
        %v4110 = vunpack.c.h.b16 %v4059
        %v4111 = vunpack.c.l.b16 %v4060
        %v4112 = vunpack.c.h.b16 %v4060
        %v4113 = vunpack.c.l.b16 %v4061
        %v4114 = vunpack.c.h.b16 %v4061
        %v4115 = vunpack.c.l.b16 %v4062
        %v4116 = vunpack.c.h.b16 %v4062
        %v4117 = vunpack.c.l.b16 %v4063
        %v4118 = vunpack.c.h.b16 %v4063
        %v4119 = vunpack.c.l.b16 %v4064
        %v4120 = vunpack.c.h.b16 %v4064
        %v4121 = vunpack.c.l.b16 %v4065
        %v4122 = vunpack.c.h.b16 %v4065
        %v4123 = vunpack.c.l.b16 %v4066
        %v4124 = vunpack.c.h.b16 %v4066
        %v4125 = vunpack.c.l.b16 %v4067
        %v4126 = vunpack.c.h.b16 %v4067
        %v4127 = vunpack.c.l.b16 %v4068
        %v4128 = vunpack.c.h.b16 %v4068
        %v4129 = vpack.c.b16 %v4099, %v4097
        %v4130 = vpack.c.b16 %v4100, %v4098
        %v4131 = vpack.c.b16 %v4103, %v4101
        %v4132 = vpack.c.b16 %v4104, %v4102
        %v4133 = vpack.c.b16 %v4107, %v4105
        %v4134 = vpack.c.b16 %v4108, %v4106
        %v4135 = vpack.c.b16 %v4111, %v4109
        %v4136 = vpack.c.b16 %v4112, %v4110
        %v4137 = vpack.c.b16 %v4115, %v4113
        %v4138 = vpack.c.b16 %v4116, %v4114
        %v4139 = vpack.c.b16 %v4119, %v4117
        %v4140 = vpack.c.b16 %v4120, %v4118
        %v4141 = vpack.c.b16 %v4123, %v4121
        %v4142 = vpack.c.b16 %v4124, %v4122
        %v4143 = vpack.c.b16 %v4127, %v4125
        %v4144 = vpack.c.b16 %v4128, %v4126
        %4161 = vmatprep.subr.bf16.mxu0 %v4144
        %4162 = vmatpush1.bf16.msra.mxu0 %v4143
        %4163 = vmatprep.subr.bf16.mxu0 %v4142
        %4164 = vmatpush1.bf16.msra.mxu0 %v4141
        %4165 = vmatprep.subr.bf16.mxu0 %v4140
        %4166 = vmatpush1.bf16.msra.mxu0 %v4139
        %4167 = vmatprep.subr.bf16.mxu0 %v4138
        %4168 = vmatpush1.bf16.msra.mxu0 %v4137
        %4169 = vmatprep.subr.bf16.mxu0 %v4136
        %4170 = vmatpush1.bf16.msra.mxu0 %v4135
        %4171 = vmatprep.subr.bf16.mxu0 %v4134
        %4172 = vmatpush1.bf16.msra.mxu0 %v4133
        %4173 = vmatprep.subr.bf16.mxu0 %v4132
        %4174 = vmatpush1.bf16.msra.mxu0 %v4131
        %4175 = vmatprep.subr.bf16.mxu0 %v4130
        %4176 = vmatpush1.bf16.msra.mxu0 %v4129
        %4177 = vmatprep.subr.bf16.mxu0 0
        %4178 = vmatpush2.bf16.msra.mxu0 0
        %4179 = vmatprep.subr.bf16.mxu0 0
        %4180 = vmatpush2.bf16.msra.mxu0 0
        %4181 = vmatprep.subr.bf16.mxu0 0
        %4182 = vmatpush2.bf16.msra.mxu0 0
        %4183 = vmatprep.subr.bf16.mxu0 0
        %4184 = vmatpush2.bf16.msra.mxu0 0
        %4185 = vmatprep.subr.bf16.mxu0 0
        %4186 = vmatpush2.bf16.msra.mxu0 0
        %4187 = vmatprep.subr.bf16.mxu0 0
        %4188 = vmatpush2.bf16.msra.mxu0 0
        %4189 = vmatprep.subr.bf16.mxu0 0
        %4190 = vmatpush2.bf16.msra.mxu0 0
        %4191 = vmatprep.subr.bf16.mxu0 0
        %4192 = vmatpush2.bf16.msra.mxu0 0
        %4193 = vmatprep.mubr.bf16.mxu0 0
        %4194 = vmatmul.mubr.bf16.gmra.mxu0 %v385
        %v4195 = vpop.f32.mrf.mxu0
        %v4196 = vadd.f32 %v4074, %v4195
        %v4197 = vpop.f32.mrf.mxu0
        %v4198 = vadd.f32 %v4078, %v4197
        %v4199 = vpop.f32.mrf.mxu0
        %v4200 = vpop.f32.mrf.mxu0
        %4201 = vdwg.mxu0
        %4203 = vrot.lane.b32.xlu0 %v4048, 96
        %v4204 = vpop.permute.xlu0 %4203
        %4205 = vrot.lane.b32.xlu0 %v4048, 64
        %v4206 = vpop.permute.xlu0 %4205
        %4207 = vrot.lane.b32.xlu0 %v4048, 32
        %v4208 = vpop.permute.xlu0 %4207
        %4210 = vrot.lane.b32.xlu0 %v4196, 96
        %v4211 = vpop.permute.xlu0 %4210
        %4212 = vrot.lane.b32.xlu0 %v4196, 64
        %v4213 = vpop.permute.xlu0 %4212
        %4214 = vrot.lane.b32.xlu0 %v4196, 32
        %v4215 = vpop.permute.xlu0 %4214
        %4217 = vrot.lane.b32.xlu0 %v4198, 96
        %v4218 = vpop.permute.xlu0 %4217
        %4220 = vrot.lane.b32.xlu0 %v4198, 64
        %v4221 = vpop.permute.xlu0 %4220
        %4223 = vrot.lane.b32.xlu0 %v4198, 32
        %v4224 = vpop.permute.xlu0 %4223
        %v4226 = vsel %vm670, %v4048, 0
        %v4228 = vsel %vm670, %v4196, 0
        %4230 = vmatprep.subr.mxu0 0.0
        %4231 = vmatpush1.xpose.msra.mxu0 0.0
        %4232 = vmatprep.subr.mxu0 0.0
        %4233 = vmatpush1.xpose.msra.mxu0 0.0
        %4234 = vmatprep.subr.mxu0 0.0
        %4235 = vmatpush1.xpose.msra.mxu0 0.0
        %4236 = vmatprep.subr.mxu0 0.0
        %4237 = vmatpush1.xpose.msra.mxu0 0.0
        %4238 = vmatprep.subr.mxu0 0.0
        %4239 = vmatpush1.xpose.msra.mxu0 0.0
        %4240 = vmatprep.subr.mxu0 0.0
        %4241 = vmatpush1.xpose.msra.mxu0 0.0
        %4242 = vmatprep.subr.mxu0 0.0
        %4243 = vmatpush1.xpose.msra.mxu0 0.0
        %4244 = vmatprep.subr.mxu0 0.0
        %4245 = vmatpush1.xpose.msra.mxu0 0.0
        %4246 = vmatprep.subr.mxu0 0.0
        %4247 = vmatpush1.xpose.msra.mxu0 0.0
        %4248 = vmatprep.subr.mxu0 0.0
        %4249 = vmatpush1.xpose.msra.mxu0 0.0
        %4250 = vmatprep.subr.mxu0 0.0
        %4251 = vmatpush1.xpose.msra.mxu0 0.0
        %4252 = vmatprep.subr.mxu0 0.0
        %4253 = vmatpush1.xpose.msra.mxu0 0.0
        %4254 = vmatprep.subr.mxu0 0.0
        %4255 = vmatpush1.xpose.msra.mxu0 0.0
        %4256 = vmatprep.subr.mxu0 0.0
        %4257 = vmatpush1.xpose.msra.mxu0 0.0
        %4258 = vmatprep.subr.mxu0 0.0
        %4259 = vmatpush1.xpose.msra.mxu0 0.0
        %4260 = vmatprep.subr.mxu0 0.0
        %4261 = vmatpush1.xpose.msra.mxu0 %v4228
        %4262 = vmatprep.subr.mxu0 0.0
        %4263 = vmatpush2.xpose.msra.mxu0 0.0
        %4264 = vmatprep.subr.mxu0 0.0
        %4265 = vmatpush2.xpose.msra.mxu0 0.0
        %4266 = vmatprep.subr.mxu0 0.0
        %4267 = vmatpush2.xpose.msra.mxu0 0.0
        %4268 = vmatprep.subr.mxu0 0.0
        %4269 = vmatpush2.xpose.msra.mxu0 0.0
        %4270 = vmatprep.subr.mxu0 0.0
        %4271 = vmatpush2.xpose.msra.mxu0 0.0
        %4272 = vmatprep.subr.mxu0 0.0
        %4273 = vmatpush2.xpose.msra.mxu0 0.0
        %4274 = vmatprep.subr.mxu0 0.0
        %4275 = vmatpush2.xpose.msra.mxu0 0.0
        %4276 = vmatprep.subr.mxu0 0.0
        %4277 = vmatpush2.xpose.msra.mxu0 0.0
        %4278 = vmatprep.subr.mxu0 0.0
        %4279 = vmatpush2.xpose.msra.mxu0 0.0
        %4280 = vmatprep.subr.mxu0 0.0
        %4281 = vmatpush2.xpose.msra.mxu0 0.0
        %4282 = vmatprep.subr.mxu0 0.0
        %4283 = vmatpush2.xpose.msra.mxu0 0.0
        %4284 = vmatprep.subr.mxu0 0.0
        %4285 = vmatpush2.xpose.msra.mxu0 0.0
        %4286 = vmatprep.subr.mxu0 0.0
        %4287 = vmatpush2.xpose.msra.mxu0 0.0
        %4288 = vmatprep.subr.mxu0 0.0
        %4289 = vmatpush2.xpose.msra.mxu0 0.0
        %4290 = vmatprep.subr.mxu0 0.0
        %4291 = vmatpush2.xpose.msra.mxu0 0.0
        %4292 = vmatprep.subr.mxu0 0.0
        %4293 = vmatpush2.xpose.msra.mxu0 0.0
        %4294 = vmatprep.mubr.f32.mxu0 0.0
        %4295 = vmatmul.mubr.f32.gmra.mxu0 %v4226
        %v4296 = vpop.f32.mrf.mxu0
        %v4297 = vadd.f32 0.0, %v4296
        %v4298 = vpop.f32.mrf.mxu0
        %4299 = vdwg.mxu0
        %v4300 = vsel %vm670, %v4204, 0
        %v4302 = vsel %vm670, %v4211, 0
        %4304 = vmatprep.subr.mxu0 0.0
        %4305 = vmatpush1.xpose.msra.mxu0 0.0
        %4306 = vmatprep.subr.mxu0 0.0
        %4307 = vmatpush1.xpose.msra.mxu0 0.0
        %4308 = vmatprep.subr.mxu0 0.0
        %4309 = vmatpush1.xpose.msra.mxu0 0.0
        %4310 = vmatprep.subr.mxu0 0.0
        %4311 = vmatpush1.xpose.msra.mxu0 0.0
        %4312 = vmatprep.subr.mxu0 0.0
        %4313 = vmatpush1.xpose.msra.mxu0 0.0
        %4314 = vmatprep.subr.mxu0 0.0
        %4315 = vmatpush1.xpose.msra.mxu0 0.0
        %4316 = vmatprep.subr.mxu0 0.0
        %4317 = vmatpush1.xpose.msra.mxu0 0.0
        %4318 = vmatprep.subr.mxu0 0.0
        %4319 = vmatpush1.xpose.msra.mxu0 0.0
        %4320 = vmatprep.subr.mxu0 0.0
        %4321 = vmatpush1.xpose.msra.mxu0 0.0
        %4322 = vmatprep.subr.mxu0 0.0
        %4323 = vmatpush1.xpose.msra.mxu0 0.0
        %4324 = vmatprep.subr.mxu0 0.0
        %4325 = vmatpush1.xpose.msra.mxu0 0.0
        %4326 = vmatprep.subr.mxu0 0.0
        %4327 = vmatpush1.xpose.msra.mxu0 0.0
        %4328 = vmatprep.subr.mxu0 0.0
        %4329 = vmatpush1.xpose.msra.mxu0 0.0
        %4330 = vmatprep.subr.mxu0 0.0
        %4331 = vmatpush1.xpose.msra.mxu0 0.0
        %4332 = vmatprep.subr.mxu0 0.0
        %4333 = vmatpush1.xpose.msra.mxu0 0.0
        %4334 = vmatprep.subr.mxu0 0.0
        %4335 = vmatpush1.xpose.msra.mxu0 %v4302
        %4336 = vmatprep.subr.mxu0 0.0
        %4337 = vmatpush2.xpose.msra.mxu0 0.0
        %4338 = vmatprep.subr.mxu0 0.0
        %4339 = vmatpush2.xpose.msra.mxu0 0.0
        %4340 = vmatprep.subr.mxu0 0.0
        %4341 = vmatpush2.xpose.msra.mxu0 0.0
        %4342 = vmatprep.subr.mxu0 0.0
        %4343 = vmatpush2.xpose.msra.mxu0 0.0
        %4344 = vmatprep.subr.mxu0 0.0
        %4345 = vmatpush2.xpose.msra.mxu0 0.0
        %4346 = vmatprep.subr.mxu0 0.0
        %4347 = vmatpush2.xpose.msra.mxu0 0.0
        %4348 = vmatprep.subr.mxu0 0.0
        %4349 = vmatpush2.xpose.msra.mxu0 0.0
        %4350 = vmatprep.subr.mxu0 0.0
        %4351 = vmatpush2.xpose.msra.mxu0 0.0
        %4352 = vmatprep.subr.mxu0 0.0
        %4353 = vmatpush2.xpose.msra.mxu0 0.0
        %4354 = vmatprep.subr.mxu0 0.0
        %4355 = vmatpush2.xpose.msra.mxu0 0.0
        %4356 = vmatprep.subr.mxu0 0.0
        %4357 = vmatpush2.xpose.msra.mxu0 0.0
        %4358 = vmatprep.subr.mxu0 0.0
        %4359 = vmatpush2.xpose.msra.mxu0 0.0
        %4360 = vmatprep.subr.mxu0 0.0
        %4361 = vmatpush2.xpose.msra.mxu0 0.0
        %4362 = vmatprep.subr.mxu0 0.0
        %4363 = vmatpush2.xpose.msra.mxu0 0.0
        %4364 = vmatprep.subr.mxu0 0.0
        %4365 = vmatpush2.xpose.msra.mxu0 0.0
        %4366 = vmatprep.subr.mxu0 0.0
        %4367 = vmatpush2.xpose.msra.mxu0 0.0
        %4368 = vmatprep.mubr.f32.mxu0 0.0
        %4369 = vmatmul.mubr.f32.gmra.mxu0 %v4300
        %v4370 = vpop.f32.mrf.mxu0
        %v4371 = vadd.f32 0.0, %v4370
        %v4372 = vpop.f32.mrf.mxu0
        %4373 = vdwg.mxu0
        %v4374 = vsel %vm670, %v4206, 0
        %v4376 = vsel %vm670, %v4213, 0
        %4378 = vmatprep.subr.mxu0 0.0
        %4379 = vmatpush1.xpose.msra.mxu0 0.0
        %4380 = vmatprep.subr.mxu0 0.0
        %4381 = vmatpush1.xpose.msra.mxu0 0.0
        %4382 = vmatprep.subr.mxu0 0.0
        %4383 = vmatpush1.xpose.msra.mxu0 0.0
        %4384 = vmatprep.subr.mxu0 0.0
        %4385 = vmatpush1.xpose.msra.mxu0 0.0
        %4386 = vmatprep.subr.mxu0 0.0
        %4387 = vmatpush1.xpose.msra.mxu0 0.0
        %4388 = vmatprep.subr.mxu0 0.0
        %4389 = vmatpush1.xpose.msra.mxu0 0.0
        %4390 = vmatprep.subr.mxu0 0.0
        %4391 = vmatpush1.xpose.msra.mxu0 0.0
        %4392 = vmatprep.subr.mxu0 0.0
        %4393 = vmatpush1.xpose.msra.mxu0 0.0
        %4394 = vmatprep.subr.mxu0 0.0
        %4395 = vmatpush1.xpose.msra.mxu0 0.0
        %4396 = vmatprep.subr.mxu0 0.0
        %4397 = vmatpush1.xpose.msra.mxu0 0.0
        %4398 = vmatprep.subr.mxu0 0.0
        %4399 = vmatpush1.xpose.msra.mxu0 0.0
        %4400 = vmatprep.subr.mxu0 0.0
        %4401 = vmatpush1.xpose.msra.mxu0 0.0
        %4402 = vmatprep.subr.mxu0 0.0
        %4403 = vmatpush1.xpose.msra.mxu0 0.0
        %4404 = vmatprep.subr.mxu0 0.0
        %4405 = vmatpush1.xpose.msra.mxu0 0.0
        %4406 = vmatprep.subr.mxu0 0.0
        %4407 = vmatpush1.xpose.msra.mxu0 0.0
        %4408 = vmatprep.subr.mxu0 0.0
        %4409 = vmatpush1.xpose.msra.mxu0 %v4376
        %4410 = vmatprep.subr.mxu0 0.0
        %4411 = vmatpush2.xpose.msra.mxu0 0.0
        %4412 = vmatprep.subr.mxu0 0.0
        %4413 = vmatpush2.xpose.msra.mxu0 0.0
        %4414 = vmatprep.subr.mxu0 0.0
        %4415 = vmatpush2.xpose.msra.mxu0 0.0
        %4416 = vmatprep.subr.mxu0 0.0
        %4417 = vmatpush2.xpose.msra.mxu0 0.0
        %4418 = vmatprep.subr.mxu0 0.0
        %4419 = vmatpush2.xpose.msra.mxu0 0.0
        %4420 = vmatprep.subr.mxu0 0.0
        %4421 = vmatpush2.xpose.msra.mxu0 0.0
        %4422 = vmatprep.subr.mxu0 0.0
        %4423 = vmatpush2.xpose.msra.mxu0 0.0
        %4424 = vmatprep.subr.mxu0 0.0
        %4425 = vmatpush2.xpose.msra.mxu0 0.0
        %4426 = vmatprep.subr.mxu0 0.0
        %4427 = vmatpush2.xpose.msra.mxu0 0.0
        %4428 = vmatprep.subr.mxu0 0.0
        %4429 = vmatpush2.xpose.msra.mxu0 0.0
        %4430 = vmatprep.subr.mxu0 0.0
        %4431 = vmatpush2.xpose.msra.mxu0 0.0
        %4432 = vmatprep.subr.mxu0 0.0
        %4433 = vmatpush2.xpose.msra.mxu0 0.0
        %4434 = vmatprep.subr.mxu0 0.0
        %4435 = vmatpush2.xpose.msra.mxu0 0.0
        %4436 = vmatprep.subr.mxu0 0.0
        %4437 = vmatpush2.xpose.msra.mxu0 0.0
        %4438 = vmatprep.subr.mxu0 0.0
        %4439 = vmatpush2.xpose.msra.mxu0 0.0
        %4440 = vmatprep.subr.mxu0 0.0
        %4441 = vmatpush2.xpose.msra.mxu0 0.0
        %4442 = vmatprep.mubr.f32.mxu0 0.0
        %4443 = vmatmul.mubr.f32.gmra.mxu0 %v4374
        %v4444 = vpop.f32.mrf.mxu0
        %v4445 = vadd.f32 0.0, %v4444
        %v4446 = vpop.f32.mrf.mxu0
        %4447 = vdwg.mxu0
        %v4448 = vsel %vm670, %v4208, 0
        %v4450 = vsel %vm670, %v4215, 0
        %4452 = vmatprep.subr.mxu0 0.0
        %4453 = vmatpush1.xpose.msra.mxu0 0.0
        %4454 = vmatprep.subr.mxu0 0.0
        %4455 = vmatpush1.xpose.msra.mxu0 0.0
        %4456 = vmatprep.subr.mxu0 0.0
        %4457 = vmatpush1.xpose.msra.mxu0 0.0
        %4458 = vmatprep.subr.mxu0 0.0
        %4459 = vmatpush1.xpose.msra.mxu0 0.0
        %4460 = vmatprep.subr.mxu0 0.0
        %4461 = vmatpush1.xpose.msra.mxu0 0.0
        %4462 = vmatprep.subr.mxu0 0.0
        %4463 = vmatpush1.xpose.msra.mxu0 0.0
        %4464 = vmatprep.subr.mxu0 0.0
        %4465 = vmatpush1.xpose.msra.mxu0 0.0
        %4466 = vmatprep.subr.mxu0 0.0
        %4467 = vmatpush1.xpose.msra.mxu0 0.0
        %4468 = vmatprep.subr.mxu0 0.0
        %4469 = vmatpush1.xpose.msra.mxu0 0.0
        %4470 = vmatprep.subr.mxu0 0.0
        %4471 = vmatpush1.xpose.msra.mxu0 0.0
        %4472 = vmatprep.subr.mxu0 0.0
        %4473 = vmatpush1.xpose.msra.mxu0 0.0
        %4474 = vmatprep.subr.mxu0 0.0
        %4475 = vmatpush1.xpose.msra.mxu0 0.0
        %4476 = vmatprep.subr.mxu0 0.0
        %4477 = vmatpush1.xpose.msra.mxu0 0.0
        %4478 = vmatprep.subr.mxu0 0.0
        %4479 = vmatpush1.xpose.msra.mxu0 0.0
        %4480 = vmatprep.subr.mxu0 0.0
        %4481 = vmatpush1.xpose.msra.mxu0 0.0
        %4482 = vmatprep.subr.mxu0 0.0
        %4483 = vmatpush1.xpose.msra.mxu0 %v4450
        %4484 = vmatprep.subr.mxu0 0.0
        %4485 = vmatpush2.xpose.msra.mxu0 0.0
        %4486 = vmatprep.subr.mxu0 0.0
        %4487 = vmatpush2.xpose.msra.mxu0 0.0
        %4488 = vmatprep.subr.mxu0 0.0
        %4489 = vmatpush2.xpose.msra.mxu0 0.0
        %4490 = vmatprep.subr.mxu0 0.0
        %4491 = vmatpush2.xpose.msra.mxu0 0.0
        %4492 = vmatprep.subr.mxu0 0.0
        %4493 = vmatpush2.xpose.msra.mxu0 0.0
        %4494 = vmatprep.subr.mxu0 0.0
        %4495 = vmatpush2.xpose.msra.mxu0 0.0
        %4496 = vmatprep.subr.mxu0 0.0
        %4497 = vmatpush2.xpose.msra.mxu0 0.0
        %4498 = vmatprep.subr.mxu0 0.0
        %4499 = vmatpush2.xpose.msra.mxu0 0.0
        %4500 = vmatprep.subr.mxu0 0.0
        %4501 = vmatpush2.xpose.msra.mxu0 0.0
        %4502 = vmatprep.subr.mxu0 0.0
        %4503 = vmatpush2.xpose.msra.mxu0 0.0
        %4504 = vmatprep.subr.mxu0 0.0
        %4505 = vmatpush2.xpose.msra.mxu0 0.0
        %4506 = vmatprep.subr.mxu0 0.0
        %4507 = vmatpush2.xpose.msra.mxu0 0.0
        %4508 = vmatprep.subr.mxu0 0.0
        %4509 = vmatpush2.xpose.msra.mxu0 0.0
        %4510 = vmatprep.subr.mxu0 0.0
        %4511 = vmatpush2.xpose.msra.mxu0 0.0
        %4512 = vmatprep.subr.mxu0 0.0
        %4513 = vmatpush2.xpose.msra.mxu0 0.0
        %4514 = vmatprep.subr.mxu0 0.0
        %4515 = vmatpush2.xpose.msra.mxu0 0.0
        %4516 = vmatprep.mubr.f32.mxu0 0.0
        %4517 = vmatmul.mubr.f32.gmra.mxu0 %v4448
        %v4518 = vpop.f32.mrf.mxu0
        %v4519 = vadd.f32 0.0, %v4518
        %v4520 = vpop.f32.mrf.mxu0
        %4521 = vdwg.mxu0
        %v4522 = vsel %vm967, %v4297, -inf
        %4523 = vmax.xlane.f32.xlu0 %v4522
        %v4524 = vpop.xlane.xlu0 %4523
        %v4525 = vsel %vm967, %v4371, -inf
        %4526 = vmax.xlane.f32.xlu0 %v4525
        %v4527 = vpop.xlane.xlu0 %4526
        %v4528 = vsel %vm967, %v4445, -inf
        %4529 = vmax.xlane.f32.xlu0 %v4528
        %v4530 = vpop.xlane.xlu0 %4529
        %v4531 = vsel %vm967, %v4519, -inf
        %4532 = vmax.xlane.f32.xlu0 %v4531
        %v4533 = vpop.xlane.xlu0 %4532
        %v4534 = vsub.f32 %v4297, %v4524
        %v4535 = vsub.f32 %v4371, %v4527
        %v4536 = vsub.f32 %v4445, %v4530
        %v4537 = vsub.f32 %v4519, %v4533
        %v4538 = vmul.f32 %v4534, 1.442695
        %v4539 = vpow.pop %v4538
        %v4540 = vmul.f32 %v4535, 1.442695
        %v4541 = vpow.pop %v4540
        %v4542 = vmul.f32 %v4536, 1.442695
        %v4543 = vpow.pop %v4542
        %v4544 = vmul.f32 %v4537, 1.442695
        %v4545 = vpow.pop %v4544
        %v4546 = vsel %vm967, %v4539, 0.0
        %4547 = vadd.xlane.f32.xlu0 %v4546
        %v4548 = vpop.xlane.xlu0 %4547
        %v4549 = vsel %vm967, %v4541, 0.0
        %4550 = vadd.xlane.f32.xlu0 %v4549
        %v4551 = vpop.xlane.xlu0 %4550
        %v4552 = vsel %vm967, %v4543, 0.0
        %4553 = vadd.xlane.f32.xlu0 %v4552
        %v4554 = vpop.xlane.xlu0 %4553
        %v4555 = vsel %vm967, %v4545, 0.0
        %4556 = vadd.xlane.f32.xlu0 %v4555
        %v4557 = vpop.xlane.xlu0 %4556
        %v4558 = vrcp.pop %v4548
        %v4559 = vrcp.pop %v4551
        %v4560 = vrcp.pop %v4554
        %v4561 = vrcp.pop %v4557
        %v4562 = vmul.f32 %v4539, %v4558
        %v4563 = vmul.f32 %v4541, %v4559
        %v4564 = vmul.f32 %v4543, %v4560
        %v4565 = vmul.f32 %v4545, %v4561
        %v4567 = vsel %vm967, %v4562, 0
        %4569 = vmatprep.subr.mxu0 0.0
        %4570 = vmatpush1.msra.mxu0 0.0
        %4571 = vmatprep.subr.mxu0 0.0
        %4572 = vmatpush1.msra.mxu0 0.0
        %4573 = vmatprep.subr.mxu0 0.0
        %4574 = vmatpush1.msra.mxu0 0.0
        %4575 = vmatprep.subr.mxu0 0.0
        %4576 = vmatpush1.msra.mxu0 0.0
        %4577 = vmatprep.subr.mxu0 0.0
        %4578 = vmatpush1.msra.mxu0 0.0
        %4579 = vmatprep.subr.mxu0 0.0
        %4580 = vmatpush1.msra.mxu0 0.0
        %4581 = vmatprep.subr.mxu0 0.0
        %4582 = vmatpush1.msra.mxu0 0.0
        %4583 = vmatprep.subr.mxu0 0.0
        %4584 = vmatpush1.msra.mxu0 0.0
        %4585 = vmatprep.subr.mxu0 0.0
        %4586 = vmatpush1.msra.mxu0 0.0
        %4587 = vmatprep.subr.mxu0 0.0
        %4588 = vmatpush1.msra.mxu0 0.0
        %4589 = vmatprep.subr.mxu0 0.0
        %4590 = vmatpush1.msra.mxu0 0.0
        %4591 = vmatprep.subr.mxu0 0.0
        %4592 = vmatpush1.msra.mxu0 0.0
        %4593 = vmatprep.subr.mxu0 0.0
        %4594 = vmatpush1.msra.mxu0 0.0
        %4595 = vmatprep.subr.mxu0 0.0
        %4596 = vmatpush1.msra.mxu0 0.0
        %4597 = vmatprep.subr.mxu0 0.0
        %4598 = vmatpush1.msra.mxu0 0.0
        %4599 = vmatprep.subr.mxu0 0.0
        %4600 = vmatpush1.msra.mxu0 %v4198
        %4601 = vmatprep.subr.mxu0 0.0
        %4602 = vmatpush2.msra.mxu0 0.0
        %4603 = vmatprep.subr.mxu0 0.0
        %4604 = vmatpush2.msra.mxu0 0.0
        %4605 = vmatprep.subr.mxu0 0.0
        %4606 = vmatpush2.msra.mxu0 0.0
        %4607 = vmatprep.subr.mxu0 0.0
        %4608 = vmatpush2.msra.mxu0 0.0
        %4609 = vmatprep.subr.mxu0 0.0
        %4610 = vmatpush2.msra.mxu0 0.0
        %4611 = vmatprep.subr.mxu0 0.0
        %4612 = vmatpush2.msra.mxu0 0.0
        %4613 = vmatprep.subr.mxu0 0.0
        %4614 = vmatpush2.msra.mxu0 0.0
        %4615 = vmatprep.subr.mxu0 0.0
        %4616 = vmatpush2.msra.mxu0 0.0
        %4617 = vmatprep.subr.mxu0 0.0
        %4618 = vmatpush2.msra.mxu0 0.0
        %4619 = vmatprep.subr.mxu0 0.0
        %4620 = vmatpush2.msra.mxu0 0.0
        %4621 = vmatprep.subr.mxu0 0.0
        %4622 = vmatpush2.msra.mxu0 0.0
        %4623 = vmatprep.subr.mxu0 0.0
        %4624 = vmatpush2.msra.mxu0 0.0
        %4625 = vmatprep.subr.mxu0 0.0
        %4626 = vmatpush2.msra.mxu0 0.0
        %4627 = vmatprep.subr.mxu0 0.0
        %4628 = vmatpush2.msra.mxu0 0.0
        %4629 = vmatprep.subr.mxu0 0.0
        %4630 = vmatpush2.msra.mxu0 0.0
        %4631 = vmatprep.subr.mxu0 0.0
        %4632 = vmatpush2.msra.mxu0 0.0
        %4633 = vmatprep.mubr.f32.mxu0 0.0
        %4634 = vmatmul.mubr.f32.gmra.mxu0 %v4567
        %v4635 = vpop.f32.mrf.mxu0
        %v4636 = vadd.f32 0.0, %v4635
        %v4637 = vpop.f32.mrf.mxu0
        %4638 = vdwg.mxu0
        %v4640 = vsel %vm967, %v4563, 0
        %4642 = vmatprep.subr.mxu0 0.0
        %4643 = vmatpush1.msra.mxu0 0.0
        %4644 = vmatprep.subr.mxu0 0.0
        %4645 = vmatpush1.msra.mxu0 0.0
        %4646 = vmatprep.subr.mxu0 0.0
        %4647 = vmatpush1.msra.mxu0 0.0
        %4648 = vmatprep.subr.mxu0 0.0
        %4649 = vmatpush1.msra.mxu0 0.0
        %4650 = vmatprep.subr.mxu0 0.0
        %4651 = vmatpush1.msra.mxu0 0.0
        %4652 = vmatprep.subr.mxu0 0.0
        %4653 = vmatpush1.msra.mxu0 0.0
        %4654 = vmatprep.subr.mxu0 0.0
        %4655 = vmatpush1.msra.mxu0 0.0
        %4656 = vmatprep.subr.mxu0 0.0
        %4657 = vmatpush1.msra.mxu0 0.0
        %4658 = vmatprep.subr.mxu0 0.0
        %4659 = vmatpush1.msra.mxu0 0.0
        %4660 = vmatprep.subr.mxu0 0.0
        %4661 = vmatpush1.msra.mxu0 0.0
        %4662 = vmatprep.subr.mxu0 0.0
        %4663 = vmatpush1.msra.mxu0 0.0
        %4664 = vmatprep.subr.mxu0 0.0
        %4665 = vmatpush1.msra.mxu0 0.0
        %4666 = vmatprep.subr.mxu0 0.0
        %4667 = vmatpush1.msra.mxu0 0.0
        %4668 = vmatprep.subr.mxu0 0.0
        %4669 = vmatpush1.msra.mxu0 0.0
        %4670 = vmatprep.subr.mxu0 0.0
        %4671 = vmatpush1.msra.mxu0 0.0
        %4672 = vmatprep.subr.mxu0 0.0
        %4673 = vmatpush1.msra.mxu0 %v4218
        %4674 = vmatprep.subr.mxu0 0.0
        %4675 = vmatpush2.msra.mxu0 0.0
        %4676 = vmatprep.subr.mxu0 0.0
        %4677 = vmatpush2.msra.mxu0 0.0
        %4678 = vmatprep.subr.mxu0 0.0
        %4679 = vmatpush2.msra.mxu0 0.0
        %4680 = vmatprep.subr.mxu0 0.0
        %4681 = vmatpush2.msra.mxu0 0.0
        %4682 = vmatprep.subr.mxu0 0.0
        %4683 = vmatpush2.msra.mxu0 0.0
        %4684 = vmatprep.subr.mxu0 0.0
        %4685 = vmatpush2.msra.mxu0 0.0
        %4686 = vmatprep.subr.mxu0 0.0
        %4687 = vmatpush2.msra.mxu0 0.0
        %4688 = vmatprep.subr.mxu0 0.0
        %4689 = vmatpush2.msra.mxu0 0.0
        %4690 = vmatprep.subr.mxu0 0.0
        %4691 = vmatpush2.msra.mxu0 0.0
        %4692 = vmatprep.subr.mxu0 0.0
        %4693 = vmatpush2.msra.mxu0 0.0
        %4694 = vmatprep.subr.mxu0 0.0
        %4695 = vmatpush2.msra.mxu0 0.0
        %4696 = vmatprep.subr.mxu0 0.0
        %4697 = vmatpush2.msra.mxu0 0.0
        %4698 = vmatprep.subr.mxu0 0.0
        %4699 = vmatpush2.msra.mxu0 0.0
        %4700 = vmatprep.subr.mxu0 0.0
        %4701 = vmatpush2.msra.mxu0 0.0
        %4702 = vmatprep.subr.mxu0 0.0
        %4703 = vmatpush2.msra.mxu0 0.0
        %4704 = vmatprep.subr.mxu0 0.0
        %4705 = vmatpush2.msra.mxu0 0.0
        %4706 = vmatprep.mubr.f32.mxu0 0.0
        %4707 = vmatmul.mubr.f32.gmra.mxu0 %v4640
        %v4708 = vpop.f32.mrf.mxu0
        %v4709 = vadd.f32 0.0, %v4708
        %v4710 = vpop.f32.mrf.mxu0
        %4711 = vdwg.mxu0
        %v4713 = vsel %vm967, %v4564, 0
        %4715 = vmatprep.subr.mxu0 0.0
        %4716 = vmatpush1.msra.mxu0 0.0
        %4717 = vmatprep.subr.mxu0 0.0
        %4718 = vmatpush1.msra.mxu0 0.0
        %4719 = vmatprep.subr.mxu0 0.0
        %4720 = vmatpush1.msra.mxu0 0.0
        %4721 = vmatprep.subr.mxu0 0.0
        %4722 = vmatpush1.msra.mxu0 0.0
        %4723 = vmatprep.subr.mxu0 0.0
        %4724 = vmatpush1.msra.mxu0 0.0
        %4725 = vmatprep.subr.mxu0 0.0
        %4726 = vmatpush1.msra.mxu0 0.0
        %4727 = vmatprep.subr.mxu0 0.0
        %4728 = vmatpush1.msra.mxu0 0.0
        %4729 = vmatprep.subr.mxu0 0.0
        %4730 = vmatpush1.msra.mxu0 0.0
        %4731 = vmatprep.subr.mxu0 0.0
        %4732 = vmatpush1.msra.mxu0 0.0
        %4733 = vmatprep.subr.mxu0 0.0
        %4734 = vmatpush1.msra.mxu0 0.0
        %4735 = vmatprep.subr.mxu0 0.0
        %4736 = vmatpush1.msra.mxu0 0.0
        %4737 = vmatprep.subr.mxu0 0.0
        %4738 = vmatpush1.msra.mxu0 0.0
        %4739 = vmatprep.subr.mxu0 0.0
        %4740 = vmatpush1.msra.mxu0 0.0
        %4741 = vmatprep.subr.mxu0 0.0
        %4742 = vmatpush1.msra.mxu0 0.0
        %4743 = vmatprep.subr.mxu0 0.0
        %4744 = vmatpush1.msra.mxu0 0.0
        %4745 = vmatprep.subr.mxu0 0.0
        %4746 = vmatpush1.msra.mxu0 %v4221
        %4747 = vmatprep.subr.mxu0 0.0
        %4748 = vmatpush2.msra.mxu0 0.0
        %4749 = vmatprep.subr.mxu0 0.0
        %4750 = vmatpush2.msra.mxu0 0.0
        %4751 = vmatprep.subr.mxu0 0.0
        %4752 = vmatpush2.msra.mxu0 0.0
        %4753 = vmatprep.subr.mxu0 0.0
        %4754 = vmatpush2.msra.mxu0 0.0
        %4755 = vmatprep.subr.mxu0 0.0
        %4756 = vmatpush2.msra.mxu0 0.0
        %4757 = vmatprep.subr.mxu0 0.0
        %4758 = vmatpush2.msra.mxu0 0.0
        %4759 = vmatprep.subr.mxu0 0.0
        %4760 = vmatpush2.msra.mxu0 0.0
        %4761 = vmatprep.subr.mxu0 0.0
        %4762 = vmatpush2.msra.mxu0 0.0
        %4763 = vmatprep.subr.mxu0 0.0
        %4764 = vmatpush2.msra.mxu0 0.0
        %4765 = vmatprep.subr.mxu0 0.0
        %4766 = vmatpush2.msra.mxu0 0.0
        %4767 = vmatprep.subr.mxu0 0.0
        %4768 = vmatpush2.msra.mxu0 0.0
        %4769 = vmatprep.subr.mxu0 0.0
        %4770 = vmatpush2.msra.mxu0 0.0
        %4771 = vmatprep.subr.mxu0 0.0
        %4772 = vmatpush2.msra.mxu0 0.0
        %4773 = vmatprep.subr.mxu0 0.0
        %4774 = vmatpush2.msra.mxu0 0.0
        %4775 = vmatprep.subr.mxu0 0.0
        %4776 = vmatpush2.msra.mxu0 0.0
        %4777 = vmatprep.subr.mxu0 0.0
        %4778 = vmatpush2.msra.mxu0 0.0
        %4779 = vmatprep.mubr.f32.mxu0 0.0
        %4780 = vmatmul.mubr.f32.gmra.mxu0 %v4713
        %v4781 = vpop.f32.mrf.mxu0
        %v4782 = vadd.f32 0.0, %v4781
        %v4783 = vpop.f32.mrf.mxu0
        %4784 = vdwg.mxu0
        %v4786 = vsel %vm967, %v4565, 0
        %4788 = vmatprep.subr.mxu0 0.0
        %4789 = vmatpush1.msra.mxu0 0.0
        %4790 = vmatprep.subr.mxu0 0.0
        %4791 = vmatpush1.msra.mxu0 0.0
        %4792 = vmatprep.subr.mxu0 0.0
        %4793 = vmatpush1.msra.mxu0 0.0
        %4794 = vmatprep.subr.mxu0 0.0
        %4795 = vmatpush1.msra.mxu0 0.0
        %4796 = vmatprep.subr.mxu0 0.0
        %4797 = vmatpush1.msra.mxu0 0.0
        %4798 = vmatprep.subr.mxu0 0.0
        %4799 = vmatpush1.msra.mxu0 0.0
        %4800 = vmatprep.subr.mxu0 0.0
        %4801 = vmatpush1.msra.mxu0 0.0
        %4802 = vmatprep.subr.mxu0 0.0
        %4803 = vmatpush1.msra.mxu0 0.0
        %4804 = vmatprep.subr.mxu0 0.0
        %4805 = vmatpush1.msra.mxu0 0.0
        %4806 = vmatprep.subr.mxu0 0.0
        %4807 = vmatpush1.msra.mxu0 0.0
        %4808 = vmatprep.subr.mxu0 0.0
        %4809 = vmatpush1.msra.mxu0 0.0
        %4810 = vmatprep.subr.mxu0 0.0
        %4811 = vmatpush1.msra.mxu0 0.0
        %4812 = vmatprep.subr.mxu0 0.0
        %4813 = vmatpush1.msra.mxu0 0.0
        %4814 = vmatprep.subr.mxu0 0.0
        %4815 = vmatpush1.msra.mxu0 0.0
        %4816 = vmatprep.subr.mxu0 0.0
        %4817 = vmatpush1.msra.mxu0 0.0
        %4818 = vmatprep.subr.mxu0 0.0
        %4819 = vmatpush1.msra.mxu0 %v4224
        %4820 = vmatprep.subr.mxu0 0.0
        %4821 = vmatpush2.msra.mxu0 0.0
        %4822 = vmatprep.subr.mxu0 0.0
        %4823 = vmatpush2.msra.mxu0 0.0
        %4824 = vmatprep.subr.mxu0 0.0
        %4825 = vmatpush2.msra.mxu0 0.0
        %4826 = vmatprep.subr.mxu0 0.0
        %4827 = vmatpush2.msra.mxu0 0.0
        %4828 = vmatprep.subr.mxu0 0.0
        %4829 = vmatpush2.msra.mxu0 0.0
        %4830 = vmatprep.subr.mxu0 0.0
        %4831 = vmatpush2.msra.mxu0 0.0
        %4832 = vmatprep.subr.mxu0 0.0
        %4833 = vmatpush2.msra.mxu0 0.0
        %4834 = vmatprep.subr.mxu0 0.0
        %4835 = vmatpush2.msra.mxu0 0.0
        %4836 = vmatprep.subr.mxu0 0.0
        %4837 = vmatpush2.msra.mxu0 0.0
        %4838 = vmatprep.subr.mxu0 0.0
        %4839 = vmatpush2.msra.mxu0 0.0
        %4840 = vmatprep.subr.mxu0 0.0
        %4841 = vmatpush2.msra.mxu0 0.0
        %4842 = vmatprep.subr.mxu0 0.0
        %4843 = vmatpush2.msra.mxu0 0.0
        %4844 = vmatprep.subr.mxu0 0.0
        %4845 = vmatpush2.msra.mxu0 0.0
        %4846 = vmatprep.subr.mxu0 0.0
        %4847 = vmatpush2.msra.mxu0 0.0
        %4848 = vmatprep.subr.mxu0 0.0
        %4849 = vmatpush2.msra.mxu0 0.0
        %4850 = vmatprep.subr.mxu0 0.0
        %4851 = vmatpush2.msra.mxu0 0.0
        %4852 = vmatprep.mubr.f32.mxu0 0.0
        %4853 = vmatmul.mubr.f32.gmra.mxu0 %v4786
        %v4854 = vpop.f32.mrf.mxu0
        %v4855 = vadd.f32 0.0, %v4854
        %v4856 = vpop.f32.mrf.mxu0
        %4857 = vdwg.mxu0
        %4859 = vrot.lane.b32.xlu0 %v4709, 32
        %v4860 = vpop.permute.xlu0 %4859
        %4863 = vrot.lane.b32.xlu0 %v4782, 64
        %v4864 = vpop.permute.xlu0 %4863
        %4867 = vrot.lane.b32.xlu0 %v4855, 96
        %v4868 = vpop.permute.xlu0 %4867
        %v4870 = vsel %vm670, %v4636, %v4860
        %v4871 = vsel %vm1317, %v4870, %v4864
        %v4872 = vsel %vm1319, %v4871, %v4868
        %v4873 = vpack.c.bf16 %v4872, %v4872
        %v4874 = vld [vmem:[%s2876 + $0x1c] sm:$0xf]
        %v4875 = vld [vmem:[%s2876 + $0x44] sm:$0xf]
        %v4876 = vld [vmem:[%s2876 + $0x6c] sm:$0xf]
        %v4877 = vld [vmem:[%s2876 + $0x94] sm:$0xf]
        %v4878 = vld [vmem:[%s2876 + $0xbc] sm:$0xf]
        %v4879 = vld [vmem:[%s2876 + $0xe4] sm:$0xf]
        %v4880 = vld [vmem:[%s2876 + $0x10c] sm:$0xf]
        %v4881 = vld [vmem:[%s2876 + $0x134] sm:$0xf]
        %v4882 = vld [vmem:[%s2876 + $0x15c] sm:$0xf]
        %v4883 = vld [vmem:[%s2876 + $0x184] sm:$0xf]
        %v4884 = vld [vmem:[%s2876 + $0x1ac] sm:$0xf]
        %v4885 = vld [vmem:[%s2876 + $0x1d4] sm:$0xf]
        %v4886 = vld [vmem:[%s2876 + $0x1fc] sm:$0xf]
        %v4887 = vld [vmem:[%s2876 + $0x224] sm:$0xf]
        %v4888 = vld [vmem:[%s2876 + $0x24c] sm:$0xf]
        %v4889 = vld [vmem:[%s2876 + $0x274] sm:$0xf]
        %v4890 = vld [vmem:[%s2909 + $0x7] sm:$0x1]
        %v4892 = vlaneseq
        %v4893 = vshrl.u32 %v4892, 7
        %v4894 = vsub.s32 0, %v4893
        %v4895 = vrot.slane %v4890, %v4894
        %v4913 = vunpack.c.l.b16 %v4874
        %v4914 = vunpack.c.l.b16 %v4875
        %v4915 = vunpack.c.l.b16 %v4876
        %v4916 = vunpack.c.l.b16 %v4877
        %v4917 = vunpack.c.l.b16 %v4878
        %v4918 = vunpack.c.l.b16 %v4879
        %v4919 = vunpack.c.l.b16 %v4880
        %v4920 = vunpack.c.l.b16 %v4881
        %v4921 = vunpack.c.l.b16 %v4882
        %v4922 = vunpack.c.l.b16 %v4883
        %v4923 = vunpack.c.l.b16 %v4884
        %v4924 = vunpack.c.l.b16 %v4885
        %v4925 = vunpack.c.l.b16 %v4886
        %v4926 = vunpack.c.l.b16 %v4887
        %v4927 = vunpack.c.l.b16 %v4888
        %v4928 = vunpack.c.l.b16 %v4889
        %v4929 = vpack.c.b16 %v4914, %v4913
        %v4930 = vpack.c.b16 %v4916, %v4915
        %v4931 = vpack.c.b16 %v4918, %v4917
        %v4932 = vpack.c.b16 %v4920, %v4919
        %v4933 = vpack.c.b16 %v4922, %v4921
        %v4934 = vpack.c.b16 %v4924, %v4923
        %v4935 = vpack.c.b16 %v4926, %v4925
        %v4936 = vpack.c.b16 %v4928, %v4927
        %4945 = vmatprep.subr.bf16.mxu0 0
        %4946 = vmatpush1.bf16.msra.mxu0 %v4936
        %4947 = vmatprep.subr.bf16.mxu0 0
        %4948 = vmatpush1.bf16.msra.mxu0 %v4935
        %4949 = vmatprep.subr.bf16.mxu0 0
        %4950 = vmatpush1.bf16.msra.mxu0 %v4934
        %4951 = vmatprep.subr.bf16.mxu0 0
        %4952 = vmatpush1.bf16.msra.mxu0 %v4933
        %4953 = vmatprep.subr.bf16.mxu0 0
        %4954 = vmatpush1.bf16.msra.mxu0 %v4932
        %4955 = vmatprep.subr.bf16.mxu0 0
        %4956 = vmatpush1.bf16.msra.mxu0 %v4931
        %4957 = vmatprep.subr.bf16.mxu0 0
        %4958 = vmatpush1.bf16.msra.mxu0 %v4930
        %4959 = vmatprep.subr.bf16.mxu0 0
        %4960 = vmatpush1.bf16.msra.mxu0 %v4929
        %4961 = vmatprep.subr.bf16.mxu0 0
        %4962 = vmatpush2.bf16.msra.mxu0 0
        %4963 = vmatprep.subr.bf16.mxu0 0
        %4964 = vmatpush2.bf16.msra.mxu0 0
        %4965 = vmatprep.subr.bf16.mxu0 0
        %4966 = vmatpush2.bf16.msra.mxu0 0
        %4967 = vmatprep.subr.bf16.mxu0 0
        %4968 = vmatpush2.bf16.msra.mxu0 0
        %4969 = vmatprep.subr.bf16.mxu0 0
        %4970 = vmatpush2.bf16.msra.mxu0 0
        %4971 = vmatprep.subr.bf16.mxu0 0
        %4972 = vmatpush2.bf16.msra.mxu0 0
        %4973 = vmatprep.subr.bf16.mxu0 0
        %4974 = vmatpush2.bf16.msra.mxu0 0
        %4975 = vmatprep.subr.bf16.mxu0 0
        %4976 = vmatpush2.bf16.msra.mxu0 0
        %4977 = vmatprep.mubr.bf16.mxu0 0
        %4978 = vmatmul.mubr.bf16.gmra.mxu0 %v4873
        %v4979 = vpop.f32.mrf.mxu0
        %v4980 = vadd.f32 %v4895, %v4979
        %v4981 = vpop.f32.mrf.mxu0
        %v4982 = vpop.f32.mrf.mxu0
        %v4983 = vpop.f32.mrf.mxu0
        %4984 = vdwg.mxu0
        %v4985 = vadd.f32 %v3940, %v4980
        %4986 = vadd.xlane.f32.xlu0 %v4985
        %v4987 = vpop.xlane.xlu0 %4986
        %v4988 = vmul.f32 %v4987, %v1436
        %v4989 = vsub.f32 %v4985, %v4988
        %v4990 = vmul.f32 %v4989, %v4989
        %4991 = vadd.xlane.f32.xlu0 %v4990
        %v4992 = vpop.xlane.xlu0 %4991
        %v4993 = vmul.f32 %v4992, %v1436
        %v4994 = vadd.f32 %v4993, 1e-05
        %v4995 = vrsqrt.pop %v4994
        %v4996 = vmul.f32 %v4989, %v4995
        %v4997 = vlaneseq
        %v4998 = vshrl.u32 %v4997, 7
        %v4999 = vsub.s32 2, %v4998
        %v5000 = vrot.slane %v2874, %v4999
        %v5001 = vmul.f32 %v4996, %v5000
        %v5002 = vlaneseq
        %v5003 = vshrl.u32 %v5002, 7
        %v5004 = vsub.s32 3, %v5003
        %v5005 = vrot.slane %v2874, %v5004
        %v5006 = vadd.f32 %v5001, %v5005
        %v5007 = vpack.c.bf16 %v5006, %v5006
        %v5008 = vld [vmem:[%s2876 + $0x20] sm:$0xff]
        %v5009 = vld [vmem:[%s2876 + $0x48] sm:$0xff]
        %v5010 = vld [vmem:[%s2876 + $0x70] sm:$0xff]
        %v5011 = vld [vmem:[%s2876 + $0x98] sm:$0xff]
        %v5012 = vld [vmem:[%s2876 + $0xc0] sm:$0xff]
        %v5013 = vld [vmem:[%s2876 + $0xe8] sm:$0xff]
        %v5014 = vld [vmem:[%s2876 + $0x110] sm:$0xff]
        %v5015 = vld [vmem:[%s2876 + $0x138] sm:$0xff]
        %v5016 = vld [vmem:[%s2876 + $0x160] sm:$0xff]
        %v5017 = vld [vmem:[%s2876 + $0x188] sm:$0xff]
        %v5018 = vld [vmem:[%s2876 + $0x1b0] sm:$0xff]
        %v5019 = vld [vmem:[%s2876 + $0x1d8] sm:$0xff]
        %v5020 = vld [vmem:[%s2876 + $0x200] sm:$0xff]
        %v5021 = vld [vmem:[%s2876 + $0x228] sm:$0xff]
        %v5022 = vld [vmem:[%s2876 + $0x250] sm:$0xff]
        %v5023 = vld [vmem:[%s2876 + $0x278] sm:$0xff]
        %v5024 = vld [vmem:[%s2909 + $0x8] sm:$0x3]
        %v5026 = vlaneseq
        %v5027 = vshrl.u32 %v5026, 7
        %v5028 = vsub.s32 0, %v5027
        %v5029 = vrot.slane %v5024, %v5028
        %v5030 = vlaneseq
        %v5031 = vshrl.u32 %v5030, 7
        %v5032 = vsub.s32 1, %v5031
        %v5033 = vrot.slane %v5024, %v5032
        %v5052 = vunpack.c.l.b16 %v5008
        %v5053 = vunpack.c.h.b16 %v5008
        %v5054 = vunpack.c.l.b16 %v5009
        %v5055 = vunpack.c.h.b16 %v5009
        %v5056 = vunpack.c.l.b16 %v5010
        %v5057 = vunpack.c.h.b16 %v5010
        %v5058 = vunpack.c.l.b16 %v5011
        %v5059 = vunpack.c.h.b16 %v5011
        %v5060 = vunpack.c.l.b16 %v5012
        %v5061 = vunpack.c.h.b16 %v5012
        %v5062 = vunpack.c.l.b16 %v5013
        %v5063 = vunpack.c.h.b16 %v5013
        %v5064 = vunpack.c.l.b16 %v5014
        %v5065 = vunpack.c.h.b16 %v5014
        %v5066 = vunpack.c.l.b16 %v5015
        %v5067 = vunpack.c.h.b16 %v5015
        %v5068 = vunpack.c.l.b16 %v5016
        %v5069 = vunpack.c.h.b16 %v5016
        %v5070 = vunpack.c.l.b16 %v5017
        %v5071 = vunpack.c.h.b16 %v5017
        %v5072 = vunpack.c.l.b16 %v5018
        %v5073 = vunpack.c.h.b16 %v5018
        %v5074 = vunpack.c.l.b16 %v5019
        %v5075 = vunpack.c.h.b16 %v5019
        %v5076 = vunpack.c.l.b16 %v5020
        %v5077 = vunpack.c.h.b16 %v5020
        %v5078 = vunpack.c.l.b16 %v5021
        %v5079 = vunpack.c.h.b16 %v5021
        %v5080 = vunpack.c.l.b16 %v5022
        %v5081 = vunpack.c.h.b16 %v5022
        %v5082 = vunpack.c.l.b16 %v5023
        %v5083 = vunpack.c.h.b16 %v5023
        %v5084 = vpack.c.b16 %v5054, %v5052
        %v5085 = vpack.c.b16 %v5055, %v5053
        %v5086 = vpack.c.b16 %v5058, %v5056
        %v5087 = vpack.c.b16 %v5059, %v5057
        %v5088 = vpack.c.b16 %v5062, %v5060
        %v5089 = vpack.c.b16 %v5063, %v5061
        %v5090 = vpack.c.b16 %v5066, %v5064
        %v5091 = vpack.c.b16 %v5067, %v5065
        %v5092 = vpack.c.b16 %v5070, %v5068
        %v5093 = vpack.c.b16 %v5071, %v5069
        %v5094 = vpack.c.b16 %v5074, %v5072
        %v5095 = vpack.c.b16 %v5075, %v5073
        %v5096 = vpack.c.b16 %v5078, %v5076
        %v5097 = vpack.c.b16 %v5079, %v5077
        %v5098 = vpack.c.b16 %v5082, %v5080
        %v5099 = vpack.c.b16 %v5083, %v5081
        %5116 = vmatprep.subr.bf16.mxu0 %v5099
        %5117 = vmatpush1.bf16.msra.mxu0 %v5098
        %5118 = vmatprep.subr.bf16.mxu0 %v5097
        %5119 = vmatpush1.bf16.msra.mxu0 %v5096
        %5120 = vmatprep.subr.bf16.mxu0 %v5095
        %5121 = vmatpush1.bf16.msra.mxu0 %v5094
        %5122 = vmatprep.subr.bf16.mxu0 %v5093
        %5123 = vmatpush1.bf16.msra.mxu0 %v5092
        %5124 = vmatprep.subr.bf16.mxu0 %v5091
        %5125 = vmatpush1.bf16.msra.mxu0 %v5090
        %5126 = vmatprep.subr.bf16.mxu0 %v5089
        %5127 = vmatpush1.bf16.msra.mxu0 %v5088
        %5128 = vmatprep.subr.bf16.mxu0 %v5087
        %5129 = vmatpush1.bf16.msra.mxu0 %v5086
        %5130 = vmatprep.subr.bf16.mxu0 %v5085
        %5131 = vmatpush1.bf16.msra.mxu0 %v5084
        %5132 = vmatprep.subr.bf16.mxu0 0
        %5133 = vmatpush2.bf16.msra.mxu0 0
        %5134 = vmatprep.subr.bf16.mxu0 0
        %5135 = vmatpush2.bf16.msra.mxu0 0
        %5136 = vmatprep.subr.bf16.mxu0 0
        %5137 = vmatpush2.bf16.msra.mxu0 0
        %5138 = vmatprep.subr.bf16.mxu0 0
        %5139 = vmatpush2.bf16.msra.mxu0 0
        %5140 = vmatprep.subr.bf16.mxu0 0
        %5141 = vmatpush2.bf16.msra.mxu0 0
        %5142 = vmatprep.subr.bf16.mxu0 0
        %5143 = vmatpush2.bf16.msra.mxu0 0
        %5144 = vmatprep.subr.bf16.mxu0 0
        %5145 = vmatpush2.bf16.msra.mxu0 0
        %5146 = vmatprep.subr.bf16.mxu0 0
        %5147 = vmatpush2.bf16.msra.mxu0 0
        %5148 = vmatprep.mubr.bf16.mxu0 0
        %5149 = vmatmul.mubr.bf16.gmra.mxu0 %v5007
        %v5150 = vpop.f32.mrf.mxu0
        %v5151 = vadd.f32 %v5029, %v5150
        %v5152 = vpop.f32.mrf.mxu0
        %v5153 = vadd.f32 %v5033, %v5152
        %v5154 = vpop.f32.mrf.mxu0
        %v5155 = vpop.f32.mrf.mxu0
        %5156 = vdwg.mxu0
        %v5157 = vmax.f32 %v5151, 0.0
        %v5158 = vmax.f32 %v5153, 0.0
        %v5159 = vpack.c.bf16 %v5157, %v5157
        %v5160 = vpack.c.bf16 %v5158, %v5158
        %s5161 = scalar_lea.vmem %s3, 128
        %v5162 = vld [vmem:[%s5161] sm:$0xf]
        %v5163 = vld [vmem:[%s5161 + $0x4] sm:$0xf]
        %v5164 = vld [vmem:[%s5161 + $0x8] sm:$0xf]
        %v5165 = vld [vmem:[%s5161 + $0xc] sm:$0xf]
        %v5166 = vld [vmem:[%s5161 + $0x10] sm:$0xf]
        %v5167 = vld [vmem:[%s5161 + $0x14] sm:$0xf]
        %v5168 = vld [vmem:[%s5161 + $0x18] sm:$0xf]
        %v5169 = vld [vmem:[%s5161 + $0x1c] sm:$0xf]
        %v5170 = vld [vmem:[%s5161 + $0x20] sm:$0xf]
        %v5171 = vld [vmem:[%s5161 + $0x24] sm:$0xf]
        %v5172 = vld [vmem:[%s5161 + $0x28] sm:$0xf]
        %v5173 = vld [vmem:[%s5161 + $0x2c] sm:$0xf]
        %v5174 = vld [vmem:[%s5161 + $0x30] sm:$0xf]
        %v5175 = vld [vmem:[%s5161 + $0x34] sm:$0xf]
        %v5176 = vld [vmem:[%s5161 + $0x38] sm:$0xf]
        %v5177 = vld [vmem:[%s5161 + $0x3c] sm:$0xf]
        %v5178 = vld [vmem:[%s5161 + $0x40] sm:$0xf]
        %v5179 = vld [vmem:[%s5161 + $0x44] sm:$0xf]
        %v5180 = vld [vmem:[%s5161 + $0x48] sm:$0xf]
        %v5181 = vld [vmem:[%s5161 + $0x4c] sm:$0xf]
        %v5182 = vld [vmem:[%s5161 + $0x50] sm:$0xf]
        %v5183 = vld [vmem:[%s5161 + $0x54] sm:$0xf]
        %v5184 = vld [vmem:[%s5161 + $0x58] sm:$0xf]
        %v5185 = vld [vmem:[%s5161 + $0x5c] sm:$0xf]
        %v5186 = vld [vmem:[%s5161 + $0x60] sm:$0xf]
        %v5187 = vld [vmem:[%s5161 + $0x64] sm:$0xf]
        %v5188 = vld [vmem:[%s5161 + $0x68] sm:$0xf]
        %v5189 = vld [vmem:[%s5161 + $0x6c] sm:$0xf]
        %v5190 = vld [vmem:[%s5161 + $0x70] sm:$0xf]
        %v5191 = vld [vmem:[%s5161 + $0x74] sm:$0xf]
        %v5192 = vld [vmem:[%s5161 + $0x78] sm:$0xf]
        %v5193 = vld [vmem:[%s5161 + $0x7c] sm:$0xf]
        %v5194 = vld [vmem:[%s2909 + $0xa] sm:$0x1]
        %v5196 = vlaneseq
        %v5197 = vshrl.u32 %v5196, 7
        %v5198 = vsub.s32 0, %v5197
        %v5199 = vrot.slane %v5194, %v5198
        %v5233 = vunpack.c.l.b16 %v5162
        %v5234 = vunpack.c.l.b16 %v5163
        %v5235 = vunpack.c.l.b16 %v5164
        %v5236 = vunpack.c.l.b16 %v5165
        %v5237 = vunpack.c.l.b16 %v5166
        %v5238 = vunpack.c.l.b16 %v5167
        %v5239 = vunpack.c.l.b16 %v5168
        %v5240 = vunpack.c.l.b16 %v5169
        %v5241 = vunpack.c.l.b16 %v5170
        %v5242 = vunpack.c.l.b16 %v5171
        %v5243 = vunpack.c.l.b16 %v5172
        %v5244 = vunpack.c.l.b16 %v5173
        %v5245 = vunpack.c.l.b16 %v5174
        %v5246 = vunpack.c.l.b16 %v5175
        %v5247 = vunpack.c.l.b16 %v5176
        %v5248 = vunpack.c.l.b16 %v5177
        %v5249 = vunpack.c.l.b16 %v5178
        %v5250 = vunpack.c.l.b16 %v5179
        %v5251 = vunpack.c.l.b16 %v5180
        %v5252 = vunpack.c.l.b16 %v5181
        %v5253 = vunpack.c.l.b16 %v5182
        %v5254 = vunpack.c.l.b16 %v5183
        %v5255 = vunpack.c.l.b16 %v5184
        %v5256 = vunpack.c.l.b16 %v5185
        %v5257 = vunpack.c.l.b16 %v5186
        %v5258 = vunpack.c.l.b16 %v5187
        %v5259 = vunpack.c.l.b16 %v5188
        %v5260 = vunpack.c.l.b16 %v5189
        %v5261 = vunpack.c.l.b16 %v5190
        %v5262 = vunpack.c.l.b16 %v5191
        %v5263 = vunpack.c.l.b16 %v5192
        %v5264 = vunpack.c.l.b16 %v5193
        %v5265 = vpack.c.b16 %v5234, %v5233
        %v5266 = vpack.c.b16 %v5236, %v5235
        %v5267 = vpack.c.b16 %v5238, %v5237
        %v5268 = vpack.c.b16 %v5240, %v5239
        %v5269 = vpack.c.b16 %v5242, %v5241
        %v5270 = vpack.c.b16 %v5244, %v5243
        %v5271 = vpack.c.b16 %v5246, %v5245
        %v5272 = vpack.c.b16 %v5248, %v5247
        %v5273 = vpack.c.b16 %v5250, %v5249
        %v5274 = vpack.c.b16 %v5252, %v5251
        %v5275 = vpack.c.b16 %v5254, %v5253
        %v5276 = vpack.c.b16 %v5256, %v5255
        %v5277 = vpack.c.b16 %v5258, %v5257
        %v5278 = vpack.c.b16 %v5260, %v5259
        %v5279 = vpack.c.b16 %v5262, %v5261
        %v5280 = vpack.c.b16 %v5264, %v5263
        %5297 = vmatprep.subr.bf16.mxu0 0
        %5298 = vmatpush1.bf16.msra.mxu0 %v5272
        %5299 = vmatprep.subr.bf16.mxu0 0
        %5300 = vmatpush1.bf16.msra.mxu0 %v5271
        %5301 = vmatprep.subr.bf16.mxu0 0
        %5302 = vmatpush1.bf16.msra.mxu0 %v5270
        %5303 = vmatprep.subr.bf16.mxu0 0
        %5304 = vmatpush1.bf16.msra.mxu0 %v5269
        %5305 = vmatprep.subr.bf16.mxu0 0
        %5306 = vmatpush1.bf16.msra.mxu0 %v5268
        %5307 = vmatprep.subr.bf16.mxu0 0
        %5308 = vmatpush1.bf16.msra.mxu0 %v5267
        %5309 = vmatprep.subr.bf16.mxu0 0
        %5310 = vmatpush1.bf16.msra.mxu0 %v5266
        %5311 = vmatprep.subr.bf16.mxu0 0
        %5312 = vmatpush1.bf16.msra.mxu0 %v5265
        %5313 = vmatprep.subr.bf16.mxu0 0
        %5314 = vmatpush2.bf16.msra.mxu0 %v5280
        %5315 = vmatprep.subr.bf16.mxu0 0
        %5316 = vmatpush2.bf16.msra.mxu0 %v5279
        %5317 = vmatprep.subr.bf16.mxu0 0
        %5318 = vmatpush2.bf16.msra.mxu0 %v5278
        %5319 = vmatprep.subr.bf16.mxu0 0
        %5320 = vmatpush2.bf16.msra.mxu0 %v5277
        %5321 = vmatprep.subr.bf16.mxu0 0
        %5322 = vmatpush2.bf16.msra.mxu0 %v5276
        %5323 = vmatprep.subr.bf16.mxu0 0
        %5324 = vmatpush2.bf16.msra.mxu0 %v5275
        %5325 = vmatprep.subr.bf16.mxu0 0
        %5326 = vmatpush2.bf16.msra.mxu0 %v5274
        %5327 = vmatprep.subr.bf16.mxu0 0
        %5328 = vmatpush2.bf16.msra.mxu0 %v5273
        %5329 = vmatprep.mubr.bf16.mxu0 %v5160
        %5330 = vmatmul.mubr.bf16.gmra.mxu0 %v5159
        %v5331 = vpop.f32.mrf.mxu0
        %v5332 = vadd.f32 %v5199, %v5331
        %v5333 = vpop.f32.mrf.mxu0
        %v5334 = vpop.f32.mrf.mxu0
        %v5335 = vpop.f32.mrf.mxu0
        %5336 = vdwg.mxu0
        %v5337 = vadd.f32 %v5006, %v5332
        %5338 = vadd.xlane.f32.xlu0 %v5337
        %v5339 = vpop.xlane.xlu0 %5338
        %v5340 = vmul.f32 %v5339, %v1436
        %v5341 = vsub.f32 %v5337, %v5340
        %v5342 = vmul.f32 %v5341, %v5341
        %5343 = vadd.xlane.f32.xlu0 %v5342
        %v5344 = vpop.xlane.xlu0 %5343
        %v5345 = vmul.f32 %v5344, %v1436
        %v5346 = vadd.f32 %v5345, 1e-05
        %v5347 = vrsqrt.pop %v5346
        %v5348 = vmul.f32 %v5341, %v5347
        %v5349 = vlaneseq
        %v5350 = vshrl.u32 %v5349, 7
        %v5351 = vsub.s32 4, %v5350
        %v5352 = vrot.slane %v2874, %v5351
        %v5353 = vmul.f32 %v5348, %v5352
        %v5354 = vlaneseq
        %v5355 = vshrl.u32 %v5354, 7
        %v5356 = vsub.s32 5, %v5355
        %v5357 = vrot.slane %v2874, %v5356
        %v5358 = vadd.f32 %v5353, %v5357
        %v5359 = vpack.c.bf16 %v5358, %v5358
        %v5360 = vld [vmem:[#allocation8] sm:$0xff]
        %v5361 = vld [vmem:[#allocation8 + $0x8] sm:$0xff]
        %v5362 = vld [vmem:[#allocation8 + $0x10] sm:$0xff]
        %v5363 = vld [vmem:[#allocation8 + $0x18] sm:$0xff]
        %v5364 = vld [vmem:[#allocation8 + $0x20] sm:$0xff]
        %v5365 = vld [vmem:[#allocation8 + $0x28] sm:$0xff]
        %v5366 = vld [vmem:[#allocation8 + $0x30] sm:$0xff]
        %v5367 = vld [vmem:[#allocation8 + $0x38] sm:$0xff]
        %v5368 = vld [vmem:[#allocation8 + $0x40] sm:$0xff]
        %v5369 = vld [vmem:[#allocation8 + $0x48] sm:$0xff]
        %v5370 = vld [vmem:[#allocation8 + $0x50] sm:$0xff]
        %v5371 = vld [vmem:[#allocation8 + $0x58] sm:$0xff]
        %v5372 = vld [vmem:[#allocation8 + $0x60] sm:$0xff]
        %v5373 = vld [vmem:[#allocation8 + $0x68] sm:$0xff]
        %v5374 = vld [vmem:[#allocation8 + $0x70] sm:$0xff]
        %v5375 = vld [vmem:[#allocation8 + $0x78] sm:$0xff]
        %v5376 = vld [vmem:[%s7] sm:$0x3]
        %v5378 = vlaneseq
        %v5379 = vshrl.u32 %v5378, 7
        %v5380 = vsub.s32 0, %v5379
        %v5381 = vrot.slane %v5376, %v5380
        %v5382 = vlaneseq
        %v5383 = vshrl.u32 %v5382, 7
        %v5384 = vsub.s32 1, %v5383
        %v5385 = vrot.slane %v5376, %v5384
        %v5404 = vunpack.c.l.b16 %v5360
        %v5405 = vunpack.c.h.b16 %v5360
        %v5406 = vunpack.c.l.b16 %v5361
        %v5407 = vunpack.c.h.b16 %v5361
        %v5408 = vunpack.c.l.b16 %v5362
        %v5409 = vunpack.c.h.b16 %v5362
        %v5410 = vunpack.c.l.b16 %v5363
        %v5411 = vunpack.c.h.b16 %v5363
        %v5412 = vunpack.c.l.b16 %v5364
        %v5413 = vunpack.c.h.b16 %v5364
        %v5414 = vunpack.c.l.b16 %v5365
        %v5415 = vunpack.c.h.b16 %v5365
        %v5416 = vunpack.c.l.b16 %v5366
        %v5417 = vunpack.c.h.b16 %v5366
        %v5418 = vunpack.c.l.b16 %v5367
        %v5419 = vunpack.c.h.b16 %v5367
        %v5420 = vunpack.c.l.b16 %v5368
        %v5421 = vunpack.c.h.b16 %v5368
        %v5422 = vunpack.c.l.b16 %v5369
        %v5423 = vunpack.c.h.b16 %v5369
        %v5424 = vunpack.c.l.b16 %v5370
        %v5425 = vunpack.c.h.b16 %v5370
        %v5426 = vunpack.c.l.b16 %v5371
        %v5427 = vunpack.c.h.b16 %v5371
        %v5428 = vunpack.c.l.b16 %v5372
        %v5429 = vunpack.c.h.b16 %v5372
        %v5430 = vunpack.c.l.b16 %v5373
        %v5431 = vunpack.c.h.b16 %v5373
        %v5432 = vunpack.c.l.b16 %v5374
        %v5433 = vunpack.c.h.b16 %v5374
        %v5434 = vunpack.c.l.b16 %v5375
        %v5435 = vunpack.c.h.b16 %v5375
        %v5436 = vpack.c.b16 %v5406, %v5404
        %v5437 = vpack.c.b16 %v5407, %v5405
        %v5438 = vpack.c.b16 %v5410, %v5408
        %v5439 = vpack.c.b16 %v5411, %v5409
        %v5440 = vpack.c.b16 %v5414, %v5412
        %v5441 = vpack.c.b16 %v5415, %v5413
        %v5442 = vpack.c.b16 %v5418, %v5416
        %v5443 = vpack.c.b16 %v5419, %v5417
        %v5444 = vpack.c.b16 %v5422, %v5420
        %v5445 = vpack.c.b16 %v5423, %v5421
        %v5446 = vpack.c.b16 %v5426, %v5424
        %v5447 = vpack.c.b16 %v5427, %v5425
        %v5448 = vpack.c.b16 %v5430, %v5428
        %v5449 = vpack.c.b16 %v5431, %v5429
        %v5450 = vpack.c.b16 %v5434, %v5432
        %v5451 = vpack.c.b16 %v5435, %v5433
        %5468 = vmatprep.subr.bf16.mxu0 %v5451
        %5469 = vmatpush1.bf16.msra.mxu0 %v5450
        %5470 = vmatprep.subr.bf16.mxu0 %v5449
        %5471 = vmatpush1.bf16.msra.mxu0 %v5448
        %5472 = vmatprep.subr.bf16.mxu0 %v5447
        %5473 = vmatpush1.bf16.msra.mxu0 %v5446
        %5474 = vmatprep.subr.bf16.mxu0 %v5445
        %5475 = vmatpush1.bf16.msra.mxu0 %v5444
        %5476 = vmatprep.subr.bf16.mxu0 %v5443
        %5477 = vmatpush1.bf16.msra.mxu0 %v5442
        %5478 = vmatprep.subr.bf16.mxu0 %v5441
        %5479 = vmatpush1.bf16.msra.mxu0 %v5440
        %5480 = vmatprep.subr.bf16.mxu0 %v5439
        %5481 = vmatpush1.bf16.msra.mxu0 %v5438
        %5482 = vmatprep.subr.bf16.mxu0 %v5437
        %5483 = vmatpush1.bf16.msra.mxu0 %v5436
        %5484 = vmatprep.subr.bf16.mxu0 0
        %5485 = vmatpush2.bf16.msra.mxu0 0
        %5486 = vmatprep.subr.bf16.mxu0 0
        %5487 = vmatpush2.bf16.msra.mxu0 0
        %5488 = vmatprep.subr.bf16.mxu0 0
        %5489 = vmatpush2.bf16.msra.mxu0 0
        %5490 = vmatprep.subr.bf16.mxu0 0
        %5491 = vmatpush2.bf16.msra.mxu0 0
        %5492 = vmatprep.subr.bf16.mxu0 0
        %5493 = vmatpush2.bf16.msra.mxu0 0
        %5494 = vmatprep.subr.bf16.mxu0 0
        %5495 = vmatpush2.bf16.msra.mxu0 0
        %5496 = vmatprep.subr.bf16.mxu0 0
        %5497 = vmatpush2.bf16.msra.mxu0 0
        %5498 = vmatprep.subr.bf16.mxu0 0
        %5499 = vmatpush2.bf16.msra.mxu0 0
        %5500 = vmatprep.mubr.bf16.mxu0 0
        %5501 = vmatmul.mubr.bf16.gmra.mxu0 %v5359
        %v5502 = vpop.f32.mrf.mxu0
        %v5503 = vadd.f32 %v5381, %v5502
        %v5504 = vpop.f32.mrf.mxu0
        %v5505 = vadd.f32 %v5385, %v5504
        %v5506 = vpop.f32.mrf.mxu0
        %v5507 = vpop.f32.mrf.mxu0
        %5508 = vdwg.mxu0
        %5509 = vst [vmem:[%s377] sm:$0xff] %v5503
        %5510 = vst [vmem:[%s377 + $0x8] sm:$0xff] %v5505
        %s5511 = sand.u32 %s213, 1
        %s5512 = scalar_lea.sflag [#allocation4], %s5511
        %s5513 = sand.u32 %s213, 1
        %s5514 = smul.addr %s5513, 16
        %s5515 = scalar_lea.vmem [#allocation10], %s5514
        // Predicated region
        $region69: #{transformer_decoder_forward.1} parent=51 // pred_check
          %p5516 = pneg %p223
        $region70: #{transformer_decoder_forward.1} parent=51 // pred_check_branch
          %5518 = sbr.rel (%p5516) target = $region72
        $region71: #{transformer_decoder_forward.1} parent=51 // pred_region
          %s5520 = ssub.s32 256, 256
          %5521 = vsyncadd %s5512, %s5520
          %s5522 = smul.addr %s27, 2
          %s5523 = smul.addr %s5522, 128
          %s5524 = scalar_lea.hbm %s8, %s5523
          %s5526 = sshll.u32 %s5515, 4
          %s5527 = int_to_ptr.vmem [resolvable:$true] %s5526
          %5529 = dma.vmem_to_hbm [thread:$0]  %s5527, 256, %s5524, %s5512
        $region72: #{transformer_decoder_forward.1} parent=51 // pred_fallthru
          _
      $region52: #{transformer_decoder_forward.1} parent=5 // pred_fallthru
        _
      %p5530 = scmp.le.s32.totalorder 2, %s22
      // Predicated region
      $region73: #{transformer_decoder_forward.1} parent=5 // pred_check
        %p5531 = pneg %p5530
      $region74: #{transformer_decoder_forward.1} parent=5 // pred_check_branch
        %5533 = sbr.rel (%p5531) target = $region76
      $region75: #{transformer_decoder_forward.1} parent=5 // pred_region
        %s5534 = ssub.s32 %s22, 2
        // Predicated region
        $region77: #{transformer_decoder_forward.1} parent=75 // pred_check
          %p5535 = pneg %p229
        $region78: #{transformer_decoder_forward.1} parent=75 // pred_check_branch
          %5537 = sbr.rel (%p5535) target = $region80
        $region79: #{transformer_decoder_forward.1} parent=75 // pred_region
          %s5538 = sand.u32 %s214, 1
          %s5539 = scalar_lea.sflag [#allocation4], %s5538
          %s5540 = sand.u32 %s214, 1
          %s5541 = smul.addr %s5540, 16
          %s5542 = scalar_lea.vmem [#allocation10], %s5541
          %5543 = dma.done %s5539, 256
        $region80: #{transformer_decoder_forward.1} parent=75 // pred_fallthru
          _
      $region76: #{transformer_decoder_forward.1} parent=5 // pred_fallthru
        _
    $region6: #{transformer_decoder_forward.1} parent=1 // loop_footer
      %s26 = sadd.s32 1, %s22
    $region7: #{transformer_decoder_forward.1} parent=1 // loop_footer_branch
      %21 = sbr.rel target = $region3
    $region8: #{transformer_decoder_forward.1} parent=1 // loop_exit
      _
    %5544 = vsyncpa [#allocation3], 1
    %s5545 = scalar_lea.sflag [#allocation3], 1
    %5546 = vsyncpa %s5545, 1
    %5547 = vsyncpa [#allocation6], 1
    %5548 = vsyncpa [#allocation9], 1
    %5549 = vsyncpa [#allocation4], 1
    %s5550 = scalar_lea.sflag [#allocation4], 1
    %5551 = vsyncpa %s5550, 1

</llo_original>
